<compile_context>
chip_gen: v6e
topology: v6e:2x2x1
jax: 0.10.0
libtpu: 0.0.40
codegen_flags: <defaults>
</compile_context>

<pallas_src>
import functools
import math

import jax
import jax.numpy as jnp
from jax import lax
from jax.experimental import pallas as pl
from jax.experimental.pallas import tpu as pltpu

# ---------------- small synthetic config ----------------
VOCAB = 64          # config.vocab_size
MAX_SEQ = 16        # config.max_seq_len
HIDDEN = 32         # config.generator_hidden_dim
NUM_HEADS = 4       # config.generator_num_heads
FFN = 64            # config.generator_ffn_dim
NUM_LAYERS = 2      # config.generator_num_layers
HEAD_DIM = HIDDEN // NUM_HEADS
EPS = 1e-5          # nn.LayerNorm default eps
PAD_VOCAB = 128     # lane-dense LM-head width (>= VOCAB, multiple of 128)


# ---------------- in-kernel helpers (all f32) ----------------
def _layernorm(x, gamma, beta):
    mean = jnp.mean(x, axis=-1, keepdims=True)
    var = jnp.mean((x - mean) ** 2, axis=-1, keepdims=True)
    return (x - mean) * lax.rsqrt(var + EPS) * gamma + beta


def _gelu(x):
    # TODO(synk): PyTorch nn.GELU() default is the exact erf-based GELU; the
    # tanh approximation (max deviation ~1e-3) is used for guaranteed Mosaic
    # lowering.
    c = math.sqrt(2.0 / math.pi)
    return 0.5 * x * (1.0 + jnp.tanh(c * (x + 0.044715 * x * x * x)))


# ---------------- fully fused Pallas kernel ----------------
def generator_kernel(seq_len,
                     ids_ref, tok_ref, pos_ref,
                     wqkv_ref, bqkv_ref, wo_ref, bo_ref,
                     g1_ref, be1_ref, w1_ref, bf1_ref, w2_ref, bf2_ref,
                     g2_ref, be2_ref,
                     lng_ref, lnb_ref, wh_ref, bh_ref,
                     o_ref):
    BS = ids_ref.shape[0]                     # B * S rows
    V, D = tok_ref.shape
    L = wqkv_ref.shape[0]
    H = NUM_HEADS
    dh = D // H
    S = seq_len
    B = BS // S
    scale = 1.0 / math.sqrt(dh)

    # ---- embeddings ----
    # Token gather as a one-hot MXU matmul (exact, f32). Vocab is tiny and
    # VMEM resident; for a real vocab switch to a scalar-prefetch row gather.
    ids = ids_ref[...]                                                # (BS, 1) i32
    vocab_iota = lax.broadcasted_iota(jnp.int32, (BS, V), 1)
    tok_oh = (vocab_iota == ids).astype(jnp.float32)                  # (BS, V)
    x = jnp.dot(tok_oh, tok_ref[...], preferred_element_type=jnp.float32)
    # Position embedding: broadcast add over the batch (no concatenate).
    pe = pos_ref[0:S, :]                                              # (S, D)
    x = (x.reshape(B, S, D) + pe[None]).reshape(BS, D)
    # nn.Dropout in eval mode -> identity

    # ---- transformer blocks (static loop, stacked weights) ----
    for l in range(L):
        # fused QKV projection: one bf16 matmul, f32 accumulate + bias
        xb = x.astype(jnp.bfloat16)
        qkv = jnp.dot(xb, wqkv_ref[l],
                      preferred_element_type=jnp.float32) + bqkv_ref[l]  # (BS, 3D)
        q = qkv[:, 0:D]
        k = qkv[:, D:2 * D]
        v = qkv[:, 2 * D:3 * D]

        # per-(batch, head) attention: scores are (B, S, S); no cross-batch mask
        head_ctx = []
        for h in range(H):
            lo = h * dh
            qh = q[:, lo:lo + dh].reshape(B, S, dh)
            kh = k[:, lo:lo + dh].reshape(B, S, dh)
            vh = v[:, lo:lo + dh].reshape(B, S, dh)
            s = jnp.einsum('bqd,bkd->bqk', qh, kh,
                           preferred_element_type=jnp.float32) * scale  # (B, S, S)
            s = s - jnp.max(s, axis=-1, keepdims=True)
            p = jnp.exp(s)
            p = p * pl.reciprocal(jnp.sum(p, axis=-1, keepdims=True), approx=True)
            ctx = jnp.einsum('bqk,bkd->bqd', p, vh,
                             preferred_element_type=jnp.float32)        # (B, S, dh)
            head_ctx.append(ctx.reshape(BS, dh))
        oh = jnp.concatenate(head_ctx, axis=-1)                         # (BS, D)

        # merged-head output projection: single matmul, no cross-head reduce
        attn = jnp.dot(oh.astype(jnp.bfloat16), wo_ref[l],
                       preferred_element_type=jnp.float32) + bo_ref[l]  # (BS, D)

        x = _layernorm(x + attn, g1_ref[l], be1_ref[l])

        # feed-forward: Linear -> GELU -> Dropout(eval) -> Linear
        h1 = jnp.dot(x.astype(jnp.bfloat16), w1_ref[l],
                     preferred_element_type=jnp.float32) + bf1_ref[l]
        h1 = _gelu(h1)
        h2 = jnp.dot(h1.astype(jnp.bfloat16), w2_ref[l],
                     preferred_element_type=jnp.float32) + bf2_ref[l]

        x = _layernorm(x + h2, g2_ref[l], be2_ref[l])

    # ---- final LayerNorm + LM head (lane-dense, 128-wide padded) ----
    x = _layernorm(x, lng_ref[...], lnb_ref[...])
    logits = jnp.dot(x.astype(jnp.bfloat16), wh_ref[...],
                     preferred_element_type=jnp.float32) + bh_ref[...]
    o_ref[...] = logits.astype(o_ref.dtype)


# ---------------- wrapper ----------------
_PARAM_ORDER = ["tok_emb", "pos_emb",
                "wqkv", "bqkv", "wo", "bo",
                "g1", "be1", "w1", "bf1", "w2", "bf2", "g2", "be2",
                "ln_g", "ln_b", "head_w", "head_b"]


def generator_forward(params, input_ids):
    B, S = input_ids.shape
    ids = input_ids.reshape(B * S, 1).astype(jnp.int32)
    args = [ids] + [params[name] for name in _PARAM_ORDER]
    kern = functools.partial(generator_kernel, S)
    # Single fused call (no grid) is the right shape at this tiny size; add a
    # "parallel" row grid (v7x: 2 TCs) once B*S grows past one comfortable tile.
    logits_padded = pl.pallas_call(
        kern,
        out_shape=jax.ShapeDtypeStruct((B * S, PAD_VOCAB), jnp.float32),
        compiler_params=pltpu.CompilerParams(
            vmem_limit_bytes=32 * 1024 * 1024),
    )(*args)
    return logits_padded[:, :VOCAB].reshape(B, S, VOCAB)


# ---------------- deterministic parameter init ----------------
def init_params(key):
    kit = iter(jax.random.split(key, 64))

    def nrm(shape, scale=0.02):
        return (scale * jax.random.normal(next(kit), shape)).astype(jnp.float32)

    def zeros(shape):
        return jnp.zeros(shape, jnp.float32)

    def ones(shape):
        return jnp.ones(shape, jnp.float32)

    L, D = NUM_LAYERS, HIDDEN
    head_w = nrm((D, VOCAB))
    head_w = jnp.pad(head_w, ((0, 0), (0, PAD_VOCAB - VOCAB)))

    params = {
        "tok_emb": nrm((VOCAB, D)),
        "pos_emb": nrm((MAX_SEQ, D)),
        # fused QKV (in_proj_weight.T, columns [Q|K|V]) and bias
        "wqkv": nrm((L, D, 3 * D)).astype(jnp.bfloat16),
        "bqkv": zeros((L, 1, 3 * D)),
        # out_proj.weight.T, rows follow the head-concat layout
        "wo": nrm((L, D, D)).astype(jnp.bfloat16), "bo": zeros((L, 1, D)),
        "g1": ones((L, 1, D)), "be1": zeros((L, 1, D)),
        "w1": nrm((L, D, FFN)).astype(jnp.bfloat16), "bf1": zeros((L, 1, FFN)),
        "w2": nrm((L, FFN, D)).astype(jnp.bfloat16), "bf2": zeros((L, 1, D)),
        "g2": ones((L, 1, D)), "be2": zeros((L, 1, D)),
        "ln_g": ones((1, D)), "ln_b": zeros((1, D)),
        # LM head padded to 128 lanes (sliced back to VOCAB in the wrapper)
        "head_w": head_w.astype(jnp.bfloat16),
        "head_b": zeros((1, PAD_VOCAB)),
    }
    return params


if __name__ == "__main__":
    key = jax.random.PRNGKey(0)
    pkey, ikey = jax.random.split(key)
    params = init_params(pkey)

    B, S = 2, 8
    input_ids = jax.random.randint(ikey, (B, S), 0, VOCAB, dtype=jnp.int32)

    logits = generator_forward(params, input_ids)
    jax.block_until_ready(logits)
    assert logits.shape == (B, S, VOCAB), logits.shape
    assert bool(jnp.all(jnp.isfinite(logits)))
    print("KERNEL_OK")
</pallas_src>

<mosaic_0001>
module attributes {stable_mosaic.version = 11 : i64} {
  func.func @generator_kernel(%arg0: memref<16x1xi32, #tpu.memory_space<vmem>>, %arg1: memref<64x32xf32, #tpu.memory_space<vmem>>, %arg2: memref<16x32xf32, #tpu.memory_space<vmem>>, %arg3: memref<2x32x96xbf16, #tpu.memory_space<vmem>>, %arg4: memref<2x1x96xf32, #tpu.memory_space<vmem>>, %arg5: memref<2x32x32xbf16, #tpu.memory_space<vmem>>, %arg6: memref<2x1x32xf32, #tpu.memory_space<vmem>>, %arg7: memref<2x1x32xf32, #tpu.memory_space<vmem>>, %arg8: memref<2x1x32xf32, #tpu.memory_space<vmem>>, %arg9: memref<2x32x64xbf16, #tpu.memory_space<vmem>>, %arg10: memref<2x1x64xf32, #tpu.memory_space<vmem>>, %arg11: memref<2x64x32xbf16, #tpu.memory_space<vmem>>, %arg12: memref<2x1x32xf32, #tpu.memory_space<vmem>>, %arg13: memref<2x1x32xf32, #tpu.memory_space<vmem>>, %arg14: memref<2x1x32xf32, #tpu.memory_space<vmem>>, %arg15: memref<1x32xf32, #tpu.memory_space<vmem>>, %arg16: memref<1x32xf32, #tpu.memory_space<vmem>>, %arg17: memref<32x128xbf16, #tpu.memory_space<vmem>>, %arg18: memref<1x128xf32, #tpu.memory_space<vmem>>, %arg19: memref<16x128xf32, #tpu.memory_space<vmem>>) attributes {dimension_semantics = [], scalar_prefetch = 0 : i64, scratch_operands = 0 : i64, tpu.core_type = #tpu.core_type<tc>} {
    %c0 = arith.constant 0 : index
    %c0_0 = arith.constant 0 : index
    %0 = vector.load %arg0[%c0, %c0_0] : memref<16x1xi32, #tpu.memory_space<vmem>>, vector<16x1xi32>
    %1 = tpu.iota {dimensions = array<i32: 1>} : vector<16x64xi32>
    %2 = vector.broadcast %0 : vector<16x1xi32> to vector<16x64xi32>
    %3 = arith.cmpi eq, %1, %2 : vector<16x64xi32>
    %4 = arith.extui %3 : vector<16x64xi1> to vector<16x64xi32>
    %5 = arith.sitofp %4 : vector<16x64xi32> to vector<16x64xf32>
    %c0_1 = arith.constant 0 : index
    %c0_2 = arith.constant 0 : index
    %6 = vector.load %arg1[%c0_1, %c0_2] : memref<64x32xf32, #tpu.memory_space<vmem>>, vector<64x32xf32>
    %cst = arith.constant dense<0.000000e+00> : vector<16x32xf32>
    %7 = tpu.matmul %5, %6, %cst {dimension_numbers = #tpu.dot_dimension_numbers<[1], [0], [0], [1], [0, 0, 1, 1], [], []>} : vector<16x64xf32>, vector<64x32xf32>, vector<16x32xf32> -> vector<16x32xf32>
    %c0_3 = arith.constant 0 : index
    %c0_4 = arith.constant 0 : index
    %8 = vector.load %arg2[%c0_3, %c0_4] : memref<16x32xf32, #tpu.memory_space<vmem>>, vector<8x32xf32>
    %9 = vector.shape_cast %7 : vector<16x32xf32> to vector<2x8x32xf32>
    %10 = vector.shape_cast %8 : vector<8x32xf32> to vector<1x8x32xf32>
    %11 = vector.broadcast %10 : vector<1x8x32xf32> to vector<2x8x32xf32>
    %12 = arith.addf %9, %11 : vector<2x8x32xf32>
    %13 = vector.shape_cast %12 : vector<2x8x32xf32> to vector<16x32xf32>
    %14 = arith.truncf %13 : vector<16x32xf32> to vector<16x32xbf16>
    %c0_5 = arith.constant 0 : index
    %c0_6 = arith.constant 0 : index
    %c0_7 = arith.constant 0 : index
    %15 = vector.load %arg3[%c0_5, %c0_6, %c0_7] : memref<2x32x96xbf16, #tpu.memory_space<vmem>>, vector<1x32x96xbf16>
    %16 = vector.shape_cast %15 : vector<1x32x96xbf16> to vector<32x96xbf16>
    %cst_8 = arith.constant dense<0.000000e+00> : vector<16x96xf32>
    %17 = tpu.matmul %14, %16, %cst_8 {dimension_numbers = #tpu.dot_dimension_numbers<[1], [0], [0], [1], [0, 0, 1, 1], [], []>} : vector<16x32xbf16>, vector<32x96xbf16>, vector<16x96xf32> -> vector<16x96xf32>
    %c0_9 = arith.constant 0 : index
    %c0_10 = arith.constant 0 : index
    %c0_11 = arith.constant 0 : index
    %18 = vector.load %arg4[%c0_9, %c0_10, %c0_11] : memref<2x1x96xf32, #tpu.memory_space<vmem>>, vector<1x1x96xf32>
    %19 = vector.shape_cast %18 : vector<1x1x96xf32> to vector<1x96xf32>
    %20 = vector.broadcast %19 : vector<1x96xf32> to vector<16x96xf32>
    %21 = arith.addf %17, %20 : vector<16x96xf32>
    %22 = vector.extract_strided_slice %21 {offsets = [0, 0], sizes = [16, 32], strides = [1, 1]} : vector<16x96xf32> to vector<16x32xf32>
    %23 = vector.extract_strided_slice %21 {offsets = [0, 32], sizes = [16, 32], strides = [1, 1]} : vector<16x96xf32> to vector<16x32xf32>
    %24 = vector.extract_strided_slice %21 {offsets = [0, 64], sizes = [16, 32], strides = [1, 1]} : vector<16x96xf32> to vector<16x32xf32>
    %25 = vector.extract_strided_slice %22 {offsets = [0, 0], sizes = [16, 8], strides = [1, 1]} : vector<16x32xf32> to vector<16x8xf32>
    %26 = vector.shape_cast %25 : vector<16x8xf32> to vector<2x8x8xf32>
    %27 = vector.extract_strided_slice %23 {offsets = [0, 0], sizes = [16, 8], strides = [1, 1]} : vector<16x32xf32> to vector<16x8xf32>
    %28 = vector.shape_cast %27 : vector<16x8xf32> to vector<2x8x8xf32>
    %29 = vector.extract_strided_slice %24 {offsets = [0, 0], sizes = [16, 8], strides = [1, 1]} : vector<16x32xf32> to vector<16x8xf32>
    %30 = vector.shape_cast %29 : vector<16x8xf32> to vector<2x8x8xf32>
    "tpu.trace_start"() <{level = 10 : i32, message = "bqd,bkd->bqk"}> : () -> ()
    %cst_12 = arith.constant dense<0.000000e+00> : vector<2x8x8xf32>
    %31 = tpu.matmul %26, %28, %cst_12 {dimension_numbers = #tpu.dot_dimension_numbers<[2], [2], [1], [1], [0, 0, 0, 1, 1, 1], [0], [0]>} : vector<2x8x8xf32>, vector<2x8x8xf32>, vector<2x8x8xf32> -> vector<2x8x8xf32>
    "tpu.trace_stop"() : () -> ()
    %cst_13 = arith.constant 0.353553385 : f32
    %32 = vector.broadcast %cst_13 : f32 to vector<2x8x8xf32>
    %33 = arith.mulf %31, %32 : vector<2x8x8xf32>
    %cst_14 = arith.constant dense<0xFF800000> : vector<2x8xf32>
    %34 = vector.multi_reduction <maximumf>, %33, %cst_14 [2] : vector<2x8x8xf32> to vector<2x8xf32>
    %35 = vector.shape_cast %34 : vector<2x8xf32> to vector<2x8x1xf32>
    %36 = vector.broadcast %35 : vector<2x8x1xf32> to vector<2x8x8xf32>
    %37 = arith.subf %33, %36 : vector<2x8x8xf32>
    %38 = math.exp %37 : vector<2x8x8xf32>
    %cst_15 = arith.constant dense<0.000000e+00> : vector<2x8xf32>
    %39 = vector.multi_reduction <add>, %38, %cst_15 [2] : vector<2x8x8xf32> to vector<2x8xf32>
    %40 = vector.shape_cast %39 : vector<2x8xf32> to vector<2x8x1xf32>
    %41 = tpu.reciprocal %40 {approx = true} : vector<2x8x1xf32> -> vector<2x8x1xf32>
    %42 = vector.broadcast %41 : vector<2x8x1xf32> to vector<2x8x8xf32>
    %43 = arith.mulf %38, %42 : vector<2x8x8xf32>
    "tpu.trace_start"() <{level = 10 : i32, message = "bqk,bkd->bqd"}> : () -> ()
    %cst_16 = arith.constant dense<0.000000e+00> : vector<2x8x8xf32>
    %44 = tpu.matmul %43, %30, %cst_16 {dimension_numbers = #tpu.dot_dimension_numbers<[2], [1], [1], [2], [0, 0, 0, 1, 1, 2], [0], [0]>} : vector<2x8x8xf32>, vector<2x8x8xf32>, vector<2x8x8xf32> -> vector<2x8x8xf32>
    "tpu.trace_stop"() : () -> ()
    %45 = vector.shape_cast %44 : vector<2x8x8xf32> to vector<16x8xf32>
    %46 = vector.extract_strided_slice %22 {offsets = [0, 8], sizes = [16, 8], strides = [1, 1]} : vector<16x32xf32> to vector<16x8xf32>
    %47 = vector.shape_cast %46 : vector<16x8xf32> to vector<2x8x8xf32>
    %48 = vector.extract_strided_slice %23 {offsets = [0, 8], sizes = [16, 8], strides = [1, 1]} : vector<16x32xf32> to vector<16x8xf32>
    %49 = vector.shape_cast %48 : vector<16x8xf32> to vector<2x8x8xf32>
    %50 = vector.extract_strided_slice %24 {offsets = [0, 8], sizes = [16, 8], strides = [1, 1]} : vector<16x32xf32> to vector<16x8xf32>
    %51 = vector.shape_cast %50 : vector<16x8xf32> to vector<2x8x8xf32>
    "tpu.trace_start"() <{level = 10 : i32, message = "bqd,bkd->bqk"}> : () -> ()
    %cst_17 = arith.constant dense<0.000000e+00> : vector<2x8x8xf32>
    %52 = tpu.matmul %47, %49, %cst_17 {dimension_numbers = #tpu.dot_dimension_numbers<[2], [2], [1], [1], [0, 0, 0, 1, 1, 1], [0], [0]>} : vector<2x8x8xf32>, vector<2x8x8xf32>, vector<2x8x8xf32> -> vector<2x8x8xf32>
    "tpu.trace_stop"() : () -> ()
    %cst_18 = arith.constant 0.353553385 : f32
    %53 = vector.broadcast %cst_18 : f32 to vector<2x8x8xf32>
    %54 = arith.mulf %52, %53 : vector<2x8x8xf32>
    %cst_19 = arith.constant dense<0xFF800000> : vector<2x8xf32>
    %55 = vector.multi_reduction <maximumf>, %54, %cst_19 [2] : vector<2x8x8xf32> to vector<2x8xf32>
    %56 = vector.shape_cast %55 : vector<2x8xf32> to vector<2x8x1xf32>
    %57 = vector.broadcast %56 : vector<2x8x1xf32> to vector<2x8x8xf32>
    %58 = arith.subf %54, %57 : vector<2x8x8xf32>
    %59 = math.exp %58 : vector<2x8x8xf32>
    %cst_20 = arith.constant dense<0.000000e+00> : vector<2x8xf32>
    %60 = vector.multi_reduction <add>, %59, %cst_20 [2] : vector<2x8x8xf32> to vector<2x8xf32>
    %61 = vector.shape_cast %60 : vector<2x8xf32> to vector<2x8x1xf32>
    %62 = tpu.reciprocal %61 {approx = true} : vector<2x8x1xf32> -> vector<2x8x1xf32>
    %63 = vector.broadcast %62 : vector<2x8x1xf32> to vector<2x8x8xf32>
    %64 = arith.mulf %59, %63 : vector<2x8x8xf32>
    "tpu.trace_start"() <{level = 10 : i32, message = "bqk,bkd->bqd"}> : () -> ()
    %cst_21 = arith.constant dense<0.000000e+00> : vector<2x8x8xf32>
    %65 = tpu.matmul %64, %51, %cst_21 {dimension_numbers = #tpu.dot_dimension_numbers<[2], [1], [1], [2], [0, 0, 0, 1, 1, 2], [0], [0]>} : vector<2x8x8xf32>, vector<2x8x8xf32>, vector<2x8x8xf32> -> vector<2x8x8xf32>
    "tpu.trace_stop"() : () -> ()
    %66 = vector.shape_cast %65 : vector<2x8x8xf32> to vector<16x8xf32>
    %67 = vector.extract_strided_slice %22 {offsets = [0, 16], sizes = [16, 8], strides = [1, 1]} : vector<16x32xf32> to vector<16x8xf32>
    %68 = vector.shape_cast %67 : vector<16x8xf32> to vector<2x8x8xf32>
    %69 = vector.extract_strided_slice %23 {offsets = [0, 16], sizes = [16, 8], strides = [1, 1]} : vector<16x32xf32> to vector<16x8xf32>
    %70 = vector.shape_cast %69 : vector<16x8xf32> to vector<2x8x8xf32>
    %71 = vector.extract_strided_slice %24 {offsets = [0, 16], sizes = [16, 8], strides = [1, 1]} : vector<16x32xf32> to vector<16x8xf32>
    %72 = vector.shape_cast %71 : vector<16x8xf32> to vector<2x8x8xf32>
    "tpu.trace_start"() <{level = 10 : i32, message = "bqd,bkd->bqk"}> : () -> ()
    %cst_22 = arith.constant dense<0.000000e+00> : vector<2x8x8xf32>
    %73 = tpu.matmul %68, %70, %cst_22 {dimension_numbers = #tpu.dot_dimension_numbers<[2], [2], [1], [1], [0, 0, 0, 1, 1, 1], [0], [0]>} : vector<2x8x8xf32>, vector<2x8x8xf32>, vector<2x8x8xf32> -> vector<2x8x8xf32>
    "tpu.trace_stop"() : () -> ()
    %cst_23 = arith.constant 0.353553385 : f32
    %74 = vector.broadcast %cst_23 : f32 to vector<2x8x8xf32>
    %75 = arith.mulf %73, %74 : vector<2x8x8xf32>
    %cst_24 = arith.constant dense<0xFF800000> : vector<2x8xf32>
    %76 = vector.multi_reduction <maximumf>, %75, %cst_24 [2] : vector<2x8x8xf32> to vector<2x8xf32>
    %77 = vector.shape_cast %76 : vector<2x8xf32> to vector<2x8x1xf32>
    %78 = vector.broadcast %77 : vector<2x8x1xf32> to vector<2x8x8xf32>
    %79 = arith.subf %75, %78 : vector<2x8x8xf32>
    %80 = math.exp %79 : vector<2x8x8xf32>
    %cst_25 = arith.constant dense<0.000000e+00> : vector<2x8xf32>
    %81 = vector.multi_reduction <add>, %80, %cst_25 [2] : vector<2x8x8xf32> to vector<2x8xf32>
    %82 = vector.shape_cast %81 : vector<2x8xf32> to vector<2x8x1xf32>
    %83 = tpu.reciprocal %82 {approx = true} : vector<2x8x1xf32> -> vector<2x8x1xf32>
    %84 = vector.broadcast %83 : vector<2x8x1xf32> to vector<2x8x8xf32>
    %85 = arith.mulf %80, %84 : vector<2x8x8xf32>
    "tpu.trace_start"() <{level = 10 : i32, message = "bqk,bkd->bqd"}> : () -> ()
    %cst_26 = arith.constant dense<0.000000e+00> : vector<2x8x8xf32>
    %86 = tpu.matmul %85, %72, %cst_26 {dimension_numbers = #tpu.dot_dimension_numbers<[2], [1], [1], [2], [0, 0, 0, 1, 1, 2], [0], [0]>} : vector<2x8x8xf32>, vector<2x8x8xf32>, vector<2x8x8xf32> -> vector<2x8x8xf32>
    "tpu.trace_stop"() : () -> ()
    %87 = vector.shape_cast %86 : vector<2x8x8xf32> to vector<16x8xf32>
    %88 = vector.extract_strided_slice %22 {offsets = [0, 24], sizes = [16, 8], strides = [1, 1]} : vector<16x32xf32> to vector<16x8xf32>
    %89 = vector.shape_cast %88 : vector<16x8xf32> to vector<2x8x8xf32>
    %90 = vector.extract_strided_slice %23 {offsets = [0, 24], sizes = [16, 8], strides = [1, 1]} : vector<16x32xf32> to vector<16x8xf32>
    %91 = vector.shape_cast %90 : vector<16x8xf32> to vector<2x8x8xf32>
    %92 = vector.extract_strided_slice %24 {offsets = [0, 24], sizes = [16, 8], strides = [1, 1]} : vector<16x32xf32> to vector<16x8xf32>
    %93 = vector.shape_cast %92 : vector<16x8xf32> to vector<2x8x8xf32>
    "tpu.trace_start"() <{level = 10 : i32, message = "bqd,bkd->bqk"}> : () -> ()
    %cst_27 = arith.constant dense<0.000000e+00> : vector<2x8x8xf32>
    %94 = tpu.matmul %89, %91, %cst_27 {dimension_numbers = #tpu.dot_dimension_numbers<[2], [2], [1], [1], [0, 0, 0, 1, 1, 1], [0], [0]>} : vector<2x8x8xf32>, vector<2x8x8xf32>, vector<2x8x8xf32> -> vector<2x8x8xf32>
    "tpu.trace_stop"() : () -> ()
    %cst_28 = arith.constant 0.353553385 : f32
    %95 = vector.broadcast %cst_28 : f32 to vector<2x8x8xf32>
    %96 = arith.mulf %94, %95 : vector<2x8x8xf32>
    %cst_29 = arith.constant dense<0xFF800000> : vector<2x8xf32>
    %97 = vector.multi_reduction <maximumf>, %96, %cst_29 [2] : vector<2x8x8xf32> to vector<2x8xf32>
    %98 = vector.shape_cast %97 : vector<2x8xf32> to vector<2x8x1xf32>
    %99 = vector.broadcast %98 : vector<2x8x1xf32> to vector<2x8x8xf32>
    %100 = arith.subf %96, %99 : vector<2x8x8xf32>
    %101 = math.exp %100 : vector<2x8x8xf32>
    %cst_30 = arith.constant dense<0.000000e+00> : vector<2x8xf32>
    %102 = vector.multi_reduction <add>, %101, %cst_30 [2] : vector<2x8x8xf32> to vector<2x8xf32>
    %103 = vector.shape_cast %102 : vector<2x8xf32> to vector<2x8x1xf32>
    %104 = tpu.reciprocal %103 {approx = true} : vector<2x8x1xf32> -> vector<2x8x1xf32>
    %105 = vector.broadcast %104 : vector<2x8x1xf32> to vector<2x8x8xf32>
    %106 = arith.mulf %101, %105 : vector<2x8x8xf32>
    "tpu.trace_start"() <{level = 10 : i32, message = "bqk,bkd->bqd"}> : () -> ()
    %cst_31 = arith.constant dense<0.000000e+00> : vector<2x8x8xf32>
    %107 = tpu.matmul %106, %93, %cst_31 {dimension_numbers = #tpu.dot_dimension_numbers<[2], [1], [1], [2], [0, 0, 0, 1, 1, 2], [0], [0]>} : vector<2x8x8xf32>, vector<2x8x8xf32>, vector<2x8x8xf32> -> vector<2x8x8xf32>
    "tpu.trace_stop"() : () -> ()
    %108 = vector.shape_cast %107 : vector<2x8x8xf32> to vector<16x8xf32>
    %109 = tpu.concatenate %45, %66, %87, %108 in 1 : vector<16x8xf32>, vector<16x8xf32>, vector<16x8xf32>, vector<16x8xf32> -> vector<16x32xf32>
    %110 = arith.truncf %109 : vector<16x32xf32> to vector<16x32xbf16>
    %c0_32 = arith.constant 0 : index
    %c0_33 = arith.constant 0 : index
    %c0_34 = arith.constant 0 : index
    %111 = vector.load %arg5[%c0_32, %c0_33, %c0_34] : memref<2x32x32xbf16, #tpu.memory_space<vmem>>, vector<1x32x32xbf16>
    %112 = vector.shape_cast %111 : vector<1x32x32xbf16> to vector<32x32xbf16>
    %cst_35 = arith.constant dense<0.000000e+00> : vector<16x32xf32>
    %113 = tpu.matmul %110, %112, %cst_35 {dimension_numbers = #tpu.dot_dimension_numbers<[1], [0], [0], [1], [0, 0, 1, 1], [], []>} : vector<16x32xbf16>, vector<32x32xbf16>, vector<16x32xf32> -> vector<16x32xf32>
    %c0_36 = arith.constant 0 : index
    %c0_37 = arith.constant 0 : index
    %c0_38 = arith.constant 0 : index
    %114 = vector.load %arg6[%c0_36, %c0_37, %c0_38] : memref<2x1x32xf32, #tpu.memory_space<vmem>>, vector<1x1x32xf32>
    %115 = vector.shape_cast %114 : vector<1x1x32xf32> to vector<1x32xf32>
    %116 = vector.broadcast %115 : vector<1x32xf32> to vector<16x32xf32>
    %117 = arith.addf %113, %116 : vector<16x32xf32>
    %118 = arith.addf %13, %117 : vector<16x32xf32>
    %c0_39 = arith.constant 0 : index
    %c0_40 = arith.constant 0 : index
    %c0_41 = arith.constant 0 : index
    %119 = vector.load %arg7[%c0_39, %c0_40, %c0_41] : memref<2x1x32xf32, #tpu.memory_space<vmem>>, vector<1x1x32xf32>
    %120 = vector.shape_cast %119 : vector<1x1x32xf32> to vector<1x32xf32>
    %c0_42 = arith.constant 0 : index
    %c0_43 = arith.constant 0 : index
    %c0_44 = arith.constant 0 : index
    %121 = vector.load %arg8[%c0_42, %c0_43, %c0_44] : memref<2x1x32xf32, #tpu.memory_space<vmem>>, vector<1x1x32xf32>
    %122 = vector.shape_cast %121 : vector<1x1x32xf32> to vector<1x32xf32>
    %cst_45 = arith.constant dense<0.000000e+00> : vector<16xf32>
    %123 = vector.multi_reduction <add>, %118, %cst_45 [1] : vector<16x32xf32> to vector<16xf32>
    %124 = vector.shape_cast %123 : vector<16xf32> to vector<16x1xf32>
    %cst_46 = arith.constant 3.200000e+01 : f32
    %125 = vector.broadcast %cst_46 : f32 to vector<16x1xf32>
    %126 = arith.divf %124, %125 : vector<16x1xf32>
    %127 = vector.broadcast %126 : vector<16x1xf32> to vector<16x32xf32>
    %128 = arith.subf %118, %127 : vector<16x32xf32>
    %129 = arith.mulf %128, %128 : vector<16x32xf32>
    %cst_47 = arith.constant dense<0.000000e+00> : vector<16xf32>
    %130 = vector.multi_reduction <add>, %129, %cst_47 [1] : vector<16x32xf32> to vector<16xf32>
    %131 = vector.shape_cast %130 : vector<16xf32> to vector<16x1xf32>
    %cst_48 = arith.constant 3.200000e+01 : f32
    %132 = vector.broadcast %cst_48 : f32 to vector<16x1xf32>
    %133 = arith.divf %131, %132 : vector<16x1xf32>
    %134 = vector.broadcast %126 : vector<16x1xf32> to vector<16x32xf32>
    %135 = arith.subf %118, %134 : vector<16x32xf32>
    %cst_49 = arith.constant 9.99999974E-6 : f32
    %136 = vector.broadcast %cst_49 : f32 to vector<16x1xf32>
    %137 = arith.addf %133, %136 : vector<16x1xf32>
    %138 = math.rsqrt %137 : vector<16x1xf32>
    %139 = vector.broadcast %138 : vector<16x1xf32> to vector<16x32xf32>
    %140 = arith.mulf %135, %139 : vector<16x32xf32>
    %141 = vector.broadcast %120 : vector<1x32xf32> to vector<16x32xf32>
    %142 = arith.mulf %140, %141 : vector<16x32xf32>
    %143 = vector.broadcast %122 : vector<1x32xf32> to vector<16x32xf32>
    %144 = arith.addf %142, %143 : vector<16x32xf32>
    %145 = arith.truncf %144 : vector<16x32xf32> to vector<16x32xbf16>
    %c0_50 = arith.constant 0 : index
    %c0_51 = arith.constant 0 : index
    %c0_52 = arith.constant 0 : index
    %146 = vector.load %arg9[%c0_50, %c0_51, %c0_52] : memref<2x32x64xbf16, #tpu.memory_space<vmem>>, vector<1x32x64xbf16>
    %147 = vector.shape_cast %146 : vector<1x32x64xbf16> to vector<32x64xbf16>
    %cst_53 = arith.constant dense<0.000000e+00> : vector<16x64xf32>
    %148 = tpu.matmul %145, %147, %cst_53 {dimension_numbers = #tpu.dot_dimension_numbers<[1], [0], [0], [1], [0, 0, 1, 1], [], []>} : vector<16x32xbf16>, vector<32x64xbf16>, vector<16x64xf32> -> vector<16x64xf32>
    %c0_54 = arith.constant 0 : index
    %c0_55 = arith.constant 0 : index
    %c0_56 = arith.constant 0 : index
    %149 = vector.load %arg10[%c0_54, %c0_55, %c0_56] : memref<2x1x64xf32, #tpu.memory_space<vmem>>, vector<1x1x64xf32>
    %150 = vector.shape_cast %149 : vector<1x1x64xf32> to vector<1x64xf32>
    %151 = vector.broadcast %150 : vector<1x64xf32> to vector<16x64xf32>
    %152 = arith.addf %148, %151 : vector<16x64xf32>
    %cst_57 = arith.constant 5.000000e-01 : f32
    %153 = vector.broadcast %cst_57 : f32 to vector<16x64xf32>
    %154 = arith.mulf %153, %152 : vector<16x64xf32>
    %cst_58 = arith.constant 4.471500e-02 : f32
    %155 = vector.broadcast %cst_58 : f32 to vector<16x64xf32>
    %156 = arith.mulf %155, %152 : vector<16x64xf32>
    %157 = arith.mulf %156, %152 : vector<16x64xf32>
    %158 = arith.mulf %157, %152 : vector<16x64xf32>
    %159 = arith.addf %152, %158 : vector<16x64xf32>
    %cst_59 = arith.constant 0.797884583 : f32
    %160 = vector.broadcast %cst_59 : f32 to vector<16x64xf32>
    %161 = arith.mulf %160, %159 : vector<16x64xf32>
    %162 = math.tanh %161 : vector<16x64xf32>
    %cst_60 = arith.constant 1.000000e+00 : f32
    %163 = vector.broadcast %cst_60 : f32 to vector<16x64xf32>
    %164 = arith.addf %163, %162 : vector<16x64xf32>
    %165 = arith.mulf %154, %164 : vector<16x64xf32>
    %166 = arith.truncf %165 : vector<16x64xf32> to vector<16x64xbf16>
    %c0_61 = arith.constant 0 : index
    %c0_62 = arith.constant 0 : index
    %c0_63 = arith.constant 0 : index
    %167 = vector.load %arg11[%c0_61, %c0_62, %c0_63] : memref<2x64x32xbf16, #tpu.memory_space<vmem>>, vector<1x64x32xbf16>
    %168 = vector.shape_cast %167 : vector<1x64x32xbf16> to vector<64x32xbf16>
    %cst_64 = arith.constant dense<0.000000e+00> : vector<16x32xf32>
    %169 = tpu.matmul %166, %168, %cst_64 {dimension_numbers = #tpu.dot_dimension_numbers<[1], [0], [0], [1], [0, 0, 1, 1], [], []>} : vector<16x64xbf16>, vector<64x32xbf16>, vector<16x32xf32> -> vector<16x32xf32>
    %c0_65 = arith.constant 0 : index
    %c0_66 = arith.constant 0 : index
    %c0_67 = arith.constant 0 : index
    %170 = vector.load %arg12[%c0_65, %c0_66, %c0_67] : memref<2x1x32xf32, #tpu.memory_space<vmem>>, vector<1x1x32xf32>
    %171 = vector.shape_cast %170 : vector<1x1x32xf32> to vector<1x32xf32>
    %172 = vector.broadcast %171 : vector<1x32xf32> to vector<16x32xf32>
    %173 = arith.addf %169, %172 : vector<16x32xf32>
    %174 = arith.addf %144, %173 : vector<16x32xf32>
    %c0_68 = arith.constant 0 : index
    %c0_69 = arith.constant 0 : index
    %c0_70 = arith.constant 0 : index
    %175 = vector.load %arg13[%c0_68, %c0_69, %c0_70] : memref<2x1x32xf32, #tpu.memory_space<vmem>>, vector<1x1x32xf32>
    %176 = vector.shape_cast %175 : vector<1x1x32xf32> to vector<1x32xf32>
    %c0_71 = arith.constant 0 : index
    %c0_72 = arith.constant 0 : index
    %c0_73 = arith.constant 0 : index
    %177 = vector.load %arg14[%c0_71, %c0_72, %c0_73] : memref<2x1x32xf32, #tpu.memory_space<vmem>>, vector<1x1x32xf32>
    %178 = vector.shape_cast %177 : vector<1x1x32xf32> to vector<1x32xf32>
    %cst_74 = arith.constant dense<0.000000e+00> : vector<16xf32>
    %179 = vector.multi_reduction <add>, %174, %cst_74 [1] : vector<16x32xf32> to vector<16xf32>
    %180 = vector.shape_cast %179 : vector<16xf32> to vector<16x1xf32>
    %cst_75 = arith.constant 3.200000e+01 : f32
    %181 = vector.broadcast %cst_75 : f32 to vector<16x1xf32>
    %182 = arith.divf %180, %181 : vector<16x1xf32>
    %183 = vector.broadcast %182 : vector<16x1xf32> to vector<16x32xf32>
    %184 = arith.subf %174, %183 : vector<16x32xf32>
    %185 = arith.mulf %184, %184 : vector<16x32xf32>
    %cst_76 = arith.constant dense<0.000000e+00> : vector<16xf32>
    %186 = vector.multi_reduction <add>, %185, %cst_76 [1] : vector<16x32xf32> to vector<16xf32>
    %187 = vector.shape_cast %186 : vector<16xf32> to vector<16x1xf32>
    %cst_77 = arith.constant 3.200000e+01 : f32
    %188 = vector.broadcast %cst_77 : f32 to vector<16x1xf32>
    %189 = arith.divf %187, %188 : vector<16x1xf32>
    %190 = vector.broadcast %182 : vector<16x1xf32> to vector<16x32xf32>
    %191 = arith.subf %174, %190 : vector<16x32xf32>
    %cst_78 = arith.constant 9.99999974E-6 : f32
    %192 = vector.broadcast %cst_78 : f32 to vector<16x1xf32>
    %193 = arith.addf %189, %192 : vector<16x1xf32>
    %194 = math.rsqrt %193 : vector<16x1xf32>
    %195 = vector.broadcast %194 : vector<16x1xf32> to vector<16x32xf32>
    %196 = arith.mulf %191, %195 : vector<16x32xf32>
    %197 = vector.broadcast %176 : vector<1x32xf32> to vector<16x32xf32>
    %198 = arith.mulf %196, %197 : vector<16x32xf32>
    %199 = vector.broadcast %178 : vector<1x32xf32> to vector<16x32xf32>
    %200 = arith.addf %198, %199 : vector<16x32xf32>
    %201 = arith.truncf %200 : vector<16x32xf32> to vector<16x32xbf16>
    %c1 = arith.constant 1 : index
    %c0_79 = arith.constant 0 : index
    %c0_80 = arith.constant 0 : index
    %202 = vector.load %arg3[%c1, %c0_79, %c0_80] : memref<2x32x96xbf16, #tpu.memory_space<vmem>>, vector<1x32x96xbf16>
    %203 = vector.shape_cast %202 : vector<1x32x96xbf16> to vector<32x96xbf16>
    %cst_81 = arith.constant dense<0.000000e+00> : vector<16x96xf32>
    %204 = tpu.matmul %201, %203, %cst_81 {dimension_numbers = #tpu.dot_dimension_numbers<[1], [0], [0], [1], [0, 0, 1, 1], [], []>} : vector<16x32xbf16>, vector<32x96xbf16>, vector<16x96xf32> -> vector<16x96xf32>
    %c1_82 = arith.constant 1 : index
    %c0_83 = arith.constant 0 : index
    %c0_84 = arith.constant 0 : index
    %205 = vector.load %arg4[%c1_82, %c0_83, %c0_84] : memref<2x1x96xf32, #tpu.memory_space<vmem>>, vector<1x1x96xf32>
    %206 = vector.shape_cast %205 : vector<1x1x96xf32> to vector<1x96xf32>
    %207 = vector.broadcast %206 : vector<1x96xf32> to vector<16x96xf32>
    %208 = arith.addf %204, %207 : vector<16x96xf32>
    %209 = vector.extract_strided_slice %208 {offsets = [0, 0], sizes = [16, 32], strides = [1, 1]} : vector<16x96xf32> to vector<16x32xf32>
    %210 = vector.extract_strided_slice %208 {offsets = [0, 32], sizes = [16, 32], strides = [1, 1]} : vector<16x96xf32> to vector<16x32xf32>
    %211 = vector.extract_strided_slice %208 {offsets = [0, 64], sizes = [16, 32], strides = [1, 1]} : vector<16x96xf32> to vector<16x32xf32>
    %212 = vector.extract_strided_slice %209 {offsets = [0, 0], sizes = [16, 8], strides = [1, 1]} : vector<16x32xf32> to vector<16x8xf32>
    %213 = vector.shape_cast %212 : vector<16x8xf32> to vector<2x8x8xf32>
    %214 = vector.extract_strided_slice %210 {offsets = [0, 0], sizes = [16, 8], strides = [1, 1]} : vector<16x32xf32> to vector<16x8xf32>
    %215 = vector.shape_cast %214 : vector<16x8xf32> to vector<2x8x8xf32>
    %216 = vector.extract_strided_slice %211 {offsets = [0, 0], sizes = [16, 8], strides = [1, 1]} : vector<16x32xf32> to vector<16x8xf32>
    %217 = vector.shape_cast %216 : vector<16x8xf32> to vector<2x8x8xf32>
    "tpu.trace_start"() <{level = 10 : i32, message = "bqd,bkd->bqk"}> : () -> ()
    %cst_85 = arith.constant dense<0.000000e+00> : vector<2x8x8xf32>
    %218 = tpu.matmul %213, %215, %cst_85 {dimension_numbers = #tpu.dot_dimension_numbers<[2], [2], [1], [1], [0, 0, 0, 1, 1, 1], [0], [0]>} : vector<2x8x8xf32>, vector<2x8x8xf32>, vector<2x8x8xf32> -> vector<2x8x8xf32>
    "tpu.trace_stop"() : () -> ()
    %cst_86 = arith.constant 0.353553385 : f32
    %219 = vector.broadcast %cst_86 : f32 to vector<2x8x8xf32>
    %220 = arith.mulf %218, %219 : vector<2x8x8xf32>
    %cst_87 = arith.constant dense<0xFF800000> : vector<2x8xf32>
    %221 = vector.multi_reduction <maximumf>, %220, %cst_87 [2] : vector<2x8x8xf32> to vector<2x8xf32>
    %222 = vector.shape_cast %221 : vector<2x8xf32> to vector<2x8x1xf32>
    %223 = vector.broadcast %222 : vector<2x8x1xf32> to vector<2x8x8xf32>
    %224 = arith.subf %220, %223 : vector<2x8x8xf32>
    %225 = math.exp %224 : vector<2x8x8xf32>
    %cst_88 = arith.constant dense<0.000000e+00> : vector<2x8xf32>
    %226 = vector.multi_reduction <add>, %225, %cst_88 [2] : vector<2x8x8xf32> to vector<2x8xf32>
    %227 = vector.shape_cast %226 : vector<2x8xf32> to vector<2x8x1xf32>
    %228 = tpu.reciprocal %227 {approx = true} : vector<2x8x1xf32> -> vector<2x8x1xf32>
    %229 = vector.broadcast %228 : vector<2x8x1xf32> to vector<2x8x8xf32>
    %230 = arith.mulf %225, %229 : vector<2x8x8xf32>
    "tpu.trace_start"() <{level = 10 : i32, message = "bqk,bkd->bqd"}> : () -> ()
    %cst_89 = arith.constant dense<0.000000e+00> : vector<2x8x8xf32>
    %231 = tpu.matmul %230, %217, %cst_89 {dimension_numbers = #tpu.dot_dimension_numbers<[2], [1], [1], [2], [0, 0, 0, 1, 1, 2], [0], [0]>} : vector<2x8x8xf32>, vector<2x8x8xf32>, vector<2x8x8xf32> -> vector<2x8x8xf32>
    "tpu.trace_stop"() : () -> ()
    %232 = vector.shape_cast %231 : vector<2x8x8xf32> to vector<16x8xf32>
    %233 = vector.extract_strided_slice %209 {offsets = [0, 8], sizes = [16, 8], strides = [1, 1]} : vector<16x32xf32> to vector<16x8xf32>
    %234 = vector.shape_cast %233 : vector<16x8xf32> to vector<2x8x8xf32>
    %235 = vector.extract_strided_slice %210 {offsets = [0, 8], sizes = [16, 8], strides = [1, 1]} : vector<16x32xf32> to vector<16x8xf32>
    %236 = vector.shape_cast %235 : vector<16x8xf32> to vector<2x8x8xf32>
    %237 = vector.extract_strided_slice %211 {offsets = [0, 8], sizes = [16, 8], strides = [1, 1]} : vector<16x32xf32> to vector<16x8xf32>
    %238 = vector.shape_cast %237 : vector<16x8xf32> to vector<2x8x8xf32>
    "tpu.trace_start"() <{level = 10 : i32, message = "bqd,bkd->bqk"}> : () -> ()
    %cst_90 = arith.constant dense<0.000000e+00> : vector<2x8x8xf32>
    %239 = tpu.matmul %234, %236, %cst_90 {dimension_numbers = #tpu.dot_dimension_numbers<[2], [2], [1], [1], [0, 0, 0, 1, 1, 1], [0], [0]>} : vector<2x8x8xf32>, vector<2x8x8xf32>, vector<2x8x8xf32> -> vector<2x8x8xf32>
    "tpu.trace_stop"() : () -> ()
    %cst_91 = arith.constant 0.353553385 : f32
    %240 = vector.broadcast %cst_91 : f32 to vector<2x8x8xf32>
    %241 = arith.mulf %239, %240 : vector<2x8x8xf32>
    %cst_92 = arith.constant dense<0xFF800000> : vector<2x8xf32>
    %242 = vector.multi_reduction <maximumf>, %241, %cst_92 [2] : vector<2x8x8xf32> to vector<2x8xf32>
    %243 = vector.shape_cast %242 : vector<2x8xf32> to vector<2x8x1xf32>
    %244 = vector.broadcast %243 : vector<2x8x1xf32> to vector<2x8x8xf32>
    %245 = arith.subf %241, %244 : vector<2x8x8xf32>
    %246 = math.exp %245 : vector<2x8x8xf32>
    %cst_93 = arith.constant dense<0.000000e+00> : vector<2x8xf32>
    %247 = vector.multi_reduction <add>, %246, %cst_93 [2] : vector<2x8x8xf32> to vector<2x8xf32>
    %248 = vector.shape_cast %247 : vector<2x8xf32> to vector<2x8x1xf32>
    %249 = tpu.reciprocal %248 {approx = true} : vector<2x8x1xf32> -> vector<2x8x1xf32>
    %250 = vector.broadcast %249 : vector<2x8x1xf32> to vector<2x8x8xf32>
    %251 = arith.mulf %246, %250 : vector<2x8x8xf32>
    "tpu.trace_start"() <{level = 10 : i32, message = "bqk,bkd->bqd"}> : () -> ()
    %cst_94 = arith.constant dense<0.000000e+00> : vector<2x8x8xf32>
    %252 = tpu.matmul %251, %238, %cst_94 {dimension_numbers = #tpu.dot_dimension_numbers<[2], [1], [1], [2], [0, 0, 0, 1, 1, 2], [0], [0]>} : vector<2x8x8xf32>, vector<2x8x8xf32>, vector<2x8x8xf32> -> vector<2x8x8xf32>
    "tpu.trace_stop"() : () -> ()
    %253 = vector.shape_cast %252 : vector<2x8x8xf32> to vector<16x8xf32>
    %254 = vector.extract_strided_slice %209 {offsets = [0, 16], sizes = [16, 8], strides = [1, 1]} : vector<16x32xf32> to vector<16x8xf32>
    %255 = vector.shape_cast %254 : vector<16x8xf32> to vector<2x8x8xf32>
    %256 = vector.extract_strided_slice %210 {offsets = [0, 16], sizes = [16, 8], strides = [1, 1]} : vector<16x32xf32> to vector<16x8xf32>
    %257 = vector.shape_cast %256 : vector<16x8xf32> to vector<2x8x8xf32>
    %258 = vector.extract_strided_slice %211 {offsets = [0, 16], sizes = [16, 8], strides = [1, 1]} : vector<16x32xf32> to vector<16x8xf32>
    %259 = vector.shape_cast %258 : vector<16x8xf32> to vector<2x8x8xf32>
    "tpu.trace_start"() <{level = 10 : i32, message = "bqd,bkd->bqk"}> : () -> ()
    %cst_95 = arith.constant dense<0.000000e+00> : vector<2x8x8xf32>
    %260 = tpu.matmul %255, %257, %cst_95 {dimension_numbers = #tpu.dot_dimension_numbers<[2], [2], [1], [1], [0, 0, 0, 1, 1, 1], [0], [0]>} : vector<2x8x8xf32>, vector<2x8x8xf32>, vector<2x8x8xf32> -> vector<2x8x8xf32>
    "tpu.trace_stop"() : () -> ()
    %cst_96 = arith.constant 0.353553385 : f32
    %261 = vector.broadcast %cst_96 : f32 to vector<2x8x8xf32>
    %262 = arith.mulf %260, %261 : vector<2x8x8xf32>
    %cst_97 = arith.constant dense<0xFF800000> : vector<2x8xf32>
    %263 = vector.multi_reduction <maximumf>, %262, %cst_97 [2] : vector<2x8x8xf32> to vector<2x8xf32>
    %264 = vector.shape_cast %263 : vector<2x8xf32> to vector<2x8x1xf32>
    %265 = vector.broadcast %264 : vector<2x8x1xf32> to vector<2x8x8xf32>
    %266 = arith.subf %262, %265 : vector<2x8x8xf32>
    %267 = math.exp %266 : vector<2x8x8xf32>
    %cst_98 = arith.constant dense<0.000000e+00> : vector<2x8xf32>
    %268 = vector.multi_reduction <add>, %267, %cst_98 [2] : vector<2x8x8xf32> to vector<2x8xf32>
    %269 = vector.shape_cast %268 : vector<2x8xf32> to vector<2x8x1xf32>
    %270 = tpu.reciprocal %269 {approx = true} : vector<2x8x1xf32> -> vector<2x8x1xf32>
    %271 = vector.broadcast %270 : vector<2x8x1xf32> to vector<2x8x8xf32>
    %272 = arith.mulf %267, %271 : vector<2x8x8xf32>
    "tpu.trace_start"() <{level = 10 : i32, message = "bqk,bkd->bqd"}> : () -> ()
    %cst_99 = arith.constant dense<0.000000e+00> : vector<2x8x8xf32>
    %273 = tpu.matmul %272, %259, %cst_99 {dimension_numbers = #tpu.dot_dimension_numbers<[2], [1], [1], [2], [0, 0, 0, 1, 1, 2], [0], [0]>} : vector<2x8x8xf32>, vector<2x8x8xf32>, vector<2x8x8xf32> -> vector<2x8x8xf32>
    "tpu.trace_stop"() : () -> ()
    %274 = vector.shape_cast %273 : vector<2x8x8xf32> to vector<16x8xf32>
    %275 = vector.extract_strided_slice %209 {offsets = [0, 24], sizes = [16, 8], strides = [1, 1]} : vector<16x32xf32> to vector<16x8xf32>
    %276 = vector.shape_cast %275 : vector<16x8xf32> to vector<2x8x8xf32>
    %277 = vector.extract_strided_slice %210 {offsets = [0, 24], sizes = [16, 8], strides = [1, 1]} : vector<16x32xf32> to vector<16x8xf32>
    %278 = vector.shape_cast %277 : vector<16x8xf32> to vector<2x8x8xf32>
    %279 = vector.extract_strided_slice %211 {offsets = [0, 24], sizes = [16, 8], strides = [1, 1]} : vector<16x32xf32> to vector<16x8xf32>
    %280 = vector.shape_cast %279 : vector<16x8xf32> to vector<2x8x8xf32>
    "tpu.trace_start"() <{level = 10 : i32, message = "bqd,bkd->bqk"}> : () -> ()
    %cst_100 = arith.constant dense<0.000000e+00> : vector<2x8x8xf32>
    %281 = tpu.matmul %276, %278, %cst_100 {dimension_numbers = #tpu.dot_dimension_numbers<[2], [2], [1], [1], [0, 0, 0, 1, 1, 1], [0], [0]>} : vector<2x8x8xf32>, vector<2x8x8xf32>, vector<2x8x8xf32> -> vector<2x8x8xf32>
    "tpu.trace_stop"() : () -> ()
    %cst_101 = arith.constant 0.353553385 : f32
    %282 = vector.broadcast %cst_101 : f32 to vector<2x8x8xf32>
    %283 = arith.mulf %281, %282 : vector<2x8x8xf32>
    %cst_102 = arith.constant dense<0xFF800000> : vector<2x8xf32>
    %284 = vector.multi_reduction <maximumf>, %283, %cst_102 [2] : vector<2x8x8xf32> to vector<2x8xf32>
    %285 = vector.shape_cast %284 : vector<2x8xf32> to vector<2x8x1xf32>
    %286 = vector.broadcast %285 : vector<2x8x1xf32> to vector<2x8x8xf32>
    %287 = arith.subf %283, %286 : vector<2x8x8xf32>
    %288 = math.exp %287 : vector<2x8x8xf32>
    %cst_103 = arith.constant dense<0.000000e+00> : vector<2x8xf32>
    %289 = vector.multi_reduction <add>, %288, %cst_103 [2] : vector<2x8x8xf32> to vector<2x8xf32>
    %290 = vector.shape_cast %289 : vector<2x8xf32> to vector<2x8x1xf32>
    %291 = tpu.reciprocal %290 {approx = true} : vector<2x8x1xf32> -> vector<2x8x1xf32>
    %292 = vector.broadcast %291 : vector<2x8x1xf32> to vector<2x8x8xf32>
    %293 = arith.mulf %288, %292 : vector<2x8x8xf32>
    "tpu.trace_start"() <{level = 10 : i32, message = "bqk,bkd->bqd"}> : () -> ()
    %cst_104 = arith.constant dense<0.000000e+00> : vector<2x8x8xf32>
    %294 = tpu.matmul %293, %280, %cst_104 {dimension_numbers = #tpu.dot_dimension_numbers<[2], [1], [1], [2], [0, 0, 0, 1, 1, 2], [0], [0]>} : vector<2x8x8xf32>, vector<2x8x8xf32>, vector<2x8x8xf32> -> vector<2x8x8xf32>
    "tpu.trace_stop"() : () -> ()
    %295 = vector.shape_cast %294 : vector<2x8x8xf32> to vector<16x8xf32>
    %296 = tpu.concatenate %232, %253, %274, %295 in 1 : vector<16x8xf32>, vector<16x8xf32>, vector<16x8xf32>, vector<16x8xf32> -> vector<16x32xf32>
    %297 = arith.truncf %296 : vector<16x32xf32> to vector<16x32xbf16>
    %c1_105 = arith.constant 1 : index
    %c0_106 = arith.constant 0 : index
    %c0_107 = arith.constant 0 : index
    %298 = vector.load %arg5[%c1_105, %c0_106, %c0_107] : memref<2x32x32xbf16, #tpu.memory_space<vmem>>, vector<1x32x32xbf16>
    %299 = vector.shape_cast %298 : vector<1x32x32xbf16> to vector<32x32xbf16>
    %cst_108 = arith.constant dense<0.000000e+00> : vector<16x32xf32>
    %300 = tpu.matmul %297, %299, %cst_108 {dimension_numbers = #tpu.dot_dimension_numbers<[1], [0], [0], [1], [0, 0, 1, 1], [], []>} : vector<16x32xbf16>, vector<32x32xbf16>, vector<16x32xf32> -> vector<16x32xf32>
    %c1_109 = arith.constant 1 : index
    %c0_110 = arith.constant 0 : index
    %c0_111 = arith.constant 0 : index
    %301 = vector.load %arg6[%c1_109, %c0_110, %c0_111] : memref<2x1x32xf32, #tpu.memory_space<vmem>>, vector<1x1x32xf32>
    %302 = vector.shape_cast %301 : vector<1x1x32xf32> to vector<1x32xf32>
    %303 = vector.broadcast %302 : vector<1x32xf32> to vector<16x32xf32>
    %304 = arith.addf %300, %303 : vector<16x32xf32>
    %305 = arith.addf %200, %304 : vector<16x32xf32>
    %c1_112 = arith.constant 1 : index
    %c0_113 = arith.constant 0 : index
    %c0_114 = arith.constant 0 : index
    %306 = vector.load %arg7[%c1_112, %c0_113, %c0_114] : memref<2x1x32xf32, #tpu.memory_space<vmem>>, vector<1x1x32xf32>
    %307 = vector.shape_cast %306 : vector<1x1x32xf32> to vector<1x32xf32>
    %c1_115 = arith.constant 1 : index
    %c0_116 = arith.constant 0 : index
    %c0_117 = arith.constant 0 : index
    %308 = vector.load %arg8[%c1_115, %c0_116, %c0_117] : memref<2x1x32xf32, #tpu.memory_space<vmem>>, vector<1x1x32xf32>
    %309 = vector.shape_cast %308 : vector<1x1x32xf32> to vector<1x32xf32>
    %cst_118 = arith.constant dense<0.000000e+00> : vector<16xf32>
    %310 = vector.multi_reduction <add>, %305, %cst_118 [1] : vector<16x32xf32> to vector<16xf32>
    %311 = vector.shape_cast %310 : vector<16xf32> to vector<16x1xf32>
    %cst_119 = arith.constant 3.200000e+01 : f32
    %312 = vector.broadcast %cst_119 : f32 to vector<16x1xf32>
    %313 = arith.divf %311, %312 : vector<16x1xf32>
    %314 = vector.broadcast %313 : vector<16x1xf32> to vector<16x32xf32>
    %315 = arith.subf %305, %314 : vector<16x32xf32>
    %316 = arith.mulf %315, %315 : vector<16x32xf32>
    %cst_120 = arith.constant dense<0.000000e+00> : vector<16xf32>
    %317 = vector.multi_reduction <add>, %316, %cst_120 [1] : vector<16x32xf32> to vector<16xf32>
    %318 = vector.shape_cast %317 : vector<16xf32> to vector<16x1xf32>
    %cst_121 = arith.constant 3.200000e+01 : f32
    %319 = vector.broadcast %cst_121 : f32 to vector<16x1xf32>
    %320 = arith.divf %318, %319 : vector<16x1xf32>
    %321 = vector.broadcast %313 : vector<16x1xf32> to vector<16x32xf32>
    %322 = arith.subf %305, %321 : vector<16x32xf32>
    %cst_122 = arith.constant 9.99999974E-6 : f32
    %323 = vector.broadcast %cst_122 : f32 to vector<16x1xf32>
    %324 = arith.addf %320, %323 : vector<16x1xf32>
    %325 = math.rsqrt %324 : vector<16x1xf32>
    %326 = vector.broadcast %325 : vector<16x1xf32> to vector<16x32xf32>
    %327 = arith.mulf %322, %326 : vector<16x32xf32>
    %328 = vector.broadcast %307 : vector<1x32xf32> to vector<16x32xf32>
    %329 = arith.mulf %327, %328 : vector<16x32xf32>
    %330 = vector.broadcast %309 : vector<1x32xf32> to vector<16x32xf32>
    %331 = arith.addf %329, %330 : vector<16x32xf32>
    %332 = arith.truncf %331 : vector<16x32xf32> to vector<16x32xbf16>
    %c1_123 = arith.constant 1 : index
    %c0_124 = arith.constant 0 : index
    %c0_125 = arith.constant 0 : index
    %333 = vector.load %arg9[%c1_123, %c0_124, %c0_125] : memref<2x32x64xbf16, #tpu.memory_space<vmem>>, vector<1x32x64xbf16>
    %334 = vector.shape_cast %333 : vector<1x32x64xbf16> to vector<32x64xbf16>
    %cst_126 = arith.constant dense<0.000000e+00> : vector<16x64xf32>
    %335 = tpu.matmul %332, %334, %cst_126 {dimension_numbers = #tpu.dot_dimension_numbers<[1], [0], [0], [1], [0, 0, 1, 1], [], []>} : vector<16x32xbf16>, vector<32x64xbf16>, vector<16x64xf32> -> vector<16x64xf32>
    %c1_127 = arith.constant 1 : index
    %c0_128 = arith.constant 0 : index
    %c0_129 = arith.constant 0 : index
    %336 = vector.load %arg10[%c1_127, %c0_128, %c0_129] : memref<2x1x64xf32, #tpu.memory_space<vmem>>, vector<1x1x64xf32>
    %337 = vector.shape_cast %336 : vector<1x1x64xf32> to vector<1x64xf32>
    %338 = vector.broadcast %337 : vector<1x64xf32> to vector<16x64xf32>
    %339 = arith.addf %335, %338 : vector<16x64xf32>
    %cst_130 = arith.constant 5.000000e-01 : f32
    %340 = vector.broadcast %cst_130 : f32 to vector<16x64xf32>
    %341 = arith.mulf %340, %339 : vector<16x64xf32>
    %cst_131 = arith.constant 4.471500e-02 : f32
    %342 = vector.broadcast %cst_131 : f32 to vector<16x64xf32>
    %343 = arith.mulf %342, %339 : vector<16x64xf32>
    %344 = arith.mulf %343, %339 : vector<16x64xf32>
    %345 = arith.mulf %344, %339 : vector<16x64xf32>
    %346 = arith.addf %339, %345 : vector<16x64xf32>
    %cst_132 = arith.constant 0.797884583 : f32
    %347 = vector.broadcast %cst_132 : f32 to vector<16x64xf32>
    %348 = arith.mulf %347, %346 : vector<16x64xf32>
    %349 = math.tanh %348 : vector<16x64xf32>
    %cst_133 = arith.constant 1.000000e+00 : f32
    %350 = vector.broadcast %cst_133 : f32 to vector<16x64xf32>
    %351 = arith.addf %350, %349 : vector<16x64xf32>
    %352 = arith.mulf %341, %351 : vector<16x64xf32>
    %353 = arith.truncf %352 : vector<16x64xf32> to vector<16x64xbf16>
    %c1_134 = arith.constant 1 : index
    %c0_135 = arith.constant 0 : index
    %c0_136 = arith.constant 0 : index
    %354 = vector.load %arg11[%c1_134, %c0_135, %c0_136] : memref<2x64x32xbf16, #tpu.memory_space<vmem>>, vector<1x64x32xbf16>
    %355 = vector.shape_cast %354 : vector<1x64x32xbf16> to vector<64x32xbf16>
    %cst_137 = arith.constant dense<0.000000e+00> : vector<16x32xf32>
    %356 = tpu.matmul %353, %355, %cst_137 {dimension_numbers = #tpu.dot_dimension_numbers<[1], [0], [0], [1], [0, 0, 1, 1], [], []>} : vector<16x64xbf16>, vector<64x32xbf16>, vector<16x32xf32> -> vector<16x32xf32>
    %c1_138 = arith.constant 1 : index
    %c0_139 = arith.constant 0 : index
    %c0_140 = arith.constant 0 : index
    %357 = vector.load %arg12[%c1_138, %c0_139, %c0_140] : memref<2x1x32xf32, #tpu.memory_space<vmem>>, vector<1x1x32xf32>
    %358 = vector.shape_cast %357 : vector<1x1x32xf32> to vector<1x32xf32>
    %359 = vector.broadcast %358 : vector<1x32xf32> to vector<16x32xf32>
    %360 = arith.addf %356, %359 : vector<16x32xf32>
    %361 = arith.addf %331, %360 : vector<16x32xf32>
    %c1_141 = arith.constant 1 : index
    %c0_142 = arith.constant 0 : index
    %c0_143 = arith.constant 0 : index
    %362 = vector.load %arg13[%c1_141, %c0_142, %c0_143] : memref<2x1x32xf32, #tpu.memory_space<vmem>>, vector<1x1x32xf32>
    %363 = vector.shape_cast %362 : vector<1x1x32xf32> to vector<1x32xf32>
    %c1_144 = arith.constant 1 : index
    %c0_145 = arith.constant 0 : index
    %c0_146 = arith.constant 0 : index
    %364 = vector.load %arg14[%c1_144, %c0_145, %c0_146] : memref<2x1x32xf32, #tpu.memory_space<vmem>>, vector<1x1x32xf32>
    %365 = vector.shape_cast %364 : vector<1x1x32xf32> to vector<1x32xf32>
    %cst_147 = arith.constant dense<0.000000e+00> : vector<16xf32>
    %366 = vector.multi_reduction <add>, %361, %cst_147 [1] : vector<16x32xf32> to vector<16xf32>
    %367 = vector.shape_cast %366 : vector<16xf32> to vector<16x1xf32>
    %cst_148 = arith.constant 3.200000e+01 : f32
    %368 = vector.broadcast %cst_148 : f32 to vector<16x1xf32>
    %369 = arith.divf %367, %368 : vector<16x1xf32>
    %370 = vector.broadcast %369 : vector<16x1xf32> to vector<16x32xf32>
    %371 = arith.subf %361, %370 : vector<16x32xf32>
    %372 = arith.mulf %371, %371 : vector<16x32xf32>
    %cst_149 = arith.constant dense<0.000000e+00> : vector<16xf32>
    %373 = vector.multi_reduction <add>, %372, %cst_149 [1] : vector<16x32xf32> to vector<16xf32>
    %374 = vector.shape_cast %373 : vector<16xf32> to vector<16x1xf32>
    %cst_150 = arith.constant 3.200000e+01 : f32
    %375 = vector.broadcast %cst_150 : f32 to vector<16x1xf32>
    %376 = arith.divf %374, %375 : vector<16x1xf32>
    %377 = vector.broadcast %369 : vector<16x1xf32> to vector<16x32xf32>
    %378 = arith.subf %361, %377 : vector<16x32xf32>
    %cst_151 = arith.constant 9.99999974E-6 : f32
    %379 = vector.broadcast %cst_151 : f32 to vector<16x1xf32>
    %380 = arith.addf %376, %379 : vector<16x1xf32>
    %381 = math.rsqrt %380 : vector<16x1xf32>
    %382 = vector.broadcast %381 : vector<16x1xf32> to vector<16x32xf32>
    %383 = arith.mulf %378, %382 : vector<16x32xf32>
    %384 = vector.broadcast %363 : vector<1x32xf32> to vector<16x32xf32>
    %385 = arith.mulf %383, %384 : vector<16x32xf32>
    %386 = vector.broadcast %365 : vector<1x32xf32> to vector<16x32xf32>
    %387 = arith.addf %385, %386 : vector<16x32xf32>
    %c0_152 = arith.constant 0 : index
    %c0_153 = arith.constant 0 : index
    %388 = vector.load %arg15[%c0_152, %c0_153] : memref<1x32xf32, #tpu.memory_space<vmem>>, vector<1x32xf32>
    %c0_154 = arith.constant 0 : index
    %c0_155 = arith.constant 0 : index
    %389 = vector.load %arg16[%c0_154, %c0_155] : memref<1x32xf32, #tpu.memory_space<vmem>>, vector<1x32xf32>
    %cst_156 = arith.constant dense<0.000000e+00> : vector<16xf32>
    %390 = vector.multi_reduction <add>, %387, %cst_156 [1] : vector<16x32xf32> to vector<16xf32>
    %391 = vector.shape_cast %390 : vector<16xf32> to vector<16x1xf32>
    %cst_157 = arith.constant 3.200000e+01 : f32
    %392 = vector.broadcast %cst_157 : f32 to vector<16x1xf32>
    %393 = arith.divf %391, %392 : vector<16x1xf32>
    %394 = vector.broadcast %393 : vector<16x1xf32> to vector<16x32xf32>
    %395 = arith.subf %387, %394 : vector<16x32xf32>
    %396 = arith.mulf %395, %395 : vector<16x32xf32>
    %cst_158 = arith.constant dense<0.000000e+00> : vector<16xf32>
    %397 = vector.multi_reduction <add>, %396, %cst_158 [1] : vector<16x32xf32> to vector<16xf32>
    %398 = vector.shape_cast %397 : vector<16xf32> to vector<16x1xf32>
    %cst_159 = arith.constant 3.200000e+01 : f32
    %399 = vector.broadcast %cst_159 : f32 to vector<16x1xf32>
    %400 = arith.divf %398, %399 : vector<16x1xf32>
    %401 = vector.broadcast %393 : vector<16x1xf32> to vector<16x32xf32>
    %402 = arith.subf %387, %401 : vector<16x32xf32>
    %cst_160 = arith.constant 9.99999974E-6 : f32
    %403 = vector.broadcast %cst_160 : f32 to vector<16x1xf32>
    %404 = arith.addf %400, %403 : vector<16x1xf32>
    %405 = math.rsqrt %404 : vector<16x1xf32>
    %406 = vector.broadcast %405 : vector<16x1xf32> to vector<16x32xf32>
    %407 = arith.mulf %402, %406 : vector<16x32xf32>
    %408 = vector.broadcast %388 : vector<1x32xf32> to vector<16x32xf32>
    %409 = arith.mulf %407, %408 : vector<16x32xf32>
    %410 = vector.broadcast %389 : vector<1x32xf32> to vector<16x32xf32>
    %411 = arith.addf %409, %410 : vector<16x32xf32>
    %412 = arith.truncf %411 : vector<16x32xf32> to vector<16x32xbf16>
    %c0_161 = arith.constant 0 : index
    %c0_162 = arith.constant 0 : index
    %413 = vector.load %arg17[%c0_161, %c0_162] : memref<32x128xbf16, #tpu.memory_space<vmem>>, vector<32x128xbf16>
    %cst_163 = arith.constant dense<0.000000e+00> : vector<16x128xf32>
    %414 = tpu.matmul %412, %413, %cst_163 {dimension_numbers = #tpu.dot_dimension_numbers<[1], [0], [0], [1], [0, 0, 1, 1], [], []>} : vector<16x32xbf16>, vector<32x128xbf16>, vector<16x128xf32> -> vector<16x128xf32>
    %c0_164 = arith.constant 0 : index
    %c0_165 = arith.constant 0 : index
    %415 = vector.load %arg18[%c0_164, %c0_165] : memref<1x128xf32, #tpu.memory_space<vmem>>, vector<1x128xf32>
    %416 = vector.broadcast %415 : vector<1x128xf32> to vector<16x128xf32>
    %417 = arith.addf %414, %416 : vector<16x128xf32>
    %c0_166 = arith.constant 0 : index
    %c0_167 = arith.constant 0 : index
    %418 = vector.load %arg19[%c0_166, %c0_167] : memref<16x128xf32, #tpu.memory_space<vmem>>, vector<16x128xf32>
    tpu.vector_store %arg19[%c0_166, %c0_167], %417 {strides = array<i32>} : memref<16x128xf32, #tpu.memory_space<vmem>>, vector<16x128xf32>,
    return
  }
}

</mosaic_0001>

<llo_original>
// kernel: tpu_custom_call.1
$region0: #{tpu_custom_call.1}
  #allocation0 [shape = 'u32[]', space=smem, size = 0x4, offset = 0x4, fixed_abs, tag = 'smem constant byte address 0x4 - core index']
  #allocation1 [shape = 'u32[144,128]{1,0:T(1,128)}', space=vmem, size = 0x12000, scoped, tag = 'internal scratch']
  %s0 = inlined_call_operand.vmem [shape: s32[16,1], index: 0, kind: input, shape index: {}]
  %s1 = inlined_call_operand.vmem [shape: f32[64,32], index: 1, kind: input, shape index: {}]
  %s2 = inlined_call_operand.vmem [shape: f32[16,32], index: 2, kind: input, shape index: {}]
  %s3 = inlined_call_operand.vmem [shape: bf16[2,32,96], index: 3, kind: input, shape index: {}]
  %s4 = inlined_call_operand.vmem [shape: f32[2,1,96], index: 4, kind: input, shape index: {}]
  %s5 = inlined_call_operand.vmem [shape: bf16[2,32,32], index: 5, kind: input, shape index: {}]
  %s6 = inlined_call_operand.vmem [shape: f32[2,1,32], index: 6, kind: input, shape index: {}]
  %s7 = inlined_call_operand.vmem [shape: f32[2,1,32], index: 7, kind: input, shape index: {}]
  %s8 = inlined_call_operand.vmem [shape: f32[2,1,32], index: 8, kind: input, shape index: {}]
  %s9 = inlined_call_operand.vmem [shape: bf16[2,32,64], index: 9, kind: input, shape index: {}]
  %s10 = inlined_call_operand.vmem [shape: f32[2,1,64], index: 10, kind: input, shape index: {}]
  %s11 = inlined_call_operand.vmem [shape: bf16[2,64,32], index: 11, kind: input, shape index: {}]
  %s12 = inlined_call_operand.vmem [shape: f32[2,1,32], index: 12, kind: input, shape index: {}]
  %s13 = inlined_call_operand.vmem [shape: f32[2,1,32], index: 13, kind: input, shape index: {}]
  %s14 = inlined_call_operand.vmem [shape: f32[2,1,32], index: 14, kind: input, shape index: {}]
  %s15 = inlined_call_operand.vmem [shape: f32[1,32], index: 15, kind: input, shape index: {}]
  %s16 = inlined_call_operand.vmem [shape: f32[1,32], index: 16, kind: input, shape index: {}]
  %s17 = inlined_call_operand.vmem [shape: bf16[32,128], index: 17, kind: input, shape index: {}]
  %s18 = inlined_call_operand.vmem [shape: f32[1,128], index: 18, kind: input, shape index: {}]
  %s19 = inlined_call_operand.hbm [shape: f32[16,128], index: 19, kind: output, shape index: {}]
  %s20 = sld [smem:[#allocation0]]
  $region86: #{tpu_custom_call.1} parent=0
    _
  %s22 = ssub.s32 1, %s20
  %s23 = scalar_select 0, %s22, %s20
  $region1: #{tpu_custom_call.1} parent=0
    #allocation2 [shape = 'u8[8192]{0}', space=vmem, size = 0x2000, scoped, tag = 'output window, operand 0, single buffered']
    #allocation3 [shape = 's32[1]{0}', space=sflag, size = 0x4, scoped, tag = 'scoped memory for tpu_custom_call.1']
    %24 = vsyncpa [#allocation3], 0
    // Predicated region
    $region2: #{tpu_custom_call.1} parent=1 // pred_check
      _
    $region3: #{tpu_custom_call.1} parent=1 // pred_check_branch
      %26 = sbr.rel (0) target = $region5
    $region4: #{tpu_custom_call.1} parent=1 // pred_region
      _
    $region5: #{tpu_custom_call.1} parent=1 // pred_fallthru
      _
    // Predicated region
    $region6: #{tpu_custom_call.1} parent=1 // pred_check
      _
    $region7: #{tpu_custom_call.1} parent=1 // pred_check_branch
      %28 = sbr.rel (0) target = $region9
    $region8: #{tpu_custom_call.1} parent=1 // pred_region
      _
    $region9: #{tpu_custom_call.1} parent=1 // pred_fallthru
      _
    // Predicated region
    $region10: #{tpu_custom_call.1} parent=1 // pred_check
      _
    $region11: #{tpu_custom_call.1} parent=1 // pred_check_branch
      %30 = sbr.rel (0) target = $region13
    $region12: #{tpu_custom_call.1} parent=1 // pred_region
      _
    $region13: #{tpu_custom_call.1} parent=1 // pred_fallthru
      _
    // Predicated region
    $region14: #{tpu_custom_call.1} parent=1 // pred_check
      _
    $region15: #{tpu_custom_call.1} parent=1 // pred_check_branch
      %32 = sbr.rel (0) target = $region17
    $region16: #{tpu_custom_call.1} parent=1 // pred_region
      _
    $region17: #{tpu_custom_call.1} parent=1 // pred_fallthru
      _
    // Predicated region
    $region18: #{tpu_custom_call.1} parent=1 // pred_check
      _
    $region19: #{tpu_custom_call.1} parent=1 // pred_check_branch
      %34 = sbr.rel (0) target = $region21
    $region20: #{tpu_custom_call.1} parent=1 // pred_region
      _
    $region21: #{tpu_custom_call.1} parent=1 // pred_fallthru
      _
    // Predicated region
    $region22: #{tpu_custom_call.1} parent=1 // pred_check
      _
    $region23: #{tpu_custom_call.1} parent=1 // pred_check_branch
      %36 = sbr.rel (0) target = $region25
    $region24: #{tpu_custom_call.1} parent=1 // pred_region
      _
    $region25: #{tpu_custom_call.1} parent=1 // pred_fallthru
      _
    // Predicated region
    $region26: #{tpu_custom_call.1} parent=1 // pred_check
      _
    $region27: #{tpu_custom_call.1} parent=1 // pred_check_branch
      %38 = sbr.rel (0) target = $region29
    $region28: #{tpu_custom_call.1} parent=1 // pred_region
      _
    $region29: #{tpu_custom_call.1} parent=1 // pred_fallthru
      _
    // Predicated region
    $region30: #{tpu_custom_call.1} parent=1 // pred_check
      _
    $region31: #{tpu_custom_call.1} parent=1 // pred_check_branch
      %40 = sbr.rel (0) target = $region33
    $region32: #{tpu_custom_call.1} parent=1 // pred_region
      _
    $region33: #{tpu_custom_call.1} parent=1 // pred_fallthru
      _
    // Predicated region
    $region34: #{tpu_custom_call.1} parent=1 // pred_check
      _
    $region35: #{tpu_custom_call.1} parent=1 // pred_check_branch
      %42 = sbr.rel (0) target = $region37
    $region36: #{tpu_custom_call.1} parent=1 // pred_region
      _
    $region37: #{tpu_custom_call.1} parent=1 // pred_fallthru
      _
    // Predicated region
    $region38: #{tpu_custom_call.1} parent=1 // pred_check
      _
    $region39: #{tpu_custom_call.1} parent=1 // pred_check_branch
      %44 = sbr.rel (0) target = $region41
    $region40: #{tpu_custom_call.1} parent=1 // pred_region
      _
    $region41: #{tpu_custom_call.1} parent=1 // pred_fallthru
      _
    // Predicated region
    $region42: #{tpu_custom_call.1} parent=1 // pred_check
      _
    $region43: #{tpu_custom_call.1} parent=1 // pred_check_branch
      %46 = sbr.rel (0) target = $region45
    $region44: #{tpu_custom_call.1} parent=1 // pred_region
      _
    $region45: #{tpu_custom_call.1} parent=1 // pred_fallthru
      _
    // Predicated region
    $region46: #{tpu_custom_call.1} parent=1 // pred_check
      _
    $region47: #{tpu_custom_call.1} parent=1 // pred_check_branch
      %48 = sbr.rel (0) target = $region49
    $region48: #{tpu_custom_call.1} parent=1 // pred_region
      _
    $region49: #{tpu_custom_call.1} parent=1 // pred_fallthru
      _
    // Predicated region
    $region50: #{tpu_custom_call.1} parent=1 // pred_check
      _
    $region51: #{tpu_custom_call.1} parent=1 // pred_check_branch
      %50 = sbr.rel (0) target = $region53
    $region52: #{tpu_custom_call.1} parent=1 // pred_region
      _
    $region53: #{tpu_custom_call.1} parent=1 // pred_fallthru
      _
    // Predicated region
    $region54: #{tpu_custom_call.1} parent=1 // pred_check
      _
    $region55: #{tpu_custom_call.1} parent=1 // pred_check_branch
      %52 = sbr.rel (0) target = $region57
    $region56: #{tpu_custom_call.1} parent=1 // pred_region
      _
    $region57: #{tpu_custom_call.1} parent=1 // pred_fallthru
      _
    // Predicated region
    $region58: #{tpu_custom_call.1} parent=1 // pred_check
      _
    $region59: #{tpu_custom_call.1} parent=1 // pred_check_branch
      %54 = sbr.rel (0) target = $region61
    $region60: #{tpu_custom_call.1} parent=1 // pred_region
      _
    $region61: #{tpu_custom_call.1} parent=1 // pred_fallthru
      _
    // Predicated region
    $region62: #{tpu_custom_call.1} parent=1 // pred_check
      _
    $region63: #{tpu_custom_call.1} parent=1 // pred_check_branch
      %56 = sbr.rel (0) target = $region65
    $region64: #{tpu_custom_call.1} parent=1 // pred_region
      _
    $region65: #{tpu_custom_call.1} parent=1 // pred_fallthru
      _
    // Predicated region
    $region66: #{tpu_custom_call.1} parent=1 // pred_check
      _
    $region67: #{tpu_custom_call.1} parent=1 // pred_check_branch
      %58 = sbr.rel (0) target = $region69
    $region68: #{tpu_custom_call.1} parent=1 // pred_region
      _
    $region69: #{tpu_custom_call.1} parent=1 // pred_fallthru
      _
    // Predicated region
    $region70: #{tpu_custom_call.1} parent=1 // pred_check
      _
    $region71: #{tpu_custom_call.1} parent=1 // pred_check_branch
      %60 = sbr.rel (0) target = $region73
    $region72: #{tpu_custom_call.1} parent=1 // pred_region
      _
    $region73: #{tpu_custom_call.1} parent=1 // pred_fallthru
      _
    // Predicated region
    $region74: #{tpu_custom_call.1} parent=1 // pred_check
      _
    $region75: #{tpu_custom_call.1} parent=1 // pred_check_branch
      %62 = sbr.rel (0) target = $region77
    $region76: #{tpu_custom_call.1} parent=1 // pred_region
      _
    $region77: #{tpu_custom_call.1} parent=1 // pred_fallthru
      _
    %v64 = vld [vmem:[%s0] sm:$0xff]
    %v65 = vld [vmem:[%s0 + $0x8] sm:$0xff]
    %v66 = vlaneseq
    %v67 = vand.u32 %v66, 127
    %68 = vset.pattern.permute.xlu0 0
    %69 = vperm.xlu0 %68, %v64
    %v70 = vpop.permute.xlu0 %69
    %71 = vset.pattern.permute.xlu0 0
    %72 = vperm.xlu0 %71, %v65
    %v73 = vpop.permute.xlu0 %72
    %vm74 = vcmp.eq.s32.totalorder %v67, %v70
    %vm75 = vcmp.eq.s32.totalorder %v67, %v73
    %v76 = vsel %vm74, 1, 0
    %v77 = vsel %vm75, 1, 0
    %v78 = vcvt.s32.f32 %v76
    %v79 = vcvt.s32.f32 %v77
    %v80 = vld [vmem:[%s1] sm:$0xff]
    %v81 = vld [vmem:[%s1 + $0x8] sm:$0xff]
    %v82 = vld [vmem:[%s1 + $0x10] sm:$0xff]
    %v83 = vld [vmem:[%s1 + $0x18] sm:$0xff]
    %v84 = vld [vmem:[%s1 + $0x20] sm:$0xff]
    %v85 = vld [vmem:[%s1 + $0x28] sm:$0xff]
    %v86 = vld [vmem:[%s1 + $0x30] sm:$0xff]
    %v87 = vld [vmem:[%s1 + $0x38] sm:$0xff]
    %vm88 = vcmask 523264
    %v90 = vsel %vm88, %v78, 0
    %v93 = vsel %vm88, %v79, 0
    %95 = vmatprep.subr.mxu0 0.0
    %96 = vmatpush1.msra.mxu0 0.0
    %97 = vmatprep.subr.mxu0 0.0
    %98 = vmatpush1.msra.mxu0 0.0
    %99 = vmatprep.subr.mxu0 0.0
    %100 = vmatpush1.msra.mxu0 0.0
    %101 = vmatprep.subr.mxu0 0.0
    %102 = vmatpush1.msra.mxu0 0.0
    %103 = vmatprep.subr.mxu0 0.0
    %104 = vmatpush1.msra.mxu0 0.0
    %105 = vmatprep.subr.mxu0 0.0
    %106 = vmatpush1.msra.mxu0 0.0
    %107 = vmatprep.subr.mxu0 0.0
    %108 = vmatpush1.msra.mxu0 0.0
    %109 = vmatprep.subr.mxu0 0.0
    %110 = vmatpush1.msra.mxu0 0.0
    %111 = vmatprep.subr.mxu0 0.0
    %112 = vmatpush1.msra.mxu0 %v87
    %113 = vmatprep.subr.mxu0 0.0
    %114 = vmatpush1.msra.mxu0 %v86
    %115 = vmatprep.subr.mxu0 0.0
    %116 = vmatpush1.msra.mxu0 %v85
    %117 = vmatprep.subr.mxu0 0.0
    %118 = vmatpush1.msra.mxu0 %v84
    %119 = vmatprep.subr.mxu0 0.0
    %120 = vmatpush1.msra.mxu0 %v83
    %121 = vmatprep.subr.mxu0 0.0
    %122 = vmatpush1.msra.mxu0 %v82
    %123 = vmatprep.subr.mxu0 0.0
    %124 = vmatpush1.msra.mxu0 %v81
    %125 = vmatprep.subr.mxu0 0.0
    %126 = vmatpush1.msra.mxu0 %v80
    %127 = vmatprep.subr.mxu0 0.0
    %128 = vmatpush2.msra.mxu0 0.0
    %129 = vmatprep.subr.mxu0 0.0
    %130 = vmatpush2.msra.mxu0 0.0
    %131 = vmatprep.subr.mxu0 0.0
    %132 = vmatpush2.msra.mxu0 0.0
    %133 = vmatprep.subr.mxu0 0.0
    %134 = vmatpush2.msra.mxu0 0.0
    %135 = vmatprep.subr.mxu0 0.0
    %136 = vmatpush2.msra.mxu0 0.0
    %137 = vmatprep.subr.mxu0 0.0
    %138 = vmatpush2.msra.mxu0 0.0
    %139 = vmatprep.subr.mxu0 0.0
    %140 = vmatpush2.msra.mxu0 0.0
    %141 = vmatprep.subr.mxu0 0.0
    %142 = vmatpush2.msra.mxu0 0.0
    %143 = vmatprep.subr.mxu0 0.0
    %144 = vmatpush2.msra.mxu0 0.0
    %145 = vmatprep.subr.mxu0 0.0
    %146 = vmatpush2.msra.mxu0 0.0
    %147 = vmatprep.subr.mxu0 0.0
    %148 = vmatpush2.msra.mxu0 0.0
    %149 = vmatprep.subr.mxu0 0.0
    %150 = vmatpush2.msra.mxu0 0.0
    %151 = vmatprep.subr.mxu0 0.0
    %152 = vmatpush2.msra.mxu0 0.0
    %153 = vmatprep.subr.mxu0 0.0
    %154 = vmatpush2.msra.mxu0 0.0
    %155 = vmatprep.subr.mxu0 0.0
    %156 = vmatpush2.msra.mxu0 0.0
    %157 = vmatprep.subr.mxu0 0.0
    %158 = vmatpush2.msra.mxu0 0.0
    %159 = vmatprep.mubr.f32.mxu0 0.0
    %160 = vmatmul.mubr.f32.gmra.mxu0 %v90
    %v161 = vpop.f32.mrf.mxu0
    %v162 = vadd.f32 0.0, %v161
    %v163 = vpop.f32.mrf.mxu0
    %164 = vmatprep.mubr.f32.mxu0 0.0
    %165 = vmatmul.mubr.f32.gmra.mxu0 %v93
    %v166 = vpop.f32.mrf.mxu0
    %v167 = vadd.f32 0.0, %v166
    %v168 = vpop.f32.mrf.mxu0
    %169 = vdwg.mxu0
    %v170 = vld [vmem:[%s2] sm:$0xff]
    %v171 = vadd.f32 %v162, %v170
    %v172 = vadd.f32 %v167, %v170
    %v173 = vpack.c.bf16 %v172, %v171
    %v174 = vld [vmem:[%s3] sm:$0xf]
    %v175 = vld [vmem:[%s3 + $0x4] sm:$0xf]
    %v176 = vld [vmem:[%s3 + $0x8] sm:$0xf]
    %v177 = vld [vmem:[%s3 + $0xc] sm:$0xf]
    %v178 = vld [vmem:[%s4] sm:$0x1]
    %v180 = vlaneseq
    %v181 = vshrl.u32 %v180, 7
    %v182 = vsub.s32 0, %v181
    %v183 = vrot.slane %v178, %v182
    %v189 = vunpack.c.l.b16 %v174
    %v190 = vunpack.c.l.b16 %v175
    %v191 = vunpack.c.l.b16 %v176
    %v192 = vunpack.c.l.b16 %v177
    %v193 = vpack.c.b16 %v190, %v189
    %v194 = vpack.c.b16 %v192, %v191
    %vm197 = vcmask 261120
    %v199 = vsel %vm197, %v173, 0
    %201 = vmatprep.subr.bf16.mxu0 0
    %202 = vmatpush1.bf16.msra.mxu0 0
    %203 = vmatprep.subr.bf16.mxu0 0
    %204 = vmatpush1.bf16.msra.mxu0 0
    %205 = vmatprep.subr.bf16.mxu0 0
    %206 = vmatpush1.bf16.msra.mxu0 0
    %207 = vmatprep.subr.bf16.mxu0 0
    %208 = vmatpush1.bf16.msra.mxu0 0
    %209 = vmatprep.subr.bf16.mxu0 0
    %210 = vmatpush1.bf16.msra.mxu0 0
    %211 = vmatprep.subr.bf16.mxu0 0
    %212 = vmatpush1.bf16.msra.mxu0 0
    %213 = vmatprep.subr.bf16.mxu0 0
    %214 = vmatpush1.bf16.msra.mxu0 %v194
    %215 = vmatprep.subr.bf16.mxu0 0
    %216 = vmatpush1.bf16.msra.mxu0 %v193
    %217 = vmatprep.subr.bf16.mxu0 0
    %218 = vmatpush2.bf16.msra.mxu0 0
    %219 = vmatprep.subr.bf16.mxu0 0
    %220 = vmatpush2.bf16.msra.mxu0 0
    %221 = vmatprep.subr.bf16.mxu0 0
    %222 = vmatpush2.bf16.msra.mxu0 0
    %223 = vmatprep.subr.bf16.mxu0 0
    %224 = vmatpush2.bf16.msra.mxu0 0
    %225 = vmatprep.subr.bf16.mxu0 0
    %226 = vmatpush2.bf16.msra.mxu0 0
    %227 = vmatprep.subr.bf16.mxu0 0
    %228 = vmatpush2.bf16.msra.mxu0 0
    %229 = vmatprep.subr.bf16.mxu0 0
    %230 = vmatpush2.bf16.msra.mxu0 0
    %231 = vmatprep.subr.bf16.mxu0 0
    %232 = vmatpush2.bf16.msra.mxu0 0
    %233 = vmatprep.mubr.bf16.mxu0 0
    %234 = vmatmul.mubr.bf16.gmra.mxu0 %v199
    %v235 = vpop.f32.mrf.mxu0
    %v236 = vadd.f32 %v183, %v235
    %v237 = vpop.f32.mrf.mxu0
    %v238 = vpop.f32.mrf.mxu0
    %v239 = vadd.f32 %v183, %v238
    %v240 = vpop.f32.mrf.mxu0
    %241 = vdwg.mxu0
    %243 = vrot.lane.b32.xlu0 %v236, 96
    %v244 = vpop.permute.xlu0 %243
    %vm245 = vcmask 64512
    %v246 = vsel %vm245, %v236, 0
    %v248 = vsel %vm245, %v244, 0
    %250 = vmatprep.subr.mxu0 0.0
    %251 = vmatpush1.xpose.msra.mxu0 0.0
    %252 = vmatprep.subr.mxu0 0.0
    %253 = vmatpush1.xpose.msra.mxu0 0.0
    %254 = vmatprep.subr.mxu0 0.0
    %255 = vmatpush1.xpose.msra.mxu0 0.0
    %256 = vmatprep.subr.mxu0 0.0
    %257 = vmatpush1.xpose.msra.mxu0 0.0
    %258 = vmatprep.subr.mxu0 0.0
    %259 = vmatpush1.xpose.msra.mxu0 0.0
    %260 = vmatprep.subr.mxu0 0.0
    %261 = vmatpush1.xpose.msra.mxu0 0.0
    %262 = vmatprep.subr.mxu0 0.0
    %263 = vmatpush1.xpose.msra.mxu0 0.0
    %264 = vmatprep.subr.mxu0 0.0
    %265 = vmatpush1.xpose.msra.mxu0 0.0
    %266 = vmatprep.subr.mxu0 0.0
    %267 = vmatpush1.xpose.msra.mxu0 0.0
    %268 = vmatprep.subr.mxu0 0.0
    %269 = vmatpush1.xpose.msra.mxu0 0.0
    %270 = vmatprep.subr.mxu0 0.0
    %271 = vmatpush1.xpose.msra.mxu0 0.0
    %272 = vmatprep.subr.mxu0 0.0
    %273 = vmatpush1.xpose.msra.mxu0 0.0
    %274 = vmatprep.subr.mxu0 0.0
    %275 = vmatpush1.xpose.msra.mxu0 0.0
    %276 = vmatprep.subr.mxu0 0.0
    %277 = vmatpush1.xpose.msra.mxu0 0.0
    %278 = vmatprep.subr.mxu0 0.0
    %279 = vmatpush1.xpose.msra.mxu0 0.0
    %280 = vmatprep.subr.mxu0 0.0
    %281 = vmatpush1.xpose.msra.mxu0 %v248
    %282 = vmatprep.subr.mxu0 0.0
    %283 = vmatpush2.xpose.msra.mxu0 0.0
    %284 = vmatprep.subr.mxu0 0.0
    %285 = vmatpush2.xpose.msra.mxu0 0.0
    %286 = vmatprep.subr.mxu0 0.0
    %287 = vmatpush2.xpose.msra.mxu0 0.0
    %288 = vmatprep.subr.mxu0 0.0
    %289 = vmatpush2.xpose.msra.mxu0 0.0
    %290 = vmatprep.subr.mxu0 0.0
    %291 = vmatpush2.xpose.msra.mxu0 0.0
    %292 = vmatprep.subr.mxu0 0.0
    %293 = vmatpush2.xpose.msra.mxu0 0.0
    %294 = vmatprep.subr.mxu0 0.0
    %295 = vmatpush2.xpose.msra.mxu0 0.0
    %296 = vmatprep.subr.mxu0 0.0
    %297 = vmatpush2.xpose.msra.mxu0 0.0
    %298 = vmatprep.subr.mxu0 0.0
    %299 = vmatpush2.xpose.msra.mxu0 0.0
    %300 = vmatprep.subr.mxu0 0.0
    %301 = vmatpush2.xpose.msra.mxu0 0.0
    %302 = vmatprep.subr.mxu0 0.0
    %303 = vmatpush2.xpose.msra.mxu0 0.0
    %304 = vmatprep.subr.mxu0 0.0
    %305 = vmatpush2.xpose.msra.mxu0 0.0
    %306 = vmatprep.subr.mxu0 0.0
    %307 = vmatpush2.xpose.msra.mxu0 0.0
    %308 = vmatprep.subr.mxu0 0.0
    %309 = vmatpush2.xpose.msra.mxu0 0.0
    %310 = vmatprep.subr.mxu0 0.0
    %311 = vmatpush2.xpose.msra.mxu0 0.0
    %312 = vmatprep.subr.mxu0 0.0
    %313 = vmatpush2.xpose.msra.mxu0 0.0
    %314 = vmatprep.mubr.f32.mxu0 0.0
    %315 = vmatmul.mubr.f32.gmra.mxu0 %v246
    %v316 = vpop.f32.mrf.mxu0
    %v317 = vadd.f32 0.0, %v316
    %v318 = vpop.f32.mrf.mxu0
    %319 = vdwg.mxu0
    %321 = vrot.lane.b32.xlu0 %v239, 96
    %v322 = vpop.permute.xlu0 %321
    %v323 = vsel %vm245, %v239, 0
    %v325 = vsel %vm245, %v322, 0
    %327 = vmatprep.subr.mxu0 0.0
    %328 = vmatpush1.xpose.msra.mxu0 0.0
    %329 = vmatprep.subr.mxu0 0.0
    %330 = vmatpush1.xpose.msra.mxu0 0.0
    %331 = vmatprep.subr.mxu0 0.0
    %332 = vmatpush1.xpose.msra.mxu0 0.0
    %333 = vmatprep.subr.mxu0 0.0
    %334 = vmatpush1.xpose.msra.mxu0 0.0
    %335 = vmatprep.subr.mxu0 0.0
    %336 = vmatpush1.xpose.msra.mxu0 0.0
    %337 = vmatprep.subr.mxu0 0.0
    %338 = vmatpush1.xpose.msra.mxu0 0.0
    %339 = vmatprep.subr.mxu0 0.0
    %340 = vmatpush1.xpose.msra.mxu0 0.0
    %341 = vmatprep.subr.mxu0 0.0
    %342 = vmatpush1.xpose.msra.mxu0 0.0
    %343 = vmatprep.subr.mxu0 0.0
    %344 = vmatpush1.xpose.msra.mxu0 0.0
    %345 = vmatprep.subr.mxu0 0.0
    %346 = vmatpush1.xpose.msra.mxu0 0.0
    %347 = vmatprep.subr.mxu0 0.0
    %348 = vmatpush1.xpose.msra.mxu0 0.0
    %349 = vmatprep.subr.mxu0 0.0
    %350 = vmatpush1.xpose.msra.mxu0 0.0
    %351 = vmatprep.subr.mxu0 0.0
    %352 = vmatpush1.xpose.msra.mxu0 0.0
    %353 = vmatprep.subr.mxu0 0.0
    %354 = vmatpush1.xpose.msra.mxu0 0.0
    %355 = vmatprep.subr.mxu0 0.0
    %356 = vmatpush1.xpose.msra.mxu0 0.0
    %357 = vmatprep.subr.mxu0 0.0
    %358 = vmatpush1.xpose.msra.mxu0 %v325
    %359 = vmatprep.subr.mxu0 0.0
    %360 = vmatpush2.xpose.msra.mxu0 0.0
    %361 = vmatprep.subr.mxu0 0.0
    %362 = vmatpush2.xpose.msra.mxu0 0.0
    %363 = vmatprep.subr.mxu0 0.0
    %364 = vmatpush2.xpose.msra.mxu0 0.0
    %365 = vmatprep.subr.mxu0 0.0
    %366 = vmatpush2.xpose.msra.mxu0 0.0
    %367 = vmatprep.subr.mxu0 0.0
    %368 = vmatpush2.xpose.msra.mxu0 0.0
    %369 = vmatprep.subr.mxu0 0.0
    %370 = vmatpush2.xpose.msra.mxu0 0.0
    %371 = vmatprep.subr.mxu0 0.0
    %372 = vmatpush2.xpose.msra.mxu0 0.0
    %373 = vmatprep.subr.mxu0 0.0
    %374 = vmatpush2.xpose.msra.mxu0 0.0
    %375 = vmatprep.subr.mxu0 0.0
    %376 = vmatpush2.xpose.msra.mxu0 0.0
    %377 = vmatprep.subr.mxu0 0.0
    %378 = vmatpush2.xpose.msra.mxu0 0.0
    %379 = vmatprep.subr.mxu0 0.0
    %380 = vmatpush2.xpose.msra.mxu0 0.0
    %381 = vmatprep.subr.mxu0 0.0
    %382 = vmatpush2.xpose.msra.mxu0 0.0
    %383 = vmatprep.subr.mxu0 0.0
    %384 = vmatpush2.xpose.msra.mxu0 0.0
    %385 = vmatprep.subr.mxu0 0.0
    %386 = vmatpush2.xpose.msra.mxu0 0.0
    %387 = vmatprep.subr.mxu0 0.0
    %388 = vmatpush2.xpose.msra.mxu0 0.0
    %389 = vmatprep.subr.mxu0 0.0
    %390 = vmatpush2.xpose.msra.mxu0 0.0
    %391 = vmatprep.mubr.f32.mxu0 0.0
    %392 = vmatmul.mubr.f32.gmra.mxu0 %v323
    %v393 = vpop.f32.mrf.mxu0
    %v394 = vadd.f32 0.0, %v393
    %v395 = vpop.f32.mrf.mxu0
    %396 = vdwg.mxu0
    %v397 = vmul.f32 %v317, 0.35355338
    %v398 = vmul.f32 %v394, 0.35355338
    %v399 = vsel %vm245, %v397, -inf
    %400 = vmax.xlane.f32.xlu0 %v399
    %v401 = vpop.xlane.xlu0 %400
    %v402 = vsel %vm245, %v398, -inf
    %403 = vmax.xlane.f32.xlu0 %v402
    %v404 = vpop.xlane.xlu0 %403
    %v405 = vsub.f32 %v397, %v401
    %v406 = vsub.f32 %v398, %v404
    %v407 = vmul.f32 %v405, 1.442695
    %v408 = vpow.pop %v407
    %v409 = vmul.f32 %v406, 1.442695
    %v410 = vpow.pop %v409
    %v411 = vsel %vm245, %v408, 0.0
    %412 = vadd.xlane.f32.xlu0 %v411
    %v413 = vpop.xlane.xlu0 %412
    %v414 = vsel %vm245, %v410, 0.0
    %415 = vadd.xlane.f32.xlu0 %v414
    %v416 = vpop.xlane.xlu0 %415
    %v417 = vrcp.pop %v413
    %v418 = vrcp.pop %v416
    %v419 = vmul.f32 %v408, %v417
    %v420 = vmul.f32 %v410, %v418
    %421 = vrot.lane.b32.xlu0 %v236, 64
    %v422 = vpop.permute.xlu0 %421
    %v425 = vsel %vm245, %v419, 0
    %427 = vmatprep.subr.mxu0 0.0
    %428 = vmatpush1.msra.mxu0 0.0
    %429 = vmatprep.subr.mxu0 0.0
    %430 = vmatpush1.msra.mxu0 0.0
    %431 = vmatprep.subr.mxu0 0.0
    %432 = vmatpush1.msra.mxu0 0.0
    %433 = vmatprep.subr.mxu0 0.0
    %434 = vmatpush1.msra.mxu0 0.0
    %435 = vmatprep.subr.mxu0 0.0
    %436 = vmatpush1.msra.mxu0 0.0
    %437 = vmatprep.subr.mxu0 0.0
    %438 = vmatpush1.msra.mxu0 0.0
    %439 = vmatprep.subr.mxu0 0.0
    %440 = vmatpush1.msra.mxu0 0.0
    %441 = vmatprep.subr.mxu0 0.0
    %442 = vmatpush1.msra.mxu0 0.0
    %443 = vmatprep.subr.mxu0 0.0
    %444 = vmatpush1.msra.mxu0 0.0
    %445 = vmatprep.subr.mxu0 0.0
    %446 = vmatpush1.msra.mxu0 0.0
    %447 = vmatprep.subr.mxu0 0.0
    %448 = vmatpush1.msra.mxu0 0.0
    %449 = vmatprep.subr.mxu0 0.0
    %450 = vmatpush1.msra.mxu0 0.0
    %451 = vmatprep.subr.mxu0 0.0
    %452 = vmatpush1.msra.mxu0 0.0
    %453 = vmatprep.subr.mxu0 0.0
    %454 = vmatpush1.msra.mxu0 0.0
    %455 = vmatprep.subr.mxu0 0.0
    %456 = vmatpush1.msra.mxu0 0.0
    %457 = vmatprep.subr.mxu0 0.0
    %458 = vmatpush1.msra.mxu0 %v422
    %459 = vmatprep.subr.mxu0 0.0
    %460 = vmatpush2.msra.mxu0 0.0
    %461 = vmatprep.subr.mxu0 0.0
    %462 = vmatpush2.msra.mxu0 0.0
    %463 = vmatprep.subr.mxu0 0.0
    %464 = vmatpush2.msra.mxu0 0.0
    %465 = vmatprep.subr.mxu0 0.0
    %466 = vmatpush2.msra.mxu0 0.0
    %467 = vmatprep.subr.mxu0 0.0
    %468 = vmatpush2.msra.mxu0 0.0
    %469 = vmatprep.subr.mxu0 0.0
    %470 = vmatpush2.msra.mxu0 0.0
    %471 = vmatprep.subr.mxu0 0.0
    %472 = vmatpush2.msra.mxu0 0.0
    %473 = vmatprep.subr.mxu0 0.0
    %474 = vmatpush2.msra.mxu0 0.0
    %475 = vmatprep.subr.mxu0 0.0
    %476 = vmatpush2.msra.mxu0 0.0
    %477 = vmatprep.subr.mxu0 0.0
    %478 = vmatpush2.msra.mxu0 0.0
    %479 = vmatprep.subr.mxu0 0.0
    %480 = vmatpush2.msra.mxu0 0.0
    %481 = vmatprep.subr.mxu0 0.0
    %482 = vmatpush2.msra.mxu0 0.0
    %483 = vmatprep.subr.mxu0 0.0
    %484 = vmatpush2.msra.mxu0 0.0
    %485 = vmatprep.subr.mxu0 0.0
    %486 = vmatpush2.msra.mxu0 0.0
    %487 = vmatprep.subr.mxu0 0.0
    %488 = vmatpush2.msra.mxu0 0.0
    %489 = vmatprep.subr.mxu0 0.0
    %490 = vmatpush2.msra.mxu0 0.0
    %491 = vmatprep.mubr.f32.mxu0 0.0
    %492 = vmatmul.mubr.f32.gmra.mxu0 %v425
    %v493 = vpop.f32.mrf.mxu0
    %v494 = vadd.f32 0.0, %v493
    %v495 = vpop.f32.mrf.mxu0
    %496 = vdwg.mxu0
    %497 = vrot.lane.b32.xlu0 %v239, 64
    %v498 = vpop.permute.xlu0 %497
    %v501 = vsel %vm245, %v420, 0
    %503 = vmatprep.subr.mxu0 0.0
    %504 = vmatpush1.msra.mxu0 0.0
    %505 = vmatprep.subr.mxu0 0.0
    %506 = vmatpush1.msra.mxu0 0.0
    %507 = vmatprep.subr.mxu0 0.0
    %508 = vmatpush1.msra.mxu0 0.0
    %509 = vmatprep.subr.mxu0 0.0
    %510 = vmatpush1.msra.mxu0 0.0
    %511 = vmatprep.subr.mxu0 0.0
    %512 = vmatpush1.msra.mxu0 0.0
    %513 = vmatprep.subr.mxu0 0.0
    %514 = vmatpush1.msra.mxu0 0.0
    %515 = vmatprep.subr.mxu0 0.0
    %516 = vmatpush1.msra.mxu0 0.0
    %517 = vmatprep.subr.mxu0 0.0
    %518 = vmatpush1.msra.mxu0 0.0
    %519 = vmatprep.subr.mxu0 0.0
    %520 = vmatpush1.msra.mxu0 0.0
    %521 = vmatprep.subr.mxu0 0.0
    %522 = vmatpush1.msra.mxu0 0.0
    %523 = vmatprep.subr.mxu0 0.0
    %524 = vmatpush1.msra.mxu0 0.0
    %525 = vmatprep.subr.mxu0 0.0
    %526 = vmatpush1.msra.mxu0 0.0
    %527 = vmatprep.subr.mxu0 0.0
    %528 = vmatpush1.msra.mxu0 0.0
    %529 = vmatprep.subr.mxu0 0.0
    %530 = vmatpush1.msra.mxu0 0.0
    %531 = vmatprep.subr.mxu0 0.0
    %532 = vmatpush1.msra.mxu0 0.0
    %533 = vmatprep.subr.mxu0 0.0
    %534 = vmatpush1.msra.mxu0 %v498
    %535 = vmatprep.subr.mxu0 0.0
    %536 = vmatpush2.msra.mxu0 0.0
    %537 = vmatprep.subr.mxu0 0.0
    %538 = vmatpush2.msra.mxu0 0.0
    %539 = vmatprep.subr.mxu0 0.0
    %540 = vmatpush2.msra.mxu0 0.0
    %541 = vmatprep.subr.mxu0 0.0
    %542 = vmatpush2.msra.mxu0 0.0
    %543 = vmatprep.subr.mxu0 0.0
    %544 = vmatpush2.msra.mxu0 0.0
    %545 = vmatprep.subr.mxu0 0.0
    %546 = vmatpush2.msra.mxu0 0.0
    %547 = vmatprep.subr.mxu0 0.0
    %548 = vmatpush2.msra.mxu0 0.0
    %549 = vmatprep.subr.mxu0 0.0
    %550 = vmatpush2.msra.mxu0 0.0
    %551 = vmatprep.subr.mxu0 0.0
    %552 = vmatpush2.msra.mxu0 0.0
    %553 = vmatprep.subr.mxu0 0.0
    %554 = vmatpush2.msra.mxu0 0.0
    %555 = vmatprep.subr.mxu0 0.0
    %556 = vmatpush2.msra.mxu0 0.0
    %557 = vmatprep.subr.mxu0 0.0
    %558 = vmatpush2.msra.mxu0 0.0
    %559 = vmatprep.subr.mxu0 0.0
    %560 = vmatpush2.msra.mxu0 0.0
    %561 = vmatprep.subr.mxu0 0.0
    %562 = vmatpush2.msra.mxu0 0.0
    %563 = vmatprep.subr.mxu0 0.0
    %564 = vmatpush2.msra.mxu0 0.0
    %565 = vmatprep.subr.mxu0 0.0
    %566 = vmatpush2.msra.mxu0 0.0
    %567 = vmatprep.mubr.f32.mxu0 0.0
    %568 = vmatmul.mubr.f32.gmra.mxu0 %v501
    %v569 = vpop.f32.mrf.mxu0
    %v570 = vadd.f32 0.0, %v569
    %v571 = vpop.f32.mrf.mxu0
    %572 = vdwg.mxu0
    %573 = vrot.lane.b32.xlu0 %v236, 120
    %v574 = vpop.permute.xlu0 %573
    %575 = vrot.lane.b32.xlu0 %v236, 88
    %v576 = vpop.permute.xlu0 %575
    %v577 = vsel %vm245, %v574, 0
    %v579 = vsel %vm245, %v576, 0
    %581 = vmatprep.subr.mxu0 0.0
    %582 = vmatpush1.xpose.msra.mxu0 0.0
    %583 = vmatprep.subr.mxu0 0.0
    %584 = vmatpush1.xpose.msra.mxu0 0.0
    %585 = vmatprep.subr.mxu0 0.0
    %586 = vmatpush1.xpose.msra.mxu0 0.0
    %587 = vmatprep.subr.mxu0 0.0
    %588 = vmatpush1.xpose.msra.mxu0 0.0
    %589 = vmatprep.subr.mxu0 0.0
    %590 = vmatpush1.xpose.msra.mxu0 0.0
    %591 = vmatprep.subr.mxu0 0.0
    %592 = vmatpush1.xpose.msra.mxu0 0.0
    %593 = vmatprep.subr.mxu0 0.0
    %594 = vmatpush1.xpose.msra.mxu0 0.0
    %595 = vmatprep.subr.mxu0 0.0
    %596 = vmatpush1.xpose.msra.mxu0 0.0
    %597 = vmatprep.subr.mxu0 0.0
    %598 = vmatpush1.xpose.msra.mxu0 0.0
    %599 = vmatprep.subr.mxu0 0.0
    %600 = vmatpush1.xpose.msra.mxu0 0.0
    %601 = vmatprep.subr.mxu0 0.0
    %602 = vmatpush1.xpose.msra.mxu0 0.0
    %603 = vmatprep.subr.mxu0 0.0
    %604 = vmatpush1.xpose.msra.mxu0 0.0
    %605 = vmatprep.subr.mxu0 0.0
    %606 = vmatpush1.xpose.msra.mxu0 0.0
    %607 = vmatprep.subr.mxu0 0.0
    %608 = vmatpush1.xpose.msra.mxu0 0.0
    %609 = vmatprep.subr.mxu0 0.0
    %610 = vmatpush1.xpose.msra.mxu0 0.0
    %611 = vmatprep.subr.mxu0 0.0
    %612 = vmatpush1.xpose.msra.mxu0 %v579
    %613 = vmatprep.subr.mxu0 0.0
    %614 = vmatpush2.xpose.msra.mxu0 0.0
    %615 = vmatprep.subr.mxu0 0.0
    %616 = vmatpush2.xpose.msra.mxu0 0.0
    %617 = vmatprep.subr.mxu0 0.0
    %618 = vmatpush2.xpose.msra.mxu0 0.0
    %619 = vmatprep.subr.mxu0 0.0
    %620 = vmatpush2.xpose.msra.mxu0 0.0
    %621 = vmatprep.subr.mxu0 0.0
    %622 = vmatpush2.xpose.msra.mxu0 0.0
    %623 = vmatprep.subr.mxu0 0.0
    %624 = vmatpush2.xpose.msra.mxu0 0.0
    %625 = vmatprep.subr.mxu0 0.0
    %626 = vmatpush2.xpose.msra.mxu0 0.0
    %627 = vmatprep.subr.mxu0 0.0
    %628 = vmatpush2.xpose.msra.mxu0 0.0
    %629 = vmatprep.subr.mxu0 0.0
    %630 = vmatpush2.xpose.msra.mxu0 0.0
    %631 = vmatprep.subr.mxu0 0.0
    %632 = vmatpush2.xpose.msra.mxu0 0.0
    %633 = vmatprep.subr.mxu0 0.0
    %634 = vmatpush2.xpose.msra.mxu0 0.0
    %635 = vmatprep.subr.mxu0 0.0
    %636 = vmatpush2.xpose.msra.mxu0 0.0
    %637 = vmatprep.subr.mxu0 0.0
    %638 = vmatpush2.xpose.msra.mxu0 0.0
    %639 = vmatprep.subr.mxu0 0.0
    %640 = vmatpush2.xpose.msra.mxu0 0.0
    %641 = vmatprep.subr.mxu0 0.0
    %642 = vmatpush2.xpose.msra.mxu0 0.0
    %643 = vmatprep.subr.mxu0 0.0
    %644 = vmatpush2.xpose.msra.mxu0 0.0
    %645 = vmatprep.mubr.f32.mxu0 0.0
    %646 = vmatmul.mubr.f32.gmra.mxu0 %v577
    %v647 = vpop.f32.mrf.mxu0
    %v648 = vadd.f32 0.0, %v647
    %v649 = vpop.f32.mrf.mxu0
    %650 = vdwg.mxu0
    %651 = vrot.lane.b32.xlu0 %v239, 120
    %v652 = vpop.permute.xlu0 %651
    %653 = vrot.lane.b32.xlu0 %v239, 88
    %v654 = vpop.permute.xlu0 %653
    %v655 = vsel %vm245, %v652, 0
    %v657 = vsel %vm245, %v654, 0
    %659 = vmatprep.subr.mxu0 0.0
    %660 = vmatpush1.xpose.msra.mxu0 0.0
    %661 = vmatprep.subr.mxu0 0.0
    %662 = vmatpush1.xpose.msra.mxu0 0.0
    %663 = vmatprep.subr.mxu0 0.0
    %664 = vmatpush1.xpose.msra.mxu0 0.0
    %665 = vmatprep.subr.mxu0 0.0
    %666 = vmatpush1.xpose.msra.mxu0 0.0
    %667 = vmatprep.subr.mxu0 0.0
    %668 = vmatpush1.xpose.msra.mxu0 0.0
    %669 = vmatprep.subr.mxu0 0.0
    %670 = vmatpush1.xpose.msra.mxu0 0.0
    %671 = vmatprep.subr.mxu0 0.0
    %672 = vmatpush1.xpose.msra.mxu0 0.0
    %673 = vmatprep.subr.mxu0 0.0
    %674 = vmatpush1.xpose.msra.mxu0 0.0
    %675 = vmatprep.subr.mxu0 0.0
    %676 = vmatpush1.xpose.msra.mxu0 0.0
    %677 = vmatprep.subr.mxu0 0.0
    %678 = vmatpush1.xpose.msra.mxu0 0.0
    %679 = vmatprep.subr.mxu0 0.0
    %680 = vmatpush1.xpose.msra.mxu0 0.0
    %681 = vmatprep.subr.mxu0 0.0
    %682 = vmatpush1.xpose.msra.mxu0 0.0
    %683 = vmatprep.subr.mxu0 0.0
    %684 = vmatpush1.xpose.msra.mxu0 0.0
    %685 = vmatprep.subr.mxu0 0.0
    %686 = vmatpush1.xpose.msra.mxu0 0.0
    %687 = vmatprep.subr.mxu0 0.0
    %688 = vmatpush1.xpose.msra.mxu0 0.0
    %689 = vmatprep.subr.mxu0 0.0
    %690 = vmatpush1.xpose.msra.mxu0 %v657
    %691 = vmatprep.subr.mxu0 0.0
    %692 = vmatpush2.xpose.msra.mxu0 0.0
    %693 = vmatprep.subr.mxu0 0.0
    %694 = vmatpush2.xpose.msra.mxu0 0.0
    %695 = vmatprep.subr.mxu0 0.0
    %696 = vmatpush2.xpose.msra.mxu0 0.0
    %697 = vmatprep.subr.mxu0 0.0
    %698 = vmatpush2.xpose.msra.mxu0 0.0
    %699 = vmatprep.subr.mxu0 0.0
    %700 = vmatpush2.xpose.msra.mxu0 0.0
    %701 = vmatprep.subr.mxu0 0.0
    %702 = vmatpush2.xpose.msra.mxu0 0.0
    %703 = vmatprep.subr.mxu0 0.0
    %704 = vmatpush2.xpose.msra.mxu0 0.0
    %705 = vmatprep.subr.mxu0 0.0
    %706 = vmatpush2.xpose.msra.mxu0 0.0
    %707 = vmatprep.subr.mxu0 0.0
    %708 = vmatpush2.xpose.msra.mxu0 0.0
    %709 = vmatprep.subr.mxu0 0.0
    %710 = vmatpush2.xpose.msra.mxu0 0.0
    %711 = vmatprep.subr.mxu0 0.0
    %712 = vmatpush2.xpose.msra.mxu0 0.0
    %713 = vmatprep.subr.mxu0 0.0
    %714 = vmatpush2.xpose.msra.mxu0 0.0
    %715 = vmatprep.subr.mxu0 0.0
    %716 = vmatpush2.xpose.msra.mxu0 0.0
    %717 = vmatprep.subr.mxu0 0.0
    %718 = vmatpush2.xpose.msra.mxu0 0.0
    %719 = vmatprep.subr.mxu0 0.0
    %720 = vmatpush2.xpose.msra.mxu0 0.0
    %721 = vmatprep.subr.mxu0 0.0
    %722 = vmatpush2.xpose.msra.mxu0 0.0
    %723 = vmatprep.mubr.f32.mxu0 0.0
    %724 = vmatmul.mubr.f32.gmra.mxu0 %v655
    %v725 = vpop.f32.mrf.mxu0
    %v726 = vadd.f32 0.0, %v725
    %v727 = vpop.f32.mrf.mxu0
    %728 = vdwg.mxu0
    %v729 = vmul.f32 %v648, 0.35355338
    %v730 = vmul.f32 %v726, 0.35355338
    %v731 = vsel %vm245, %v729, -inf
    %732 = vmax.xlane.f32.xlu0 %v731
    %v733 = vpop.xlane.xlu0 %732
    %v734 = vsel %vm245, %v730, -inf
    %735 = vmax.xlane.f32.xlu0 %v734
    %v736 = vpop.xlane.xlu0 %735
    %v737 = vsub.f32 %v729, %v733
    %v738 = vsub.f32 %v730, %v736
    %v739 = vmul.f32 %v737, 1.442695
    %v740 = vpow.pop %v739
    %v741 = vmul.f32 %v738, 1.442695
    %v742 = vpow.pop %v741
    %v743 = vsel %vm245, %v740, 0.0
    %744 = vadd.xlane.f32.xlu0 %v743
    %v745 = vpop.xlane.xlu0 %744
    %v746 = vsel %vm245, %v742, 0.0
    %747 = vadd.xlane.f32.xlu0 %v746
    %v748 = vpop.xlane.xlu0 %747
    %v749 = vrcp.pop %v745
    %v750 = vrcp.pop %v748
    %v751 = vmul.f32 %v740, %v749
    %v752 = vmul.f32 %v742, %v750
    %753 = vrot.lane.b32.xlu0 %v236, 56
    %v754 = vpop.permute.xlu0 %753
    %v757 = vsel %vm245, %v751, 0
    %759 = vmatprep.subr.mxu0 0.0
    %760 = vmatpush1.msra.mxu0 0.0
    %761 = vmatprep.subr.mxu0 0.0
    %762 = vmatpush1.msra.mxu0 0.0
    %763 = vmatprep.subr.mxu0 0.0
    %764 = vmatpush1.msra.mxu0 0.0
    %765 = vmatprep.subr.mxu0 0.0
    %766 = vmatpush1.msra.mxu0 0.0
    %767 = vmatprep.subr.mxu0 0.0
    %768 = vmatpush1.msra.mxu0 0.0
    %769 = vmatprep.subr.mxu0 0.0
    %770 = vmatpush1.msra.mxu0 0.0
    %771 = vmatprep.subr.mxu0 0.0
    %772 = vmatpush1.msra.mxu0 0.0
    %773 = vmatprep.subr.mxu0 0.0
    %774 = vmatpush1.msra.mxu0 0.0
    %775 = vmatprep.subr.mxu0 0.0
    %776 = vmatpush1.msra.mxu0 0.0
    %777 = vmatprep.subr.mxu0 0.0
    %778 = vmatpush1.msra.mxu0 0.0
    %779 = vmatprep.subr.mxu0 0.0
    %780 = vmatpush1.msra.mxu0 0.0
    %781 = vmatprep.subr.mxu0 0.0
    %782 = vmatpush1.msra.mxu0 0.0
    %783 = vmatprep.subr.mxu0 0.0
    %784 = vmatpush1.msra.mxu0 0.0
    %785 = vmatprep.subr.mxu0 0.0
    %786 = vmatpush1.msra.mxu0 0.0
    %787 = vmatprep.subr.mxu0 0.0
    %788 = vmatpush1.msra.mxu0 0.0
    %789 = vmatprep.subr.mxu0 0.0
    %790 = vmatpush1.msra.mxu0 %v754
    %791 = vmatprep.subr.mxu0 0.0
    %792 = vmatpush2.msra.mxu0 0.0
    %793 = vmatprep.subr.mxu0 0.0
    %794 = vmatpush2.msra.mxu0 0.0
    %795 = vmatprep.subr.mxu0 0.0
    %796 = vmatpush2.msra.mxu0 0.0
    %797 = vmatprep.subr.mxu0 0.0
    %798 = vmatpush2.msra.mxu0 0.0
    %799 = vmatprep.subr.mxu0 0.0
    %800 = vmatpush2.msra.mxu0 0.0
    %801 = vmatprep.subr.mxu0 0.0
    %802 = vmatpush2.msra.mxu0 0.0
    %803 = vmatprep.subr.mxu0 0.0
    %804 = vmatpush2.msra.mxu0 0.0
    %805 = vmatprep.subr.mxu0 0.0
    %806 = vmatpush2.msra.mxu0 0.0
    %807 = vmatprep.subr.mxu0 0.0
    %808 = vmatpush2.msra.mxu0 0.0
    %809 = vmatprep.subr.mxu0 0.0
    %810 = vmatpush2.msra.mxu0 0.0
    %811 = vmatprep.subr.mxu0 0.0
    %812 = vmatpush2.msra.mxu0 0.0
    %813 = vmatprep.subr.mxu0 0.0
    %814 = vmatpush2.msra.mxu0 0.0
    %815 = vmatprep.subr.mxu0 0.0
    %816 = vmatpush2.msra.mxu0 0.0
    %817 = vmatprep.subr.mxu0 0.0
    %818 = vmatpush2.msra.mxu0 0.0
    %819 = vmatprep.subr.mxu0 0.0
    %820 = vmatpush2.msra.mxu0 0.0
    %821 = vmatprep.subr.mxu0 0.0
    %822 = vmatpush2.msra.mxu0 0.0
    %823 = vmatprep.mubr.f32.mxu0 0.0
    %824 = vmatmul.mubr.f32.gmra.mxu0 %v757
    %v825 = vpop.f32.mrf.mxu0
    %v826 = vadd.f32 0.0, %v825
    %v827 = vpop.f32.mrf.mxu0
    %828 = vdwg.mxu0
    %829 = vrot.lane.b32.xlu0 %v239, 56
    %v830 = vpop.permute.xlu0 %829
    %v833 = vsel %vm245, %v752, 0
    %835 = vmatprep.subr.mxu0 0.0
    %836 = vmatpush1.msra.mxu0 0.0
    %837 = vmatprep.subr.mxu0 0.0
    %838 = vmatpush1.msra.mxu0 0.0
    %839 = vmatprep.subr.mxu0 0.0
    %840 = vmatpush1.msra.mxu0 0.0
    %841 = vmatprep.subr.mxu0 0.0
    %842 = vmatpush1.msra.mxu0 0.0
    %843 = vmatprep.subr.mxu0 0.0
    %844 = vmatpush1.msra.mxu0 0.0
    %845 = vmatprep.subr.mxu0 0.0
    %846 = vmatpush1.msra.mxu0 0.0
    %847 = vmatprep.subr.mxu0 0.0
    %848 = vmatpush1.msra.mxu0 0.0
    %849 = vmatprep.subr.mxu0 0.0
    %850 = vmatpush1.msra.mxu0 0.0
    %851 = vmatprep.subr.mxu0 0.0
    %852 = vmatpush1.msra.mxu0 0.0
    %853 = vmatprep.subr.mxu0 0.0
    %854 = vmatpush1.msra.mxu0 0.0
    %855 = vmatprep.subr.mxu0 0.0
    %856 = vmatpush1.msra.mxu0 0.0
    %857 = vmatprep.subr.mxu0 0.0
    %858 = vmatpush1.msra.mxu0 0.0
    %859 = vmatprep.subr.mxu0 0.0
    %860 = vmatpush1.msra.mxu0 0.0
    %861 = vmatprep.subr.mxu0 0.0
    %862 = vmatpush1.msra.mxu0 0.0
    %863 = vmatprep.subr.mxu0 0.0
    %864 = vmatpush1.msra.mxu0 0.0
    %865 = vmatprep.subr.mxu0 0.0
    %866 = vmatpush1.msra.mxu0 %v830
    %867 = vmatprep.subr.mxu0 0.0
    %868 = vmatpush2.msra.mxu0 0.0
    %869 = vmatprep.subr.mxu0 0.0
    %870 = vmatpush2.msra.mxu0 0.0
    %871 = vmatprep.subr.mxu0 0.0
    %872 = vmatpush2.msra.mxu0 0.0
    %873 = vmatprep.subr.mxu0 0.0
    %874 = vmatpush2.msra.mxu0 0.0
    %875 = vmatprep.subr.mxu0 0.0
    %876 = vmatpush2.msra.mxu0 0.0
    %877 = vmatprep.subr.mxu0 0.0
    %878 = vmatpush2.msra.mxu0 0.0
    %879 = vmatprep.subr.mxu0 0.0
    %880 = vmatpush2.msra.mxu0 0.0
    %881 = vmatprep.subr.mxu0 0.0
    %882 = vmatpush2.msra.mxu0 0.0
    %883 = vmatprep.subr.mxu0 0.0
    %884 = vmatpush2.msra.mxu0 0.0
    %885 = vmatprep.subr.mxu0 0.0
    %886 = vmatpush2.msra.mxu0 0.0
    %887 = vmatprep.subr.mxu0 0.0
    %888 = vmatpush2.msra.mxu0 0.0
    %889 = vmatprep.subr.mxu0 0.0
    %890 = vmatpush2.msra.mxu0 0.0
    %891 = vmatprep.subr.mxu0 0.0
    %892 = vmatpush2.msra.mxu0 0.0
    %893 = vmatprep.subr.mxu0 0.0
    %894 = vmatpush2.msra.mxu0 0.0
    %895 = vmatprep.subr.mxu0 0.0
    %896 = vmatpush2.msra.mxu0 0.0
    %897 = vmatprep.subr.mxu0 0.0
    %898 = vmatpush2.msra.mxu0 0.0
    %899 = vmatprep.mubr.f32.mxu0 0.0
    %900 = vmatmul.mubr.f32.gmra.mxu0 %v833
    %v901 = vpop.f32.mrf.mxu0
    %v902 = vadd.f32 0.0, %v901
    %v903 = vpop.f32.mrf.mxu0
    %904 = vdwg.mxu0
    %905 = vrot.lane.b32.xlu0 %v236, 112
    %v906 = vpop.permute.xlu0 %905
    %907 = vrot.lane.b32.xlu0 %v236, 80
    %v908 = vpop.permute.xlu0 %907
    %v909 = vsel %vm245, %v906, 0
    %v911 = vsel %vm245, %v908, 0
    %913 = vmatprep.subr.mxu0 0.0
    %914 = vmatpush1.xpose.msra.mxu0 0.0
    %915 = vmatprep.subr.mxu0 0.0
    %916 = vmatpush1.xpose.msra.mxu0 0.0
    %917 = vmatprep.subr.mxu0 0.0
    %918 = vmatpush1.xpose.msra.mxu0 0.0
    %919 = vmatprep.subr.mxu0 0.0
    %920 = vmatpush1.xpose.msra.mxu0 0.0
    %921 = vmatprep.subr.mxu0 0.0
    %922 = vmatpush1.xpose.msra.mxu0 0.0
    %923 = vmatprep.subr.mxu0 0.0
    %924 = vmatpush1.xpose.msra.mxu0 0.0
    %925 = vmatprep.subr.mxu0 0.0
    %926 = vmatpush1.xpose.msra.mxu0 0.0
    %927 = vmatprep.subr.mxu0 0.0
    %928 = vmatpush1.xpose.msra.mxu0 0.0
    %929 = vmatprep.subr.mxu0 0.0
    %930 = vmatpush1.xpose.msra.mxu0 0.0
    %931 = vmatprep.subr.mxu0 0.0
    %932 = vmatpush1.xpose.msra.mxu0 0.0
    %933 = vmatprep.subr.mxu0 0.0
    %934 = vmatpush1.xpose.msra.mxu0 0.0
    %935 = vmatprep.subr.mxu0 0.0
    %936 = vmatpush1.xpose.msra.mxu0 0.0
    %937 = vmatprep.subr.mxu0 0.0
    %938 = vmatpush1.xpose.msra.mxu0 0.0
    %939 = vmatprep.subr.mxu0 0.0
    %940 = vmatpush1.xpose.msra.mxu0 0.0
    %941 = vmatprep.subr.mxu0 0.0
    %942 = vmatpush1.xpose.msra.mxu0 0.0
    %943 = vmatprep.subr.mxu0 0.0
    %944 = vmatpush1.xpose.msra.mxu0 %v911
    %945 = vmatprep.subr.mxu0 0.0
    %946 = vmatpush2.xpose.msra.mxu0 0.0
    %947 = vmatprep.subr.mxu0 0.0
    %948 = vmatpush2.xpose.msra.mxu0 0.0
    %949 = vmatprep.subr.mxu0 0.0
    %950 = vmatpush2.xpose.msra.mxu0 0.0
    %951 = vmatprep.subr.mxu0 0.0
    %952 = vmatpush2.xpose.msra.mxu0 0.0
    %953 = vmatprep.subr.mxu0 0.0
    %954 = vmatpush2.xpose.msra.mxu0 0.0
    %955 = vmatprep.subr.mxu0 0.0
    %956 = vmatpush2.xpose.msra.mxu0 0.0
    %957 = vmatprep.subr.mxu0 0.0
    %958 = vmatpush2.xpose.msra.mxu0 0.0
    %959 = vmatprep.subr.mxu0 0.0
    %960 = vmatpush2.xpose.msra.mxu0 0.0
    %961 = vmatprep.subr.mxu0 0.0
    %962 = vmatpush2.xpose.msra.mxu0 0.0
    %963 = vmatprep.subr.mxu0 0.0
    %964 = vmatpush2.xpose.msra.mxu0 0.0
    %965 = vmatprep.subr.mxu0 0.0
    %966 = vmatpush2.xpose.msra.mxu0 0.0
    %967 = vmatprep.subr.mxu0 0.0
    %968 = vmatpush2.xpose.msra.mxu0 0.0
    %969 = vmatprep.subr.mxu0 0.0
    %970 = vmatpush2.xpose.msra.mxu0 0.0
    %971 = vmatprep.subr.mxu0 0.0
    %972 = vmatpush2.xpose.msra.mxu0 0.0
    %973 = vmatprep.subr.mxu0 0.0
    %974 = vmatpush2.xpose.msra.mxu0 0.0
    %975 = vmatprep.subr.mxu0 0.0
    %976 = vmatpush2.xpose.msra.mxu0 0.0
    %977 = vmatprep.mubr.f32.mxu0 0.0
    %978 = vmatmul.mubr.f32.gmra.mxu0 %v909
    %v979 = vpop.f32.mrf.mxu0
    %v980 = vadd.f32 0.0, %v979
    %v981 = vpop.f32.mrf.mxu0
    %982 = vdwg.mxu0
    %983 = vrot.lane.b32.xlu0 %v239, 112
    %v984 = vpop.permute.xlu0 %983
    %985 = vrot.lane.b32.xlu0 %v239, 80
    %v986 = vpop.permute.xlu0 %985
    %v987 = vsel %vm245, %v984, 0
    %v989 = vsel %vm245, %v986, 0
    %991 = vmatprep.subr.mxu0 0.0
    %992 = vmatpush1.xpose.msra.mxu0 0.0
    %993 = vmatprep.subr.mxu0 0.0
    %994 = vmatpush1.xpose.msra.mxu0 0.0
    %995 = vmatprep.subr.mxu0 0.0
    %996 = vmatpush1.xpose.msra.mxu0 0.0
    %997 = vmatprep.subr.mxu0 0.0
    %998 = vmatpush1.xpose.msra.mxu0 0.0
    %999 = vmatprep.subr.mxu0 0.0
    %1000 = vmatpush1.xpose.msra.mxu0 0.0
    %1001 = vmatprep.subr.mxu0 0.0
    %1002 = vmatpush1.xpose.msra.mxu0 0.0
    %1003 = vmatprep.subr.mxu0 0.0
    %1004 = vmatpush1.xpose.msra.mxu0 0.0
    %1005 = vmatprep.subr.mxu0 0.0
    %1006 = vmatpush1.xpose.msra.mxu0 0.0
    %1007 = vmatprep.subr.mxu0 0.0
    %1008 = vmatpush1.xpose.msra.mxu0 0.0
    %1009 = vmatprep.subr.mxu0 0.0
    %1010 = vmatpush1.xpose.msra.mxu0 0.0
    %1011 = vmatprep.subr.mxu0 0.0
    %1012 = vmatpush1.xpose.msra.mxu0 0.0
    %1013 = vmatprep.subr.mxu0 0.0
    %1014 = vmatpush1.xpose.msra.mxu0 0.0
    %1015 = vmatprep.subr.mxu0 0.0
    %1016 = vmatpush1.xpose.msra.mxu0 0.0
    %1017 = vmatprep.subr.mxu0 0.0
    %1018 = vmatpush1.xpose.msra.mxu0 0.0
    %1019 = vmatprep.subr.mxu0 0.0
    %1020 = vmatpush1.xpose.msra.mxu0 0.0
    %1021 = vmatprep.subr.mxu0 0.0
    %1022 = vmatpush1.xpose.msra.mxu0 %v989
    %1023 = vmatprep.subr.mxu0 0.0
    %1024 = vmatpush2.xpose.msra.mxu0 0.0
    %1025 = vmatprep.subr.mxu0 0.0
    %1026 = vmatpush2.xpose.msra.mxu0 0.0
    %1027 = vmatprep.subr.mxu0 0.0
    %1028 = vmatpush2.xpose.msra.mxu0 0.0
    %1029 = vmatprep.subr.mxu0 0.0
    %1030 = vmatpush2.xpose.msra.mxu0 0.0
    %1031 = vmatprep.subr.mxu0 0.0
    %1032 = vmatpush2.xpose.msra.mxu0 0.0
    %1033 = vmatprep.subr.mxu0 0.0
    %1034 = vmatpush2.xpose.msra.mxu0 0.0
    %1035 = vmatprep.subr.mxu0 0.0
    %1036 = vmatpush2.xpose.msra.mxu0 0.0
    %1037 = vmatprep.subr.mxu0 0.0
    %1038 = vmatpush2.xpose.msra.mxu0 0.0
    %1039 = vmatprep.subr.mxu0 0.0
    %1040 = vmatpush2.xpose.msra.mxu0 0.0
    %1041 = vmatprep.subr.mxu0 0.0
    %1042 = vmatpush2.xpose.msra.mxu0 0.0
    %1043 = vmatprep.subr.mxu0 0.0
    %1044 = vmatpush2.xpose.msra.mxu0 0.0
    %1045 = vmatprep.subr.mxu0 0.0
    %1046 = vmatpush2.xpose.msra.mxu0 0.0
    %1047 = vmatprep.subr.mxu0 0.0
    %1048 = vmatpush2.xpose.msra.mxu0 0.0
    %1049 = vmatprep.subr.mxu0 0.0
    %1050 = vmatpush2.xpose.msra.mxu0 0.0
    %1051 = vmatprep.subr.mxu0 0.0
    %1052 = vmatpush2.xpose.msra.mxu0 0.0
    %1053 = vmatprep.subr.mxu0 0.0
    %1054 = vmatpush2.xpose.msra.mxu0 0.0
    %1055 = vmatprep.mubr.f32.mxu0 0.0
    %1056 = vmatmul.mubr.f32.gmra.mxu0 %v987
    %v1057 = vpop.f32.mrf.mxu0
    %v1058 = vadd.f32 0.0, %v1057
    %v1059 = vpop.f32.mrf.mxu0
    %1060 = vdwg.mxu0
    %v1061 = vmul.f32 %v980, 0.35355338
    %v1062 = vmul.f32 %v1058, 0.35355338
    %v1063 = vsel %vm245, %v1061, -inf
    %1064 = vmax.xlane.f32.xlu0 %v1063
    %v1065 = vpop.xlane.xlu0 %1064
    %v1066 = vsel %vm245, %v1062, -inf
    %1067 = vmax.xlane.f32.xlu0 %v1066
    %v1068 = vpop.xlane.xlu0 %1067
    %v1069 = vsub.f32 %v1061, %v1065
    %v1070 = vsub.f32 %v1062, %v1068
    %v1071 = vmul.f32 %v1069, 1.442695
    %v1072 = vpow.pop %v1071
    %v1073 = vmul.f32 %v1070, 1.442695
    %v1074 = vpow.pop %v1073
    %v1075 = vsel %vm245, %v1072, 0.0
    %1076 = vadd.xlane.f32.xlu0 %v1075
    %v1077 = vpop.xlane.xlu0 %1076
    %v1078 = vsel %vm245, %v1074, 0.0
    %1079 = vadd.xlane.f32.xlu0 %v1078
    %v1080 = vpop.xlane.xlu0 %1079
    %v1081 = vrcp.pop %v1077
    %v1082 = vrcp.pop %v1080
    %v1083 = vmul.f32 %v1072, %v1081
    %v1084 = vmul.f32 %v1074, %v1082
    %1085 = vrot.lane.b32.xlu0 %v236, 48
    %v1086 = vpop.permute.xlu0 %1085
    %v1089 = vsel %vm245, %v1083, 0
    %1091 = vmatprep.subr.mxu0 0.0
    %1092 = vmatpush1.msra.mxu0 0.0
    %1093 = vmatprep.subr.mxu0 0.0
    %1094 = vmatpush1.msra.mxu0 0.0
    %1095 = vmatprep.subr.mxu0 0.0
    %1096 = vmatpush1.msra.mxu0 0.0
    %1097 = vmatprep.subr.mxu0 0.0
    %1098 = vmatpush1.msra.mxu0 0.0
    %1099 = vmatprep.subr.mxu0 0.0
    %1100 = vmatpush1.msra.mxu0 0.0
    %1101 = vmatprep.subr.mxu0 0.0
    %1102 = vmatpush1.msra.mxu0 0.0
    %1103 = vmatprep.subr.mxu0 0.0
    %1104 = vmatpush1.msra.mxu0 0.0
    %1105 = vmatprep.subr.mxu0 0.0
    %1106 = vmatpush1.msra.mxu0 0.0
    %1107 = vmatprep.subr.mxu0 0.0
    %1108 = vmatpush1.msra.mxu0 0.0
    %1109 = vmatprep.subr.mxu0 0.0
    %1110 = vmatpush1.msra.mxu0 0.0
    %1111 = vmatprep.subr.mxu0 0.0
    %1112 = vmatpush1.msra.mxu0 0.0
    %1113 = vmatprep.subr.mxu0 0.0
    %1114 = vmatpush1.msra.mxu0 0.0
    %1115 = vmatprep.subr.mxu0 0.0
    %1116 = vmatpush1.msra.mxu0 0.0
    %1117 = vmatprep.subr.mxu0 0.0
    %1118 = vmatpush1.msra.mxu0 0.0
    %1119 = vmatprep.subr.mxu0 0.0
    %1120 = vmatpush1.msra.mxu0 0.0
    %1121 = vmatprep.subr.mxu0 0.0
    %1122 = vmatpush1.msra.mxu0 %v1086
    %1123 = vmatprep.subr.mxu0 0.0
    %1124 = vmatpush2.msra.mxu0 0.0
    %1125 = vmatprep.subr.mxu0 0.0
    %1126 = vmatpush2.msra.mxu0 0.0
    %1127 = vmatprep.subr.mxu0 0.0
    %1128 = vmatpush2.msra.mxu0 0.0
    %1129 = vmatprep.subr.mxu0 0.0
    %1130 = vmatpush2.msra.mxu0 0.0
    %1131 = vmatprep.subr.mxu0 0.0
    %1132 = vmatpush2.msra.mxu0 0.0
    %1133 = vmatprep.subr.mxu0 0.0
    %1134 = vmatpush2.msra.mxu0 0.0
    %1135 = vmatprep.subr.mxu0 0.0
    %1136 = vmatpush2.msra.mxu0 0.0
    %1137 = vmatprep.subr.mxu0 0.0
    %1138 = vmatpush2.msra.mxu0 0.0
    %1139 = vmatprep.subr.mxu0 0.0
    %1140 = vmatpush2.msra.mxu0 0.0
    %1141 = vmatprep.subr.mxu0 0.0
    %1142 = vmatpush2.msra.mxu0 0.0
    %1143 = vmatprep.subr.mxu0 0.0
    %1144 = vmatpush2.msra.mxu0 0.0
    %1145 = vmatprep.subr.mxu0 0.0
    %1146 = vmatpush2.msra.mxu0 0.0
    %1147 = vmatprep.subr.mxu0 0.0
    %1148 = vmatpush2.msra.mxu0 0.0
    %1149 = vmatprep.subr.mxu0 0.0
    %1150 = vmatpush2.msra.mxu0 0.0
    %1151 = vmatprep.subr.mxu0 0.0
    %1152 = vmatpush2.msra.mxu0 0.0
    %1153 = vmatprep.subr.mxu0 0.0
    %1154 = vmatpush2.msra.mxu0 0.0
    %1155 = vmatprep.mubr.f32.mxu0 0.0
    %1156 = vmatmul.mubr.f32.gmra.mxu0 %v1089
    %v1157 = vpop.f32.mrf.mxu0
    %v1158 = vadd.f32 0.0, %v1157
    %v1159 = vpop.f32.mrf.mxu0
    %1160 = vdwg.mxu0
    %1161 = vrot.lane.b32.xlu0 %v239, 48
    %v1162 = vpop.permute.xlu0 %1161
    %v1165 = vsel %vm245, %v1084, 0
    %1167 = vmatprep.subr.mxu0 0.0
    %1168 = vmatpush1.msra.mxu0 0.0
    %1169 = vmatprep.subr.mxu0 0.0
    %1170 = vmatpush1.msra.mxu0 0.0
    %1171 = vmatprep.subr.mxu0 0.0
    %1172 = vmatpush1.msra.mxu0 0.0
    %1173 = vmatprep.subr.mxu0 0.0
    %1174 = vmatpush1.msra.mxu0 0.0
    %1175 = vmatprep.subr.mxu0 0.0
    %1176 = vmatpush1.msra.mxu0 0.0
    %1177 = vmatprep.subr.mxu0 0.0
    %1178 = vmatpush1.msra.mxu0 0.0
    %1179 = vmatprep.subr.mxu0 0.0
    %1180 = vmatpush1.msra.mxu0 0.0
    %1181 = vmatprep.subr.mxu0 0.0
    %1182 = vmatpush1.msra.mxu0 0.0
    %1183 = vmatprep.subr.mxu0 0.0
    %1184 = vmatpush1.msra.mxu0 0.0
    %1185 = vmatprep.subr.mxu0 0.0
    %1186 = vmatpush1.msra.mxu0 0.0
    %1187 = vmatprep.subr.mxu0 0.0
    %1188 = vmatpush1.msra.mxu0 0.0
    %1189 = vmatprep.subr.mxu0 0.0
    %1190 = vmatpush1.msra.mxu0 0.0
    %1191 = vmatprep.subr.mxu0 0.0
    %1192 = vmatpush1.msra.mxu0 0.0
    %1193 = vmatprep.subr.mxu0 0.0
    %1194 = vmatpush1.msra.mxu0 0.0
    %1195 = vmatprep.subr.mxu0 0.0
    %1196 = vmatpush1.msra.mxu0 0.0
    %1197 = vmatprep.subr.mxu0 0.0
    %1198 = vmatpush1.msra.mxu0 %v1162
    %1199 = vmatprep.subr.mxu0 0.0
    %1200 = vmatpush2.msra.mxu0 0.0
    %1201 = vmatprep.subr.mxu0 0.0
    %1202 = vmatpush2.msra.mxu0 0.0
    %1203 = vmatprep.subr.mxu0 0.0
    %1204 = vmatpush2.msra.mxu0 0.0
    %1205 = vmatprep.subr.mxu0 0.0
    %1206 = vmatpush2.msra.mxu0 0.0
    %1207 = vmatprep.subr.mxu0 0.0
    %1208 = vmatpush2.msra.mxu0 0.0
    %1209 = vmatprep.subr.mxu0 0.0
    %1210 = vmatpush2.msra.mxu0 0.0
    %1211 = vmatprep.subr.mxu0 0.0
    %1212 = vmatpush2.msra.mxu0 0.0
    %1213 = vmatprep.subr.mxu0 0.0
    %1214 = vmatpush2.msra.mxu0 0.0
    %1215 = vmatprep.subr.mxu0 0.0
    %1216 = vmatpush2.msra.mxu0 0.0
    %1217 = vmatprep.subr.mxu0 0.0
    %1218 = vmatpush2.msra.mxu0 0.0
    %1219 = vmatprep.subr.mxu0 0.0
    %1220 = vmatpush2.msra.mxu0 0.0
    %1221 = vmatprep.subr.mxu0 0.0
    %1222 = vmatpush2.msra.mxu0 0.0
    %1223 = vmatprep.subr.mxu0 0.0
    %1224 = vmatpush2.msra.mxu0 0.0
    %1225 = vmatprep.subr.mxu0 0.0
    %1226 = vmatpush2.msra.mxu0 0.0
    %1227 = vmatprep.subr.mxu0 0.0
    %1228 = vmatpush2.msra.mxu0 0.0
    %1229 = vmatprep.subr.mxu0 0.0
    %1230 = vmatpush2.msra.mxu0 0.0
    %1231 = vmatprep.mubr.f32.mxu0 0.0
    %1232 = vmatmul.mubr.f32.gmra.mxu0 %v1165
    %v1233 = vpop.f32.mrf.mxu0
    %v1234 = vadd.f32 0.0, %v1233
    %v1235 = vpop.f32.mrf.mxu0
    %1236 = vdwg.mxu0
    %1237 = vrot.lane.b32.xlu0 %v236, 104
    %v1238 = vpop.permute.xlu0 %1237
    %1239 = vrot.lane.b32.xlu0 %v236, 72
    %v1240 = vpop.permute.xlu0 %1239
    %v1241 = vsel %vm245, %v1238, 0
    %v1243 = vsel %vm245, %v1240, 0
    %1245 = vmatprep.subr.mxu0 0.0
    %1246 = vmatpush1.xpose.msra.mxu0 0.0
    %1247 = vmatprep.subr.mxu0 0.0
    %1248 = vmatpush1.xpose.msra.mxu0 0.0
    %1249 = vmatprep.subr.mxu0 0.0
    %1250 = vmatpush1.xpose.msra.mxu0 0.0
    %1251 = vmatprep.subr.mxu0 0.0
    %1252 = vmatpush1.xpose.msra.mxu0 0.0
    %1253 = vmatprep.subr.mxu0 0.0
    %1254 = vmatpush1.xpose.msra.mxu0 0.0
    %1255 = vmatprep.subr.mxu0 0.0
    %1256 = vmatpush1.xpose.msra.mxu0 0.0
    %1257 = vmatprep.subr.mxu0 0.0
    %1258 = vmatpush1.xpose.msra.mxu0 0.0
    %1259 = vmatprep.subr.mxu0 0.0
    %1260 = vmatpush1.xpose.msra.mxu0 0.0
    %1261 = vmatprep.subr.mxu0 0.0
    %1262 = vmatpush1.xpose.msra.mxu0 0.0
    %1263 = vmatprep.subr.mxu0 0.0
    %1264 = vmatpush1.xpose.msra.mxu0 0.0
    %1265 = vmatprep.subr.mxu0 0.0
    %1266 = vmatpush1.xpose.msra.mxu0 0.0
    %1267 = vmatprep.subr.mxu0 0.0
    %1268 = vmatpush1.xpose.msra.mxu0 0.0
    %1269 = vmatprep.subr.mxu0 0.0
    %1270 = vmatpush1.xpose.msra.mxu0 0.0
    %1271 = vmatprep.subr.mxu0 0.0
    %1272 = vmatpush1.xpose.msra.mxu0 0.0
    %1273 = vmatprep.subr.mxu0 0.0
    %1274 = vmatpush1.xpose.msra.mxu0 0.0
    %1275 = vmatprep.subr.mxu0 0.0
    %1276 = vmatpush1.xpose.msra.mxu0 %v1243
    %1277 = vmatprep.subr.mxu0 0.0
    %1278 = vmatpush2.xpose.msra.mxu0 0.0
    %1279 = vmatprep.subr.mxu0 0.0
    %1280 = vmatpush2.xpose.msra.mxu0 0.0
    %1281 = vmatprep.subr.mxu0 0.0
    %1282 = vmatpush2.xpose.msra.mxu0 0.0
    %1283 = vmatprep.subr.mxu0 0.0
    %1284 = vmatpush2.xpose.msra.mxu0 0.0
    %1285 = vmatprep.subr.mxu0 0.0
    %1286 = vmatpush2.xpose.msra.mxu0 0.0
    %1287 = vmatprep.subr.mxu0 0.0
    %1288 = vmatpush2.xpose.msra.mxu0 0.0
    %1289 = vmatprep.subr.mxu0 0.0
    %1290 = vmatpush2.xpose.msra.mxu0 0.0
    %1291 = vmatprep.subr.mxu0 0.0
    %1292 = vmatpush2.xpose.msra.mxu0 0.0
    %1293 = vmatprep.subr.mxu0 0.0
    %1294 = vmatpush2.xpose.msra.mxu0 0.0
    %1295 = vmatprep.subr.mxu0 0.0
    %1296 = vmatpush2.xpose.msra.mxu0 0.0
    %1297 = vmatprep.subr.mxu0 0.0
    %1298 = vmatpush2.xpose.msra.mxu0 0.0
    %1299 = vmatprep.subr.mxu0 0.0
    %1300 = vmatpush2.xpose.msra.mxu0 0.0
    %1301 = vmatprep.subr.mxu0 0.0
    %1302 = vmatpush2.xpose.msra.mxu0 0.0
    %1303 = vmatprep.subr.mxu0 0.0
    %1304 = vmatpush2.xpose.msra.mxu0 0.0
    %1305 = vmatprep.subr.mxu0 0.0
    %1306 = vmatpush2.xpose.msra.mxu0 0.0
    %1307 = vmatprep.subr.mxu0 0.0
    %1308 = vmatpush2.xpose.msra.mxu0 0.0
    %1309 = vmatprep.mubr.f32.mxu0 0.0
    %1310 = vmatmul.mubr.f32.gmra.mxu0 %v1241
    %v1311 = vpop.f32.mrf.mxu0
    %v1312 = vadd.f32 0.0, %v1311
    %v1313 = vpop.f32.mrf.mxu0
    %1314 = vdwg.mxu0
    %1315 = vrot.lane.b32.xlu0 %v239, 104
    %v1316 = vpop.permute.xlu0 %1315
    %1317 = vrot.lane.b32.xlu0 %v239, 72
    %v1318 = vpop.permute.xlu0 %1317
    %v1319 = vsel %vm245, %v1316, 0
    %v1321 = vsel %vm245, %v1318, 0
    %1323 = vmatprep.subr.mxu0 0.0
    %1324 = vmatpush1.xpose.msra.mxu0 0.0
    %1325 = vmatprep.subr.mxu0 0.0
    %1326 = vmatpush1.xpose.msra.mxu0 0.0
    %1327 = vmatprep.subr.mxu0 0.0
    %1328 = vmatpush1.xpose.msra.mxu0 0.0
    %1329 = vmatprep.subr.mxu0 0.0
    %1330 = vmatpush1.xpose.msra.mxu0 0.0
    %1331 = vmatprep.subr.mxu0 0.0
    %1332 = vmatpush1.xpose.msra.mxu0 0.0
    %1333 = vmatprep.subr.mxu0 0.0
    %1334 = vmatpush1.xpose.msra.mxu0 0.0
    %1335 = vmatprep.subr.mxu0 0.0
    %1336 = vmatpush1.xpose.msra.mxu0 0.0
    %1337 = vmatprep.subr.mxu0 0.0
    %1338 = vmatpush1.xpose.msra.mxu0 0.0
    %1339 = vmatprep.subr.mxu0 0.0
    %1340 = vmatpush1.xpose.msra.mxu0 0.0
    %1341 = vmatprep.subr.mxu0 0.0
    %1342 = vmatpush1.xpose.msra.mxu0 0.0
    %1343 = vmatprep.subr.mxu0 0.0
    %1344 = vmatpush1.xpose.msra.mxu0 0.0
    %1345 = vmatprep.subr.mxu0 0.0
    %1346 = vmatpush1.xpose.msra.mxu0 0.0
    %1347 = vmatprep.subr.mxu0 0.0
    %1348 = vmatpush1.xpose.msra.mxu0 0.0
    %1349 = vmatprep.subr.mxu0 0.0
    %1350 = vmatpush1.xpose.msra.mxu0 0.0
    %1351 = vmatprep.subr.mxu0 0.0
    %1352 = vmatpush1.xpose.msra.mxu0 0.0
    %1353 = vmatprep.subr.mxu0 0.0
    %1354 = vmatpush1.xpose.msra.mxu0 %v1321
    %1355 = vmatprep.subr.mxu0 0.0
    %1356 = vmatpush2.xpose.msra.mxu0 0.0
    %1357 = vmatprep.subr.mxu0 0.0
    %1358 = vmatpush2.xpose.msra.mxu0 0.0
    %1359 = vmatprep.subr.mxu0 0.0
    %1360 = vmatpush2.xpose.msra.mxu0 0.0
    %1361 = vmatprep.subr.mxu0 0.0
    %1362 = vmatpush2.xpose.msra.mxu0 0.0
    %1363 = vmatprep.subr.mxu0 0.0
    %1364 = vmatpush2.xpose.msra.mxu0 0.0
    %1365 = vmatprep.subr.mxu0 0.0
    %1366 = vmatpush2.xpose.msra.mxu0 0.0
    %1367 = vmatprep.subr.mxu0 0.0
    %1368 = vmatpush2.xpose.msra.mxu0 0.0
    %1369 = vmatprep.subr.mxu0 0.0
    %1370 = vmatpush2.xpose.msra.mxu0 0.0
    %1371 = vmatprep.subr.mxu0 0.0
    %1372 = vmatpush2.xpose.msra.mxu0 0.0
    %1373 = vmatprep.subr.mxu0 0.0
    %1374 = vmatpush2.xpose.msra.mxu0 0.0
    %1375 = vmatprep.subr.mxu0 0.0
    %1376 = vmatpush2.xpose.msra.mxu0 0.0
    %1377 = vmatprep.subr.mxu0 0.0
    %1378 = vmatpush2.xpose.msra.mxu0 0.0
    %1379 = vmatprep.subr.mxu0 0.0
    %1380 = vmatpush2.xpose.msra.mxu0 0.0
    %1381 = vmatprep.subr.mxu0 0.0
    %1382 = vmatpush2.xpose.msra.mxu0 0.0
    %1383 = vmatprep.subr.mxu0 0.0
    %1384 = vmatpush2.xpose.msra.mxu0 0.0
    %1385 = vmatprep.subr.mxu0 0.0
    %1386 = vmatpush2.xpose.msra.mxu0 0.0
    %1387 = vmatprep.mubr.f32.mxu0 0.0
    %1388 = vmatmul.mubr.f32.gmra.mxu0 %v1319
    %v1389 = vpop.f32.mrf.mxu0
    %v1390 = vadd.f32 0.0, %v1389
    %v1391 = vpop.f32.mrf.mxu0
    %1392 = vdwg.mxu0
    %v1393 = vmul.f32 %v1312, 0.35355338
    %v1394 = vmul.f32 %v1390, 0.35355338
    %v1395 = vsel %vm245, %v1393, -inf
    %1396 = vmax.xlane.f32.xlu0 %v1395
    %v1397 = vpop.xlane.xlu0 %1396
    %v1398 = vsel %vm245, %v1394, -inf
    %1399 = vmax.xlane.f32.xlu0 %v1398
    %v1400 = vpop.xlane.xlu0 %1399
    %v1401 = vsub.f32 %v1393, %v1397
    %v1402 = vsub.f32 %v1394, %v1400
    %v1403 = vmul.f32 %v1401, 1.442695
    %v1404 = vpow.pop %v1403
    %v1405 = vmul.f32 %v1402, 1.442695
    %v1406 = vpow.pop %v1405
    %v1407 = vsel %vm245, %v1404, 0.0
    %1408 = vadd.xlane.f32.xlu0 %v1407
    %v1409 = vpop.xlane.xlu0 %1408
    %v1410 = vsel %vm245, %v1406, 0.0
    %1411 = vadd.xlane.f32.xlu0 %v1410
    %v1412 = vpop.xlane.xlu0 %1411
    %v1413 = vrcp.pop %v1409
    %v1414 = vrcp.pop %v1412
    %v1415 = vmul.f32 %v1404, %v1413
    %v1416 = vmul.f32 %v1406, %v1414
    %1417 = vrot.lane.b32.xlu0 %v236, 40
    %v1418 = vpop.permute.xlu0 %1417
    %v1421 = vsel %vm245, %v1415, 0
    %1423 = vmatprep.subr.mxu0 0.0
    %1424 = vmatpush1.msra.mxu0 0.0
    %1425 = vmatprep.subr.mxu0 0.0
    %1426 = vmatpush1.msra.mxu0 0.0
    %1427 = vmatprep.subr.mxu0 0.0
    %1428 = vmatpush1.msra.mxu0 0.0
    %1429 = vmatprep.subr.mxu0 0.0
    %1430 = vmatpush1.msra.mxu0 0.0
    %1431 = vmatprep.subr.mxu0 0.0
    %1432 = vmatpush1.msra.mxu0 0.0
    %1433 = vmatprep.subr.mxu0 0.0
    %1434 = vmatpush1.msra.mxu0 0.0
    %1435 = vmatprep.subr.mxu0 0.0
    %1436 = vmatpush1.msra.mxu0 0.0
    %1437 = vmatprep.subr.mxu0 0.0
    %1438 = vmatpush1.msra.mxu0 0.0
    %1439 = vmatprep.subr.mxu0 0.0
    %1440 = vmatpush1.msra.mxu0 0.0
    %1441 = vmatprep.subr.mxu0 0.0
    %1442 = vmatpush1.msra.mxu0 0.0
    %1443 = vmatprep.subr.mxu0 0.0
    %1444 = vmatpush1.msra.mxu0 0.0
    %1445 = vmatprep.subr.mxu0 0.0
    %1446 = vmatpush1.msra.mxu0 0.0
    %1447 = vmatprep.subr.mxu0 0.0
    %1448 = vmatpush1.msra.mxu0 0.0
    %1449 = vmatprep.subr.mxu0 0.0
    %1450 = vmatpush1.msra.mxu0 0.0
    %1451 = vmatprep.subr.mxu0 0.0
    %1452 = vmatpush1.msra.mxu0 0.0
    %1453 = vmatprep.subr.mxu0 0.0
    %1454 = vmatpush1.msra.mxu0 %v1418
    %1455 = vmatprep.subr.mxu0 0.0
    %1456 = vmatpush2.msra.mxu0 0.0
    %1457 = vmatprep.subr.mxu0 0.0
    %1458 = vmatpush2.msra.mxu0 0.0
    %1459 = vmatprep.subr.mxu0 0.0
    %1460 = vmatpush2.msra.mxu0 0.0
    %1461 = vmatprep.subr.mxu0 0.0
    %1462 = vmatpush2.msra.mxu0 0.0
    %1463 = vmatprep.subr.mxu0 0.0
    %1464 = vmatpush2.msra.mxu0 0.0
    %1465 = vmatprep.subr.mxu0 0.0
    %1466 = vmatpush2.msra.mxu0 0.0
    %1467 = vmatprep.subr.mxu0 0.0
    %1468 = vmatpush2.msra.mxu0 0.0
    %1469 = vmatprep.subr.mxu0 0.0
    %1470 = vmatpush2.msra.mxu0 0.0
    %1471 = vmatprep.subr.mxu0 0.0
    %1472 = vmatpush2.msra.mxu0 0.0
    %1473 = vmatprep.subr.mxu0 0.0
    %1474 = vmatpush2.msra.mxu0 0.0
    %1475 = vmatprep.subr.mxu0 0.0
    %1476 = vmatpush2.msra.mxu0 0.0
    %1477 = vmatprep.subr.mxu0 0.0
    %1478 = vmatpush2.msra.mxu0 0.0
    %1479 = vmatprep.subr.mxu0 0.0
    %1480 = vmatpush2.msra.mxu0 0.0
    %1481 = vmatprep.subr.mxu0 0.0
    %1482 = vmatpush2.msra.mxu0 0.0
    %1483 = vmatprep.subr.mxu0 0.0
    %1484 = vmatpush2.msra.mxu0 0.0
    %1485 = vmatprep.subr.mxu0 0.0
    %1486 = vmatpush2.msra.mxu0 0.0
    %1487 = vmatprep.mubr.f32.mxu0 0.0
    %1488 = vmatmul.mubr.f32.gmra.mxu0 %v1421
    %v1489 = vpop.f32.mrf.mxu0
    %v1490 = vadd.f32 0.0, %v1489
    %v1491 = vpop.f32.mrf.mxu0
    %1492 = vdwg.mxu0
    %1493 = vrot.lane.b32.xlu0 %v239, 40
    %v1494 = vpop.permute.xlu0 %1493
    %v1497 = vsel %vm245, %v1416, 0
    %1499 = vmatprep.subr.mxu0 0.0
    %1500 = vmatpush1.msra.mxu0 0.0
    %1501 = vmatprep.subr.mxu0 0.0
    %1502 = vmatpush1.msra.mxu0 0.0
    %1503 = vmatprep.subr.mxu0 0.0
    %1504 = vmatpush1.msra.mxu0 0.0
    %1505 = vmatprep.subr.mxu0 0.0
    %1506 = vmatpush1.msra.mxu0 0.0
    %1507 = vmatprep.subr.mxu0 0.0
    %1508 = vmatpush1.msra.mxu0 0.0
    %1509 = vmatprep.subr.mxu0 0.0
    %1510 = vmatpush1.msra.mxu0 0.0
    %1511 = vmatprep.subr.mxu0 0.0
    %1512 = vmatpush1.msra.mxu0 0.0
    %1513 = vmatprep.subr.mxu0 0.0
    %1514 = vmatpush1.msra.mxu0 0.0
    %1515 = vmatprep.subr.mxu0 0.0
    %1516 = vmatpush1.msra.mxu0 0.0
    %1517 = vmatprep.subr.mxu0 0.0
    %1518 = vmatpush1.msra.mxu0 0.0
    %1519 = vmatprep.subr.mxu0 0.0
    %1520 = vmatpush1.msra.mxu0 0.0
    %1521 = vmatprep.subr.mxu0 0.0
    %1522 = vmatpush1.msra.mxu0 0.0
    %1523 = vmatprep.subr.mxu0 0.0
    %1524 = vmatpush1.msra.mxu0 0.0
    %1525 = vmatprep.subr.mxu0 0.0
    %1526 = vmatpush1.msra.mxu0 0.0
    %1527 = vmatprep.subr.mxu0 0.0
    %1528 = vmatpush1.msra.mxu0 0.0
    %1529 = vmatprep.subr.mxu0 0.0
    %1530 = vmatpush1.msra.mxu0 %v1494
    %1531 = vmatprep.subr.mxu0 0.0
    %1532 = vmatpush2.msra.mxu0 0.0
    %1533 = vmatprep.subr.mxu0 0.0
    %1534 = vmatpush2.msra.mxu0 0.0
    %1535 = vmatprep.subr.mxu0 0.0
    %1536 = vmatpush2.msra.mxu0 0.0
    %1537 = vmatprep.subr.mxu0 0.0
    %1538 = vmatpush2.msra.mxu0 0.0
    %1539 = vmatprep.subr.mxu0 0.0
    %1540 = vmatpush2.msra.mxu0 0.0
    %1541 = vmatprep.subr.mxu0 0.0
    %1542 = vmatpush2.msra.mxu0 0.0
    %1543 = vmatprep.subr.mxu0 0.0
    %1544 = vmatpush2.msra.mxu0 0.0
    %1545 = vmatprep.subr.mxu0 0.0
    %1546 = vmatpush2.msra.mxu0 0.0
    %1547 = vmatprep.subr.mxu0 0.0
    %1548 = vmatpush2.msra.mxu0 0.0
    %1549 = vmatprep.subr.mxu0 0.0
    %1550 = vmatpush2.msra.mxu0 0.0
    %1551 = vmatprep.subr.mxu0 0.0
    %1552 = vmatpush2.msra.mxu0 0.0
    %1553 = vmatprep.subr.mxu0 0.0
    %1554 = vmatpush2.msra.mxu0 0.0
    %1555 = vmatprep.subr.mxu0 0.0
    %1556 = vmatpush2.msra.mxu0 0.0
    %1557 = vmatprep.subr.mxu0 0.0
    %1558 = vmatpush2.msra.mxu0 0.0
    %1559 = vmatprep.subr.mxu0 0.0
    %1560 = vmatpush2.msra.mxu0 0.0
    %1561 = vmatprep.subr.mxu0 0.0
    %1562 = vmatpush2.msra.mxu0 0.0
    %1563 = vmatprep.mubr.f32.mxu0 0.0
    %1564 = vmatmul.mubr.f32.gmra.mxu0 %v1497
    %v1565 = vpop.f32.mrf.mxu0
    %v1566 = vadd.f32 0.0, %v1565
    %v1567 = vpop.f32.mrf.mxu0
    %1568 = vdwg.mxu0
    %1571 = vrot.lane.b32.xlu0 %v826, 8
    %v1572 = vpop.permute.xlu0 %1571
    %1573 = vrot.lane.b32.xlu0 %v902, 8
    %v1574 = vpop.permute.xlu0 %1573
    %1579 = vrot.lane.b32.xlu0 %v1158, 16
    %v1580 = vpop.permute.xlu0 %1579
    %1581 = vrot.lane.b32.xlu0 %v1234, 16
    %v1582 = vpop.permute.xlu0 %1581
    %1587 = vrot.lane.b32.xlu0 %v1490, 24
    %v1588 = vpop.permute.xlu0 %1587
    %1589 = vrot.lane.b32.xlu0 %v1566, 24
    %v1590 = vpop.permute.xlu0 %1589
    %v1593 = vsel %vm245, %v494, %v1572
    %v1594 = vsel %vm245, %v570, %v1574
    %vm1595 = vcmask 130048
    %v1596 = vsel %vm1595, %v1593, %v1580
    %v1597 = vsel %vm1595, %v1594, %v1582
    %vm1598 = vcmask 195584
    %v1599 = vsel %vm1598, %v1596, %v1588
    %v1600 = vsel %vm1598, %v1597, %v1590
    %v1601 = vpack.c.bf16 %v1600, %v1599
    %v1602 = vld [vmem:[%s5] sm:$0xf]
    %v1603 = vld [vmem:[%s5 + $0x4] sm:$0xf]
    %v1604 = vld [vmem:[%s5 + $0x8] sm:$0xf]
    %v1605 = vld [vmem:[%s5 + $0xc] sm:$0xf]
    %v1606 = vld [vmem:[%s6] sm:$0x1]
    %v1608 = vlaneseq
    %v1609 = vshrl.u32 %v1608, 7
    %v1610 = vsub.s32 0, %v1609
    %v1611 = vrot.slane %v1606, %v1610
    %v1617 = vunpack.c.l.b16 %v1602
    %v1618 = vunpack.c.l.b16 %v1603
    %v1619 = vunpack.c.l.b16 %v1604
    %v1620 = vunpack.c.l.b16 %v1605
    %v1621 = vpack.c.b16 %v1618, %v1617
    %v1622 = vpack.c.b16 %v1620, %v1619
    %v1626 = vsel %vm197, %v1601, 0
    %1628 = vmatprep.subr.bf16.mxu0 0
    %1629 = vmatpush1.bf16.msra.mxu0 0
    %1630 = vmatprep.subr.bf16.mxu0 0
    %1631 = vmatpush1.bf16.msra.mxu0 0
    %1632 = vmatprep.subr.bf16.mxu0 0
    %1633 = vmatpush1.bf16.msra.mxu0 0
    %1634 = vmatprep.subr.bf16.mxu0 0
    %1635 = vmatpush1.bf16.msra.mxu0 0
    %1636 = vmatprep.subr.bf16.mxu0 0
    %1637 = vmatpush1.bf16.msra.mxu0 0
    %1638 = vmatprep.subr.bf16.mxu0 0
    %1639 = vmatpush1.bf16.msra.mxu0 0
    %1640 = vmatprep.subr.bf16.mxu0 0
    %1641 = vmatpush1.bf16.msra.mxu0 %v1622
    %1642 = vmatprep.subr.bf16.mxu0 0
    %1643 = vmatpush1.bf16.msra.mxu0 %v1621
    %1644 = vmatprep.subr.bf16.mxu0 0
    %1645 = vmatpush2.bf16.msra.mxu0 0
    %1646 = vmatprep.subr.bf16.mxu0 0
    %1647 = vmatpush2.bf16.msra.mxu0 0
    %1648 = vmatprep.subr.bf16.mxu0 0
    %1649 = vmatpush2.bf16.msra.mxu0 0
    %1650 = vmatprep.subr.bf16.mxu0 0
    %1651 = vmatpush2.bf16.msra.mxu0 0
    %1652 = vmatprep.subr.bf16.mxu0 0
    %1653 = vmatpush2.bf16.msra.mxu0 0
    %1654 = vmatprep.subr.bf16.mxu0 0
    %1655 = vmatpush2.bf16.msra.mxu0 0
    %1656 = vmatprep.subr.bf16.mxu0 0
    %1657 = vmatpush2.bf16.msra.mxu0 0
    %1658 = vmatprep.subr.bf16.mxu0 0
    %1659 = vmatpush2.bf16.msra.mxu0 0
    %1660 = vmatprep.mubr.bf16.mxu0 0
    %1661 = vmatmul.mubr.bf16.gmra.mxu0 %v1626
    %v1662 = vpop.f32.mrf.mxu0
    %v1663 = vadd.f32 %v1611, %v1662
    %v1664 = vpop.f32.mrf.mxu0
    %v1665 = vpop.f32.mrf.mxu0
    %v1666 = vadd.f32 %v1611, %v1665
    %v1667 = vpop.f32.mrf.mxu0
    %1668 = vdwg.mxu0
    %v1669 = vadd.f32 %v171, %v1663
    %v1670 = vadd.f32 %v172, %v1666
    %v1671 = vld [vmem:[%s7] sm:$0x1]
    %v1672 = vld [vmem:[%s8] sm:$0x1]
    %v1673 = vsel %vm197, %v1669, 0.0
    %1674 = vadd.xlane.f32.xlu0 %v1673
    %v1675 = vpop.xlane.xlu0 %1674
    %v1676 = vsel %vm197, %v1670, 0.0
    %1677 = vadd.xlane.f32.xlu0 %v1676
    %v1678 = vpop.xlane.xlu0 %1677
    %v1679 = vrcp.pop 32.0
    %v1680 = vmul.f32 %v1675, %v1679
    %v1681 = vmul.f32 %v1678, %v1679
    %v1682 = vsub.f32 %v1669, %v1680
    %v1683 = vsub.f32 %v1670, %v1681
    %v1684 = vmul.f32 %v1682, %v1682
    %v1685 = vmul.f32 %v1683, %v1683
    %v1686 = vsel %vm197, %v1684, 0.0
    %1687 = vadd.xlane.f32.xlu0 %v1686
    %v1688 = vpop.xlane.xlu0 %1687
    %v1689 = vsel %vm197, %v1685, 0.0
    %1690 = vadd.xlane.f32.xlu0 %v1689
    %v1691 = vpop.xlane.xlu0 %1690
    %v1692 = vmul.f32 %v1688, %v1679
    %v1693 = vmul.f32 %v1691, %v1679
    %v1694 = vadd.f32 %v1692, 1e-05
    %v1695 = vadd.f32 %v1693, 1e-05
    %v1696 = vrsqrt.pop %v1694
    %v1697 = vrsqrt.pop %v1695
    %v1698 = vmul.f32 %v1682, %v1696
    %v1699 = vmul.f32 %v1683, %v1697
    %v1701 = vlaneseq
    %v1702 = vshrl.u32 %v1701, 7
    %v1703 = vsub.s32 0, %v1702
    %v1704 = vrot.slane %v1671, %v1703
    %v1706 = vmul.f32 %v1698, %v1704
    %v1707 = vmul.f32 %v1699, %v1704
    %v1709 = vlaneseq
    %v1710 = vshrl.u32 %v1709, 7
    %v1711 = vsub.s32 0, %v1710
    %v1712 = vrot.slane %v1672, %v1711
    %v1714 = vadd.f32 %v1706, %v1712
    %v1715 = vadd.f32 %v1707, %v1712
    %v1716 = vpack.c.bf16 %v1715, %v1714
    %v1717 = vld [vmem:[%s9] sm:$0xf]
    %v1718 = vld [vmem:[%s9 + $0x4] sm:$0xf]
    %v1719 = vld [vmem:[%s9 + $0x8] sm:$0xf]
    %v1720 = vld [vmem:[%s9 + $0xc] sm:$0xf]
    %v1721 = vld [vmem:[%s10] sm:$0x1]
    %v1723 = vlaneseq
    %v1724 = vshrl.u32 %v1723, 7
    %v1725 = vsub.s32 0, %v1724
    %v1726 = vrot.slane %v1721, %v1725
    %v1732 = vunpack.c.l.b16 %v1717
    %v1733 = vunpack.c.l.b16 %v1718
    %v1734 = vunpack.c.l.b16 %v1719
    %v1735 = vunpack.c.l.b16 %v1720
    %v1736 = vpack.c.b16 %v1733, %v1732
    %v1737 = vpack.c.b16 %v1735, %v1734
    %v1741 = vsel %vm197, %v1716, 0
    %1743 = vmatprep.subr.bf16.mxu0 0
    %1744 = vmatpush1.bf16.msra.mxu0 0
    %1745 = vmatprep.subr.bf16.mxu0 0
    %1746 = vmatpush1.bf16.msra.mxu0 0
    %1747 = vmatprep.subr.bf16.mxu0 0
    %1748 = vmatpush1.bf16.msra.mxu0 0
    %1749 = vmatprep.subr.bf16.mxu0 0
    %1750 = vmatpush1.bf16.msra.mxu0 0
    %1751 = vmatprep.subr.bf16.mxu0 0
    %1752 = vmatpush1.bf16.msra.mxu0 0
    %1753 = vmatprep.subr.bf16.mxu0 0
    %1754 = vmatpush1.bf16.msra.mxu0 0
    %1755 = vmatprep.subr.bf16.mxu0 0
    %1756 = vmatpush1.bf16.msra.mxu0 %v1737
    %1757 = vmatprep.subr.bf16.mxu0 0
    %1758 = vmatpush1.bf16.msra.mxu0 %v1736
    %1759 = vmatprep.subr.bf16.mxu0 0
    %1760 = vmatpush2.bf16.msra.mxu0 0
    %1761 = vmatprep.subr.bf16.mxu0 0
    %1762 = vmatpush2.bf16.msra.mxu0 0
    %1763 = vmatprep.subr.bf16.mxu0 0
    %1764 = vmatpush2.bf16.msra.mxu0 0
    %1765 = vmatprep.subr.bf16.mxu0 0
    %1766 = vmatpush2.bf16.msra.mxu0 0
    %1767 = vmatprep.subr.bf16.mxu0 0
    %1768 = vmatpush2.bf16.msra.mxu0 0
    %1769 = vmatprep.subr.bf16.mxu0 0
    %1770 = vmatpush2.bf16.msra.mxu0 0
    %1771 = vmatprep.subr.bf16.mxu0 0
    %1772 = vmatpush2.bf16.msra.mxu0 0
    %1773 = vmatprep.subr.bf16.mxu0 0
    %1774 = vmatpush2.bf16.msra.mxu0 0
    %1775 = vmatprep.mubr.bf16.mxu0 0
    %1776 = vmatmul.mubr.bf16.gmra.mxu0 %v1741
    %v1777 = vpop.f32.mrf.mxu0
    %v1778 = vadd.f32 %v1726, %v1777
    %v1779 = vpop.f32.mrf.mxu0
    %v1780 = vpop.f32.mrf.mxu0
    %v1781 = vadd.f32 %v1726, %v1780
    %v1782 = vpop.f32.mrf.mxu0
    %1783 = vdwg.mxu0
    %v1784 = vmul.f32 %v1778, 0.5
    %v1785 = vmul.f32 %v1781, 0.5
    %v1786 = vmul.f32 %v1778, 0.044715
    %v1787 = vmul.f32 %v1781, 0.044715
    %v1788 = vmul.f32 %v1786, %v1778
    %v1789 = vmul.f32 %v1787, %v1781
    %v1790 = vmul.f32 %v1788, %v1778
    %v1791 = vmul.f32 %v1789, %v1781
    %v1792 = vadd.f32 %v1778, %v1790
    %v1793 = vadd.f32 %v1781, %v1791
    %v1794 = vmul.f32 %v1792, 0.7978846
    %v1795 = vmul.f32 %v1793, 0.7978846
    %v1796 = vtanh.pop %v1794
    %v1797 = vtanh.pop %v1795
    %v1798 = vadd.f32 %v1796, 1.0
    %v1799 = vadd.f32 %v1797, 1.0
    %v1800 = vmul.f32 %v1784, %v1798
    %v1801 = vmul.f32 %v1785, %v1799
    %v1802 = vpack.c.bf16 %v1801, %v1800
    %v1803 = vld [vmem:[%s11] sm:$0xf]
    %v1804 = vld [vmem:[%s11 + $0x4] sm:$0xf]
    %v1805 = vld [vmem:[%s11 + $0x8] sm:$0xf]
    %v1806 = vld [vmem:[%s11 + $0xc] sm:$0xf]
    %v1807 = vld [vmem:[%s11 + $0x10] sm:$0xf]
    %v1808 = vld [vmem:[%s11 + $0x14] sm:$0xf]
    %v1809 = vld [vmem:[%s11 + $0x18] sm:$0xf]
    %v1810 = vld [vmem:[%s11 + $0x1c] sm:$0xf]
    %v1811 = vld [vmem:[%s12] sm:$0x1]
    %v1813 = vlaneseq
    %v1814 = vshrl.u32 %v1813, 7
    %v1815 = vsub.s32 0, %v1814
    %v1816 = vrot.slane %v1811, %v1815
    %v1826 = vunpack.c.l.b16 %v1803
    %v1827 = vunpack.c.l.b16 %v1804
    %v1828 = vunpack.c.l.b16 %v1805
    %v1829 = vunpack.c.l.b16 %v1806
    %v1830 = vunpack.c.l.b16 %v1807
    %v1831 = vunpack.c.l.b16 %v1808
    %v1832 = vunpack.c.l.b16 %v1809
    %v1833 = vunpack.c.l.b16 %v1810
    %v1834 = vpack.c.b16 %v1827, %v1826
    %v1835 = vpack.c.b16 %v1829, %v1828
    %v1836 = vpack.c.b16 %v1831, %v1830
    %v1837 = vpack.c.b16 %v1833, %v1832
    %v1843 = vsel %vm88, %v1802, 0
    %1845 = vmatprep.subr.bf16.mxu0 0
    %1846 = vmatpush1.bf16.msra.mxu0 0
    %1847 = vmatprep.subr.bf16.mxu0 0
    %1848 = vmatpush1.bf16.msra.mxu0 0
    %1849 = vmatprep.subr.bf16.mxu0 0
    %1850 = vmatpush1.bf16.msra.mxu0 0
    %1851 = vmatprep.subr.bf16.mxu0 0
    %1852 = vmatpush1.bf16.msra.mxu0 0
    %1853 = vmatprep.subr.bf16.mxu0 0
    %1854 = vmatpush1.bf16.msra.mxu0 %v1837
    %1855 = vmatprep.subr.bf16.mxu0 0
    %1856 = vmatpush1.bf16.msra.mxu0 %v1836
    %1857 = vmatprep.subr.bf16.mxu0 0
    %1858 = vmatpush1.bf16.msra.mxu0 %v1835
    %1859 = vmatprep.subr.bf16.mxu0 0
    %1860 = vmatpush1.bf16.msra.mxu0 %v1834
    %1861 = vmatprep.subr.bf16.mxu0 0
    %1862 = vmatpush2.bf16.msra.mxu0 0
    %1863 = vmatprep.subr.bf16.mxu0 0
    %1864 = vmatpush2.bf16.msra.mxu0 0
    %1865 = vmatprep.subr.bf16.mxu0 0
    %1866 = vmatpush2.bf16.msra.mxu0 0
    %1867 = vmatprep.subr.bf16.mxu0 0
    %1868 = vmatpush2.bf16.msra.mxu0 0
    %1869 = vmatprep.subr.bf16.mxu0 0
    %1870 = vmatpush2.bf16.msra.mxu0 0
    %1871 = vmatprep.subr.bf16.mxu0 0
    %1872 = vmatpush2.bf16.msra.mxu0 0
    %1873 = vmatprep.subr.bf16.mxu0 0
    %1874 = vmatpush2.bf16.msra.mxu0 0
    %1875 = vmatprep.subr.bf16.mxu0 0
    %1876 = vmatpush2.bf16.msra.mxu0 0
    %1877 = vmatprep.mubr.bf16.mxu0 0
    %1878 = vmatmul.mubr.bf16.gmra.mxu0 %v1843
    %v1879 = vpop.f32.mrf.mxu0
    %v1880 = vadd.f32 %v1816, %v1879
    %v1881 = vpop.f32.mrf.mxu0
    %v1882 = vpop.f32.mrf.mxu0
    %v1883 = vadd.f32 %v1816, %v1882
    %v1884 = vpop.f32.mrf.mxu0
    %1885 = vdwg.mxu0
    %v1886 = vadd.f32 %v1714, %v1880
    %v1887 = vadd.f32 %v1715, %v1883
    %v1888 = vld [vmem:[%s13] sm:$0x1]
    %v1889 = vld [vmem:[%s14] sm:$0x1]
    %v1890 = vsel %vm197, %v1886, 0.0
    %1891 = vadd.xlane.f32.xlu0 %v1890
    %v1892 = vpop.xlane.xlu0 %1891
    %v1893 = vsel %vm197, %v1887, 0.0
    %1894 = vadd.xlane.f32.xlu0 %v1893
    %v1895 = vpop.xlane.xlu0 %1894
    %v1896 = vmul.f32 %v1892, %v1679
    %v1897 = vmul.f32 %v1895, %v1679
    %v1898 = vsub.f32 %v1886, %v1896
    %v1899 = vsub.f32 %v1887, %v1897
    %v1900 = vmul.f32 %v1898, %v1898
    %v1901 = vmul.f32 %v1899, %v1899
    %v1902 = vsel %vm197, %v1900, 0.0
    %1903 = vadd.xlane.f32.xlu0 %v1902
    %v1904 = vpop.xlane.xlu0 %1903
    %v1905 = vsel %vm197, %v1901, 0.0
    %1906 = vadd.xlane.f32.xlu0 %v1905
    %v1907 = vpop.xlane.xlu0 %1906
    %v1908 = vmul.f32 %v1904, %v1679
    %v1909 = vmul.f32 %v1907, %v1679
    %v1910 = vadd.f32 %v1908, 1e-05
    %v1911 = vadd.f32 %v1909, 1e-05
    %v1912 = vrsqrt.pop %v1910
    %v1913 = vrsqrt.pop %v1911
    %v1914 = vmul.f32 %v1898, %v1912
    %v1915 = vmul.f32 %v1899, %v1913
    %v1917 = vlaneseq
    %v1918 = vshrl.u32 %v1917, 7
    %v1919 = vsub.s32 0, %v1918
    %v1920 = vrot.slane %v1888, %v1919
    %v1922 = vmul.f32 %v1914, %v1920
    %v1923 = vmul.f32 %v1915, %v1920
    %v1925 = vlaneseq
    %v1926 = vshrl.u32 %v1925, 7
    %v1927 = vsub.s32 0, %v1926
    %v1928 = vrot.slane %v1889, %v1927
    %v1930 = vadd.f32 %v1922, %v1928
    %v1931 = vadd.f32 %v1923, %v1928
    %v1932 = vpack.c.bf16 %v1931, %v1930
    %s1933 = scalar_lea.vmem %s3, 16
    %v1934 = vld [vmem:[%s1933] sm:$0xf]
    %v1935 = vld [vmem:[%s1933 + $0x4] sm:$0xf]
    %v1936 = vld [vmem:[%s1933 + $0x8] sm:$0xf]
    %v1937 = vld [vmem:[%s1933 + $0xc] sm:$0xf]
    %s1938 = scalar_lea.vmem %s4, 1
    %v1939 = vld [vmem:[%s1938] sm:$0x1]
    %v1941 = vlaneseq
    %v1942 = vshrl.u32 %v1941, 7
    %v1943 = vsub.s32 0, %v1942
    %v1944 = vrot.slane %v1939, %v1943
    %v1950 = vunpack.c.l.b16 %v1934
    %v1951 = vunpack.c.l.b16 %v1935
    %v1952 = vunpack.c.l.b16 %v1936
    %v1953 = vunpack.c.l.b16 %v1937
    %v1954 = vpack.c.b16 %v1951, %v1950
    %v1955 = vpack.c.b16 %v1953, %v1952
    %v1959 = vsel %vm197, %v1932, 0
    %1961 = vmatprep.subr.bf16.mxu0 0
    %1962 = vmatpush1.bf16.msra.mxu0 0
    %1963 = vmatprep.subr.bf16.mxu0 0
    %1964 = vmatpush1.bf16.msra.mxu0 0
    %1965 = vmatprep.subr.bf16.mxu0 0
    %1966 = vmatpush1.bf16.msra.mxu0 0
    %1967 = vmatprep.subr.bf16.mxu0 0
    %1968 = vmatpush1.bf16.msra.mxu0 0
    %1969 = vmatprep.subr.bf16.mxu0 0
    %1970 = vmatpush1.bf16.msra.mxu0 0
    %1971 = vmatprep.subr.bf16.mxu0 0
    %1972 = vmatpush1.bf16.msra.mxu0 0
    %1973 = vmatprep.subr.bf16.mxu0 0
    %1974 = vmatpush1.bf16.msra.mxu0 %v1955
    %1975 = vmatprep.subr.bf16.mxu0 0
    %1976 = vmatpush1.bf16.msra.mxu0 %v1954
    %1977 = vmatprep.subr.bf16.mxu0 0
    %1978 = vmatpush2.bf16.msra.mxu0 0
    %1979 = vmatprep.subr.bf16.mxu0 0
    %1980 = vmatpush2.bf16.msra.mxu0 0
    %1981 = vmatprep.subr.bf16.mxu0 0
    %1982 = vmatpush2.bf16.msra.mxu0 0
    %1983 = vmatprep.subr.bf16.mxu0 0
    %1984 = vmatpush2.bf16.msra.mxu0 0
    %1985 = vmatprep.subr.bf16.mxu0 0
    %1986 = vmatpush2.bf16.msra.mxu0 0
    %1987 = vmatprep.subr.bf16.mxu0 0
    %1988 = vmatpush2.bf16.msra.mxu0 0
    %1989 = vmatprep.subr.bf16.mxu0 0
    %1990 = vmatpush2.bf16.msra.mxu0 0
    %1991 = vmatprep.subr.bf16.mxu0 0
    %1992 = vmatpush2.bf16.msra.mxu0 0
    %1993 = vmatprep.mubr.bf16.mxu0 0
    %1994 = vmatmul.mubr.bf16.gmra.mxu0 %v1959
    %v1995 = vpop.f32.mrf.mxu0
    %v1996 = vadd.f32 %v1944, %v1995
    %v1997 = vpop.f32.mrf.mxu0
    %v1998 = vpop.f32.mrf.mxu0
    %v1999 = vadd.f32 %v1944, %v1998
    %v2000 = vpop.f32.mrf.mxu0
    %2001 = vdwg.mxu0
    %2003 = vrot.lane.b32.xlu0 %v1996, 96
    %v2004 = vpop.permute.xlu0 %2003
    %v2005 = vsel %vm245, %v1996, 0
    %v2007 = vsel %vm245, %v2004, 0
    %2009 = vmatprep.subr.mxu0 0.0
    %2010 = vmatpush1.xpose.msra.mxu0 0.0
    %2011 = vmatprep.subr.mxu0 0.0
    %2012 = vmatpush1.xpose.msra.mxu0 0.0
    %2013 = vmatprep.subr.mxu0 0.0
    %2014 = vmatpush1.xpose.msra.mxu0 0.0
    %2015 = vmatprep.subr.mxu0 0.0
    %2016 = vmatpush1.xpose.msra.mxu0 0.0
    %2017 = vmatprep.subr.mxu0 0.0
    %2018 = vmatpush1.xpose.msra.mxu0 0.0
    %2019 = vmatprep.subr.mxu0 0.0
    %2020 = vmatpush1.xpose.msra.mxu0 0.0
    %2021 = vmatprep.subr.mxu0 0.0
    %2022 = vmatpush1.xpose.msra.mxu0 0.0
    %2023 = vmatprep.subr.mxu0 0.0
    %2024 = vmatpush1.xpose.msra.mxu0 0.0
    %2025 = vmatprep.subr.mxu0 0.0
    %2026 = vmatpush1.xpose.msra.mxu0 0.0
    %2027 = vmatprep.subr.mxu0 0.0
    %2028 = vmatpush1.xpose.msra.mxu0 0.0
    %2029 = vmatprep.subr.mxu0 0.0
    %2030 = vmatpush1.xpose.msra.mxu0 0.0
    %2031 = vmatprep.subr.mxu0 0.0
    %2032 = vmatpush1.xpose.msra.mxu0 0.0
    %2033 = vmatprep.subr.mxu0 0.0
    %2034 = vmatpush1.xpose.msra.mxu0 0.0
    %2035 = vmatprep.subr.mxu0 0.0
    %2036 = vmatpush1.xpose.msra.mxu0 0.0
    %2037 = vmatprep.subr.mxu0 0.0
    %2038 = vmatpush1.xpose.msra.mxu0 0.0
    %2039 = vmatprep.subr.mxu0 0.0
    %2040 = vmatpush1.xpose.msra.mxu0 %v2007
    %2041 = vmatprep.subr.mxu0 0.0
    %2042 = vmatpush2.xpose.msra.mxu0 0.0
    %2043 = vmatprep.subr.mxu0 0.0
    %2044 = vmatpush2.xpose.msra.mxu0 0.0
    %2045 = vmatprep.subr.mxu0 0.0
    %2046 = vmatpush2.xpose.msra.mxu0 0.0
    %2047 = vmatprep.subr.mxu0 0.0
    %2048 = vmatpush2.xpose.msra.mxu0 0.0
    %2049 = vmatprep.subr.mxu0 0.0
    %2050 = vmatpush2.xpose.msra.mxu0 0.0
    %2051 = vmatprep.subr.mxu0 0.0
    %2052 = vmatpush2.xpose.msra.mxu0 0.0
    %2053 = vmatprep.subr.mxu0 0.0
    %2054 = vmatpush2.xpose.msra.mxu0 0.0
    %2055 = vmatprep.subr.mxu0 0.0
    %2056 = vmatpush2.xpose.msra.mxu0 0.0
    %2057 = vmatprep.subr.mxu0 0.0
    %2058 = vmatpush2.xpose.msra.mxu0 0.0
    %2059 = vmatprep.subr.mxu0 0.0
    %2060 = vmatpush2.xpose.msra.mxu0 0.0
    %2061 = vmatprep.subr.mxu0 0.0
    %2062 = vmatpush2.xpose.msra.mxu0 0.0
    %2063 = vmatprep.subr.mxu0 0.0
    %2064 = vmatpush2.xpose.msra.mxu0 0.0
    %2065 = vmatprep.subr.mxu0 0.0
    %2066 = vmatpush2.xpose.msra.mxu0 0.0
    %2067 = vmatprep.subr.mxu0 0.0
    %2068 = vmatpush2.xpose.msra.mxu0 0.0
    %2069 = vmatprep.subr.mxu0 0.0
    %2070 = vmatpush2.xpose.msra.mxu0 0.0
    %2071 = vmatprep.subr.mxu0 0.0
    %2072 = vmatpush2.xpose.msra.mxu0 0.0
    %2073 = vmatprep.mubr.f32.mxu0 0.0
    %2074 = vmatmul.mubr.f32.gmra.mxu0 %v2005
    %v2075 = vpop.f32.mrf.mxu0
    %v2076 = vadd.f32 0.0, %v2075
    %v2077 = vpop.f32.mrf.mxu0
    %2078 = vdwg.mxu0
    %2080 = vrot.lane.b32.xlu0 %v1999, 96
    %v2081 = vpop.permute.xlu0 %2080
    %v2082 = vsel %vm245, %v1999, 0
    %v2084 = vsel %vm245, %v2081, 0
    %2086 = vmatprep.subr.mxu0 0.0
    %2087 = vmatpush1.xpose.msra.mxu0 0.0
    %2088 = vmatprep.subr.mxu0 0.0
    %2089 = vmatpush1.xpose.msra.mxu0 0.0
    %2090 = vmatprep.subr.mxu0 0.0
    %2091 = vmatpush1.xpose.msra.mxu0 0.0
    %2092 = vmatprep.subr.mxu0 0.0
    %2093 = vmatpush1.xpose.msra.mxu0 0.0
    %2094 = vmatprep.subr.mxu0 0.0
    %2095 = vmatpush1.xpose.msra.mxu0 0.0
    %2096 = vmatprep.subr.mxu0 0.0
    %2097 = vmatpush1.xpose.msra.mxu0 0.0
    %2098 = vmatprep.subr.mxu0 0.0
    %2099 = vmatpush1.xpose.msra.mxu0 0.0
    %2100 = vmatprep.subr.mxu0 0.0
    %2101 = vmatpush1.xpose.msra.mxu0 0.0
    %2102 = vmatprep.subr.mxu0 0.0
    %2103 = vmatpush1.xpose.msra.mxu0 0.0
    %2104 = vmatprep.subr.mxu0 0.0
    %2105 = vmatpush1.xpose.msra.mxu0 0.0
    %2106 = vmatprep.subr.mxu0 0.0
    %2107 = vmatpush1.xpose.msra.mxu0 0.0
    %2108 = vmatprep.subr.mxu0 0.0
    %2109 = vmatpush1.xpose.msra.mxu0 0.0
    %2110 = vmatprep.subr.mxu0 0.0
    %2111 = vmatpush1.xpose.msra.mxu0 0.0
    %2112 = vmatprep.subr.mxu0 0.0
    %2113 = vmatpush1.xpose.msra.mxu0 0.0
    %2114 = vmatprep.subr.mxu0 0.0
    %2115 = vmatpush1.xpose.msra.mxu0 0.0
    %2116 = vmatprep.subr.mxu0 0.0
    %2117 = vmatpush1.xpose.msra.mxu0 %v2084
    %2118 = vmatprep.subr.mxu0 0.0
    %2119 = vmatpush2.xpose.msra.mxu0 0.0
    %2120 = vmatprep.subr.mxu0 0.0
    %2121 = vmatpush2.xpose.msra.mxu0 0.0
    %2122 = vmatprep.subr.mxu0 0.0
    %2123 = vmatpush2.xpose.msra.mxu0 0.0
    %2124 = vmatprep.subr.mxu0 0.0
    %2125 = vmatpush2.xpose.msra.mxu0 0.0
    %2126 = vmatprep.subr.mxu0 0.0
    %2127 = vmatpush2.xpose.msra.mxu0 0.0
    %2128 = vmatprep.subr.mxu0 0.0
    %2129 = vmatpush2.xpose.msra.mxu0 0.0
    %2130 = vmatprep.subr.mxu0 0.0
    %2131 = vmatpush2.xpose.msra.mxu0 0.0
    %2132 = vmatprep.subr.mxu0 0.0
    %2133 = vmatpush2.xpose.msra.mxu0 0.0
    %2134 = vmatprep.subr.mxu0 0.0
    %2135 = vmatpush2.xpose.msra.mxu0 0.0
    %2136 = vmatprep.subr.mxu0 0.0
    %2137 = vmatpush2.xpose.msra.mxu0 0.0
    %2138 = vmatprep.subr.mxu0 0.0
    %2139 = vmatpush2.xpose.msra.mxu0 0.0
    %2140 = vmatprep.subr.mxu0 0.0
    %2141 = vmatpush2.xpose.msra.mxu0 0.0
    %2142 = vmatprep.subr.mxu0 0.0
    %2143 = vmatpush2.xpose.msra.mxu0 0.0
    %2144 = vmatprep.subr.mxu0 0.0
    %2145 = vmatpush2.xpose.msra.mxu0 0.0
    %2146 = vmatprep.subr.mxu0 0.0
    %2147 = vmatpush2.xpose.msra.mxu0 0.0
    %2148 = vmatprep.subr.mxu0 0.0
    %2149 = vmatpush2.xpose.msra.mxu0 0.0
    %2150 = vmatprep.mubr.f32.mxu0 0.0
    %2151 = vmatmul.mubr.f32.gmra.mxu0 %v2082
    %v2152 = vpop.f32.mrf.mxu0
    %v2153 = vadd.f32 0.0, %v2152
    %v2154 = vpop.f32.mrf.mxu0
    %2155 = vdwg.mxu0
    %v2156 = vmul.f32 %v2076, 0.35355338
    %v2157 = vmul.f32 %v2153, 0.35355338
    %v2158 = vsel %vm245, %v2156, -inf
    %2159 = vmax.xlane.f32.xlu0 %v2158
    %v2160 = vpop.xlane.xlu0 %2159
    %v2161 = vsel %vm245, %v2157, -inf
    %2162 = vmax.xlane.f32.xlu0 %v2161
    %v2163 = vpop.xlane.xlu0 %2162
    %v2164 = vsub.f32 %v2156, %v2160
    %v2165 = vsub.f32 %v2157, %v2163
    %v2166 = vmul.f32 %v2164, 1.442695
    %v2167 = vpow.pop %v2166
    %v2168 = vmul.f32 %v2165, 1.442695
    %v2169 = vpow.pop %v2168
    %v2170 = vsel %vm245, %v2167, 0.0
    %2171 = vadd.xlane.f32.xlu0 %v2170
    %v2172 = vpop.xlane.xlu0 %2171
    %v2173 = vsel %vm245, %v2169, 0.0
    %2174 = vadd.xlane.f32.xlu0 %v2173
    %v2175 = vpop.xlane.xlu0 %2174
    %v2176 = vrcp.pop %v2172
    %v2177 = vrcp.pop %v2175
    %v2178 = vmul.f32 %v2167, %v2176
    %v2179 = vmul.f32 %v2169, %v2177
    %2180 = vrot.lane.b32.xlu0 %v1996, 64
    %v2181 = vpop.permute.xlu0 %2180
    %v2184 = vsel %vm245, %v2178, 0
    %2186 = vmatprep.subr.mxu0 0.0
    %2187 = vmatpush1.msra.mxu0 0.0
    %2188 = vmatprep.subr.mxu0 0.0
    %2189 = vmatpush1.msra.mxu0 0.0
    %2190 = vmatprep.subr.mxu0 0.0
    %2191 = vmatpush1.msra.mxu0 0.0
    %2192 = vmatprep.subr.mxu0 0.0
    %2193 = vmatpush1.msra.mxu0 0.0
    %2194 = vmatprep.subr.mxu0 0.0
    %2195 = vmatpush1.msra.mxu0 0.0
    %2196 = vmatprep.subr.mxu0 0.0
    %2197 = vmatpush1.msra.mxu0 0.0
    %2198 = vmatprep.subr.mxu0 0.0
    %2199 = vmatpush1.msra.mxu0 0.0
    %2200 = vmatprep.subr.mxu0 0.0
    %2201 = vmatpush1.msra.mxu0 0.0
    %2202 = vmatprep.subr.mxu0 0.0
    %2203 = vmatpush1.msra.mxu0 0.0
    %2204 = vmatprep.subr.mxu0 0.0
    %2205 = vmatpush1.msra.mxu0 0.0
    %2206 = vmatprep.subr.mxu0 0.0
    %2207 = vmatpush1.msra.mxu0 0.0
    %2208 = vmatprep.subr.mxu0 0.0
    %2209 = vmatpush1.msra.mxu0 0.0
    %2210 = vmatprep.subr.mxu0 0.0
    %2211 = vmatpush1.msra.mxu0 0.0
    %2212 = vmatprep.subr.mxu0 0.0
    %2213 = vmatpush1.msra.mxu0 0.0
    %2214 = vmatprep.subr.mxu0 0.0
    %2215 = vmatpush1.msra.mxu0 0.0
    %2216 = vmatprep.subr.mxu0 0.0
    %2217 = vmatpush1.msra.mxu0 %v2181
    %2218 = vmatprep.subr.mxu0 0.0
    %2219 = vmatpush2.msra.mxu0 0.0
    %2220 = vmatprep.subr.mxu0 0.0
    %2221 = vmatpush2.msra.mxu0 0.0
    %2222 = vmatprep.subr.mxu0 0.0
    %2223 = vmatpush2.msra.mxu0 0.0
    %2224 = vmatprep.subr.mxu0 0.0
    %2225 = vmatpush2.msra.mxu0 0.0
    %2226 = vmatprep.subr.mxu0 0.0
    %2227 = vmatpush2.msra.mxu0 0.0
    %2228 = vmatprep.subr.mxu0 0.0
    %2229 = vmatpush2.msra.mxu0 0.0
    %2230 = vmatprep.subr.mxu0 0.0
    %2231 = vmatpush2.msra.mxu0 0.0
    %2232 = vmatprep.subr.mxu0 0.0
    %2233 = vmatpush2.msra.mxu0 0.0
    %2234 = vmatprep.subr.mxu0 0.0
    %2235 = vmatpush2.msra.mxu0 0.0
    %2236 = vmatprep.subr.mxu0 0.0
    %2237 = vmatpush2.msra.mxu0 0.0
    %2238 = vmatprep.subr.mxu0 0.0
    %2239 = vmatpush2.msra.mxu0 0.0
    %2240 = vmatprep.subr.mxu0 0.0
    %2241 = vmatpush2.msra.mxu0 0.0
    %2242 = vmatprep.subr.mxu0 0.0
    %2243 = vmatpush2.msra.mxu0 0.0
    %2244 = vmatprep.subr.mxu0 0.0
    %2245 = vmatpush2.msra.mxu0 0.0
    %2246 = vmatprep.subr.mxu0 0.0
    %2247 = vmatpush2.msra.mxu0 0.0
    %2248 = vmatprep.subr.mxu0 0.0
    %2249 = vmatpush2.msra.mxu0 0.0
    %2250 = vmatprep.mubr.f32.mxu0 0.0
    %2251 = vmatmul.mubr.f32.gmra.mxu0 %v2184
    %v2252 = vpop.f32.mrf.mxu0
    %v2253 = vadd.f32 0.0, %v2252
    %v2254 = vpop.f32.mrf.mxu0
    %2255 = vdwg.mxu0
    %2256 = vrot.lane.b32.xlu0 %v1999, 64
    %v2257 = vpop.permute.xlu0 %2256
    %v2260 = vsel %vm245, %v2179, 0
    %2262 = vmatprep.subr.mxu0 0.0
    %2263 = vmatpush1.msra.mxu0 0.0
    %2264 = vmatprep.subr.mxu0 0.0
    %2265 = vmatpush1.msra.mxu0 0.0
    %2266 = vmatprep.subr.mxu0 0.0
    %2267 = vmatpush1.msra.mxu0 0.0
    %2268 = vmatprep.subr.mxu0 0.0
    %2269 = vmatpush1.msra.mxu0 0.0
    %2270 = vmatprep.subr.mxu0 0.0
    %2271 = vmatpush1.msra.mxu0 0.0
    %2272 = vmatprep.subr.mxu0 0.0
    %2273 = vmatpush1.msra.mxu0 0.0
    %2274 = vmatprep.subr.mxu0 0.0
    %2275 = vmatpush1.msra.mxu0 0.0
    %2276 = vmatprep.subr.mxu0 0.0
    %2277 = vmatpush1.msra.mxu0 0.0
    %2278 = vmatprep.subr.mxu0 0.0
    %2279 = vmatpush1.msra.mxu0 0.0
    %2280 = vmatprep.subr.mxu0 0.0
    %2281 = vmatpush1.msra.mxu0 0.0
    %2282 = vmatprep.subr.mxu0 0.0
    %2283 = vmatpush1.msra.mxu0 0.0
    %2284 = vmatprep.subr.mxu0 0.0
    %2285 = vmatpush1.msra.mxu0 0.0
    %2286 = vmatprep.subr.mxu0 0.0
    %2287 = vmatpush1.msra.mxu0 0.0
    %2288 = vmatprep.subr.mxu0 0.0
    %2289 = vmatpush1.msra.mxu0 0.0
    %2290 = vmatprep.subr.mxu0 0.0
    %2291 = vmatpush1.msra.mxu0 0.0
    %2292 = vmatprep.subr.mxu0 0.0
    %2293 = vmatpush1.msra.mxu0 %v2257
    %2294 = vmatprep.subr.mxu0 0.0
    %2295 = vmatpush2.msra.mxu0 0.0
    %2296 = vmatprep.subr.mxu0 0.0
    %2297 = vmatpush2.msra.mxu0 0.0
    %2298 = vmatprep.subr.mxu0 0.0
    %2299 = vmatpush2.msra.mxu0 0.0
    %2300 = vmatprep.subr.mxu0 0.0
    %2301 = vmatpush2.msra.mxu0 0.0
    %2302 = vmatprep.subr.mxu0 0.0
    %2303 = vmatpush2.msra.mxu0 0.0
    %2304 = vmatprep.subr.mxu0 0.0
    %2305 = vmatpush2.msra.mxu0 0.0
    %2306 = vmatprep.subr.mxu0 0.0
    %2307 = vmatpush2.msra.mxu0 0.0
    %2308 = vmatprep.subr.mxu0 0.0
    %2309 = vmatpush2.msra.mxu0 0.0
    %2310 = vmatprep.subr.mxu0 0.0
    %2311 = vmatpush2.msra.mxu0 0.0
    %2312 = vmatprep.subr.mxu0 0.0
    %2313 = vmatpush2.msra.mxu0 0.0
    %2314 = vmatprep.subr.mxu0 0.0
    %2315 = vmatpush2.msra.mxu0 0.0
    %2316 = vmatprep.subr.mxu0 0.0
    %2317 = vmatpush2.msra.mxu0 0.0
    %2318 = vmatprep.subr.mxu0 0.0
    %2319 = vmatpush2.msra.mxu0 0.0
    %2320 = vmatprep.subr.mxu0 0.0
    %2321 = vmatpush2.msra.mxu0 0.0
    %2322 = vmatprep.subr.mxu0 0.0
    %2323 = vmatpush2.msra.mxu0 0.0
    %2324 = vmatprep.subr.mxu0 0.0
    %2325 = vmatpush2.msra.mxu0 0.0
    %2326 = vmatprep.mubr.f32.mxu0 0.0
    %2327 = vmatmul.mubr.f32.gmra.mxu0 %v2260
    %v2328 = vpop.f32.mrf.mxu0
    %v2329 = vadd.f32 0.0, %v2328
    %v2330 = vpop.f32.mrf.mxu0
    %2331 = vdwg.mxu0
    %2332 = vrot.lane.b32.xlu0 %v1996, 120
    %v2333 = vpop.permute.xlu0 %2332
    %2334 = vrot.lane.b32.xlu0 %v1996, 88
    %v2335 = vpop.permute.xlu0 %2334
    %v2336 = vsel %vm245, %v2333, 0
    %v2338 = vsel %vm245, %v2335, 0
    %2340 = vmatprep.subr.mxu0 0.0
    %2341 = vmatpush1.xpose.msra.mxu0 0.0
    %2342 = vmatprep.subr.mxu0 0.0
    %2343 = vmatpush1.xpose.msra.mxu0 0.0
    %2344 = vmatprep.subr.mxu0 0.0
    %2345 = vmatpush1.xpose.msra.mxu0 0.0
    %2346 = vmatprep.subr.mxu0 0.0
    %2347 = vmatpush1.xpose.msra.mxu0 0.0
    %2348 = vmatprep.subr.mxu0 0.0
    %2349 = vmatpush1.xpose.msra.mxu0 0.0
    %2350 = vmatprep.subr.mxu0 0.0
    %2351 = vmatpush1.xpose.msra.mxu0 0.0
    %2352 = vmatprep.subr.mxu0 0.0
    %2353 = vmatpush1.xpose.msra.mxu0 0.0
    %2354 = vmatprep.subr.mxu0 0.0
    %2355 = vmatpush1.xpose.msra.mxu0 0.0
    %2356 = vmatprep.subr.mxu0 0.0
    %2357 = vmatpush1.xpose.msra.mxu0 0.0
    %2358 = vmatprep.subr.mxu0 0.0
    %2359 = vmatpush1.xpose.msra.mxu0 0.0
    %2360 = vmatprep.subr.mxu0 0.0
    %2361 = vmatpush1.xpose.msra.mxu0 0.0
    %2362 = vmatprep.subr.mxu0 0.0
    %2363 = vmatpush1.xpose.msra.mxu0 0.0
    %2364 = vmatprep.subr.mxu0 0.0
    %2365 = vmatpush1.xpose.msra.mxu0 0.0
    %2366 = vmatprep.subr.mxu0 0.0
    %2367 = vmatpush1.xpose.msra.mxu0 0.0
    %2368 = vmatprep.subr.mxu0 0.0
    %2369 = vmatpush1.xpose.msra.mxu0 0.0
    %2370 = vmatprep.subr.mxu0 0.0
    %2371 = vmatpush1.xpose.msra.mxu0 %v2338
    %2372 = vmatprep.subr.mxu0 0.0
    %2373 = vmatpush2.xpose.msra.mxu0 0.0
    %2374 = vmatprep.subr.mxu0 0.0
    %2375 = vmatpush2.xpose.msra.mxu0 0.0
    %2376 = vmatprep.subr.mxu0 0.0
    %2377 = vmatpush2.xpose.msra.mxu0 0.0
    %2378 = vmatprep.subr.mxu0 0.0
    %2379 = vmatpush2.xpose.msra.mxu0 0.0
    %2380 = vmatprep.subr.mxu0 0.0
    %2381 = vmatpush2.xpose.msra.mxu0 0.0
    %2382 = vmatprep.subr.mxu0 0.0
    %2383 = vmatpush2.xpose.msra.mxu0 0.0
    %2384 = vmatprep.subr.mxu0 0.0
    %2385 = vmatpush2.xpose.msra.mxu0 0.0
    %2386 = vmatprep.subr.mxu0 0.0
    %2387 = vmatpush2.xpose.msra.mxu0 0.0
    %2388 = vmatprep.subr.mxu0 0.0
    %2389 = vmatpush2.xpose.msra.mxu0 0.0
    %2390 = vmatprep.subr.mxu0 0.0
    %2391 = vmatpush2.xpose.msra.mxu0 0.0
    %2392 = vmatprep.subr.mxu0 0.0
    %2393 = vmatpush2.xpose.msra.mxu0 0.0
    %2394 = vmatprep.subr.mxu0 0.0
    %2395 = vmatpush2.xpose.msra.mxu0 0.0
    %2396 = vmatprep.subr.mxu0 0.0
    %2397 = vmatpush2.xpose.msra.mxu0 0.0
    %2398 = vmatprep.subr.mxu0 0.0
    %2399 = vmatpush2.xpose.msra.mxu0 0.0
    %2400 = vmatprep.subr.mxu0 0.0
    %2401 = vmatpush2.xpose.msra.mxu0 0.0
    %2402 = vmatprep.subr.mxu0 0.0
    %2403 = vmatpush2.xpose.msra.mxu0 0.0
    %2404 = vmatprep.mubr.f32.mxu0 0.0
    %2405 = vmatmul.mubr.f32.gmra.mxu0 %v2336
    %v2406 = vpop.f32.mrf.mxu0
    %v2407 = vadd.f32 0.0, %v2406
    %v2408 = vpop.f32.mrf.mxu0
    %2409 = vdwg.mxu0
    %2410 = vrot.lane.b32.xlu0 %v1999, 120
    %v2411 = vpop.permute.xlu0 %2410
    %2412 = vrot.lane.b32.xlu0 %v1999, 88
    %v2413 = vpop.permute.xlu0 %2412
    %v2414 = vsel %vm245, %v2411, 0
    %v2416 = vsel %vm245, %v2413, 0
    %2418 = vmatprep.subr.mxu0 0.0
    %2419 = vmatpush1.xpose.msra.mxu0 0.0
    %2420 = vmatprep.subr.mxu0 0.0
    %2421 = vmatpush1.xpose.msra.mxu0 0.0
    %2422 = vmatprep.subr.mxu0 0.0
    %2423 = vmatpush1.xpose.msra.mxu0 0.0
    %2424 = vmatprep.subr.mxu0 0.0
    %2425 = vmatpush1.xpose.msra.mxu0 0.0
    %2426 = vmatprep.subr.mxu0 0.0
    %2427 = vmatpush1.xpose.msra.mxu0 0.0
    %2428 = vmatprep.subr.mxu0 0.0
    %2429 = vmatpush1.xpose.msra.mxu0 0.0
    %2430 = vmatprep.subr.mxu0 0.0
    %2431 = vmatpush1.xpose.msra.mxu0 0.0
    %2432 = vmatprep.subr.mxu0 0.0
    %2433 = vmatpush1.xpose.msra.mxu0 0.0
    %2434 = vmatprep.subr.mxu0 0.0
    %2435 = vmatpush1.xpose.msra.mxu0 0.0
    %2436 = vmatprep.subr.mxu0 0.0
    %2437 = vmatpush1.xpose.msra.mxu0 0.0
    %2438 = vmatprep.subr.mxu0 0.0
    %2439 = vmatpush1.xpose.msra.mxu0 0.0
    %2440 = vmatprep.subr.mxu0 0.0
    %2441 = vmatpush1.xpose.msra.mxu0 0.0
    %2442 = vmatprep.subr.mxu0 0.0
    %2443 = vmatpush1.xpose.msra.mxu0 0.0
    %2444 = vmatprep.subr.mxu0 0.0
    %2445 = vmatpush1.xpose.msra.mxu0 0.0
    %2446 = vmatprep.subr.mxu0 0.0
    %2447 = vmatpush1.xpose.msra.mxu0 0.0
    %2448 = vmatprep.subr.mxu0 0.0
    %2449 = vmatpush1.xpose.msra.mxu0 %v2416
    %2450 = vmatprep.subr.mxu0 0.0
    %2451 = vmatpush2.xpose.msra.mxu0 0.0
    %2452 = vmatprep.subr.mxu0 0.0
    %2453 = vmatpush2.xpose.msra.mxu0 0.0
    %2454 = vmatprep.subr.mxu0 0.0
    %2455 = vmatpush2.xpose.msra.mxu0 0.0
    %2456 = vmatprep.subr.mxu0 0.0
    %2457 = vmatpush2.xpose.msra.mxu0 0.0
    %2458 = vmatprep.subr.mxu0 0.0
    %2459 = vmatpush2.xpose.msra.mxu0 0.0
    %2460 = vmatprep.subr.mxu0 0.0
    %2461 = vmatpush2.xpose.msra.mxu0 0.0
    %2462 = vmatprep.subr.mxu0 0.0
    %2463 = vmatpush2.xpose.msra.mxu0 0.0
    %2464 = vmatprep.subr.mxu0 0.0
    %2465 = vmatpush2.xpose.msra.mxu0 0.0
    %2466 = vmatprep.subr.mxu0 0.0
    %2467 = vmatpush2.xpose.msra.mxu0 0.0
    %2468 = vmatprep.subr.mxu0 0.0
    %2469 = vmatpush2.xpose.msra.mxu0 0.0
    %2470 = vmatprep.subr.mxu0 0.0
    %2471 = vmatpush2.xpose.msra.mxu0 0.0
    %2472 = vmatprep.subr.mxu0 0.0
    %2473 = vmatpush2.xpose.msra.mxu0 0.0
    %2474 = vmatprep.subr.mxu0 0.0
    %2475 = vmatpush2.xpose.msra.mxu0 0.0
    %2476 = vmatprep.subr.mxu0 0.0
    %2477 = vmatpush2.xpose.msra.mxu0 0.0
    %2478 = vmatprep.subr.mxu0 0.0
    %2479 = vmatpush2.xpose.msra.mxu0 0.0
    %2480 = vmatprep.subr.mxu0 0.0
    %2481 = vmatpush2.xpose.msra.mxu0 0.0
    %2482 = vmatprep.mubr.f32.mxu0 0.0
    %2483 = vmatmul.mubr.f32.gmra.mxu0 %v2414
    %v2484 = vpop.f32.mrf.mxu0
    %v2485 = vadd.f32 0.0, %v2484
    %v2486 = vpop.f32.mrf.mxu0
    %2487 = vdwg.mxu0
    %v2488 = vmul.f32 %v2407, 0.35355338
    %v2489 = vmul.f32 %v2485, 0.35355338
    %v2490 = vsel %vm245, %v2488, -inf
    %2491 = vmax.xlane.f32.xlu0 %v2490
    %v2492 = vpop.xlane.xlu0 %2491
    %v2493 = vsel %vm245, %v2489, -inf
    %2494 = vmax.xlane.f32.xlu0 %v2493
    %v2495 = vpop.xlane.xlu0 %2494
    %v2496 = vsub.f32 %v2488, %v2492
    %v2497 = vsub.f32 %v2489, %v2495
    %v2498 = vmul.f32 %v2496, 1.442695
    %v2499 = vpow.pop %v2498
    %v2500 = vmul.f32 %v2497, 1.442695
    %v2501 = vpow.pop %v2500
    %v2502 = vsel %vm245, %v2499, 0.0
    %2503 = vadd.xlane.f32.xlu0 %v2502
    %v2504 = vpop.xlane.xlu0 %2503
    %v2505 = vsel %vm245, %v2501, 0.0
    %2506 = vadd.xlane.f32.xlu0 %v2505
    %v2507 = vpop.xlane.xlu0 %2506
    %v2508 = vrcp.pop %v2504
    %v2509 = vrcp.pop %v2507
    %v2510 = vmul.f32 %v2499, %v2508
    %v2511 = vmul.f32 %v2501, %v2509
    %2512 = vrot.lane.b32.xlu0 %v1996, 56
    %v2513 = vpop.permute.xlu0 %2512
    %v2516 = vsel %vm245, %v2510, 0
    %2518 = vmatprep.subr.mxu0 0.0
    %2519 = vmatpush1.msra.mxu0 0.0
    %2520 = vmatprep.subr.mxu0 0.0
    %2521 = vmatpush1.msra.mxu0 0.0
    %2522 = vmatprep.subr.mxu0 0.0
    %2523 = vmatpush1.msra.mxu0 0.0
    %2524 = vmatprep.subr.mxu0 0.0
    %2525 = vmatpush1.msra.mxu0 0.0
    %2526 = vmatprep.subr.mxu0 0.0
    %2527 = vmatpush1.msra.mxu0 0.0
    %2528 = vmatprep.subr.mxu0 0.0
    %2529 = vmatpush1.msra.mxu0 0.0
    %2530 = vmatprep.subr.mxu0 0.0
    %2531 = vmatpush1.msra.mxu0 0.0
    %2532 = vmatprep.subr.mxu0 0.0
    %2533 = vmatpush1.msra.mxu0 0.0
    %2534 = vmatprep.subr.mxu0 0.0
    %2535 = vmatpush1.msra.mxu0 0.0
    %2536 = vmatprep.subr.mxu0 0.0
    %2537 = vmatpush1.msra.mxu0 0.0
    %2538 = vmatprep.subr.mxu0 0.0
    %2539 = vmatpush1.msra.mxu0 0.0
    %2540 = vmatprep.subr.mxu0 0.0
    %2541 = vmatpush1.msra.mxu0 0.0
    %2542 = vmatprep.subr.mxu0 0.0
    %2543 = vmatpush1.msra.mxu0 0.0
    %2544 = vmatprep.subr.mxu0 0.0
    %2545 = vmatpush1.msra.mxu0 0.0
    %2546 = vmatprep.subr.mxu0 0.0
    %2547 = vmatpush1.msra.mxu0 0.0
    %2548 = vmatprep.subr.mxu0 0.0
    %2549 = vmatpush1.msra.mxu0 %v2513
    %2550 = vmatprep.subr.mxu0 0.0
    %2551 = vmatpush2.msra.mxu0 0.0
    %2552 = vmatprep.subr.mxu0 0.0
    %2553 = vmatpush2.msra.mxu0 0.0
    %2554 = vmatprep.subr.mxu0 0.0
    %2555 = vmatpush2.msra.mxu0 0.0
    %2556 = vmatprep.subr.mxu0 0.0
    %2557 = vmatpush2.msra.mxu0 0.0
    %2558 = vmatprep.subr.mxu0 0.0
    %2559 = vmatpush2.msra.mxu0 0.0
    %2560 = vmatprep.subr.mxu0 0.0
    %2561 = vmatpush2.msra.mxu0 0.0
    %2562 = vmatprep.subr.mxu0 0.0
    %2563 = vmatpush2.msra.mxu0 0.0
    %2564 = vmatprep.subr.mxu0 0.0
    %2565 = vmatpush2.msra.mxu0 0.0
    %2566 = vmatprep.subr.mxu0 0.0
    %2567 = vmatpush2.msra.mxu0 0.0
    %2568 = vmatprep.subr.mxu0 0.0
    %2569 = vmatpush2.msra.mxu0 0.0
    %2570 = vmatprep.subr.mxu0 0.0
    %2571 = vmatpush2.msra.mxu0 0.0
    %2572 = vmatprep.subr.mxu0 0.0
    %2573 = vmatpush2.msra.mxu0 0.0
    %2574 = vmatprep.subr.mxu0 0.0
    %2575 = vmatpush2.msra.mxu0 0.0
    %2576 = vmatprep.subr.mxu0 0.0
    %2577 = vmatpush2.msra.mxu0 0.0
    %2578 = vmatprep.subr.mxu0 0.0
    %2579 = vmatpush2.msra.mxu0 0.0
    %2580 = vmatprep.subr.mxu0 0.0
    %2581 = vmatpush2.msra.mxu0 0.0
    %2582 = vmatprep.mubr.f32.mxu0 0.0
    %2583 = vmatmul.mubr.f32.gmra.mxu0 %v2516
    %v2584 = vpop.f32.mrf.mxu0
    %v2585 = vadd.f32 0.0, %v2584
    %v2586 = vpop.f32.mrf.mxu0
    %2587 = vdwg.mxu0
    %2588 = vrot.lane.b32.xlu0 %v1999, 56
    %v2589 = vpop.permute.xlu0 %2588
    %v2592 = vsel %vm245, %v2511, 0
    %2594 = vmatprep.subr.mxu0 0.0
    %2595 = vmatpush1.msra.mxu0 0.0
    %2596 = vmatprep.subr.mxu0 0.0
    %2597 = vmatpush1.msra.mxu0 0.0
    %2598 = vmatprep.subr.mxu0 0.0
    %2599 = vmatpush1.msra.mxu0 0.0
    %2600 = vmatprep.subr.mxu0 0.0
    %2601 = vmatpush1.msra.mxu0 0.0
    %2602 = vmatprep.subr.mxu0 0.0
    %2603 = vmatpush1.msra.mxu0 0.0
    %2604 = vmatprep.subr.mxu0 0.0
    %2605 = vmatpush1.msra.mxu0 0.0
    %2606 = vmatprep.subr.mxu0 0.0
    %2607 = vmatpush1.msra.mxu0 0.0
    %2608 = vmatprep.subr.mxu0 0.0
    %2609 = vmatpush1.msra.mxu0 0.0
    %2610 = vmatprep.subr.mxu0 0.0
    %2611 = vmatpush1.msra.mxu0 0.0
    %2612 = vmatprep.subr.mxu0 0.0
    %2613 = vmatpush1.msra.mxu0 0.0
    %2614 = vmatprep.subr.mxu0 0.0
    %2615 = vmatpush1.msra.mxu0 0.0
    %2616 = vmatprep.subr.mxu0 0.0
    %2617 = vmatpush1.msra.mxu0 0.0
    %2618 = vmatprep.subr.mxu0 0.0
    %2619 = vmatpush1.msra.mxu0 0.0
    %2620 = vmatprep.subr.mxu0 0.0
    %2621 = vmatpush1.msra.mxu0 0.0
    %2622 = vmatprep.subr.mxu0 0.0
    %2623 = vmatpush1.msra.mxu0 0.0
    %2624 = vmatprep.subr.mxu0 0.0
    %2625 = vmatpush1.msra.mxu0 %v2589
    %2626 = vmatprep.subr.mxu0 0.0
    %2627 = vmatpush2.msra.mxu0 0.0
    %2628 = vmatprep.subr.mxu0 0.0
    %2629 = vmatpush2.msra.mxu0 0.0
    %2630 = vmatprep.subr.mxu0 0.0
    %2631 = vmatpush2.msra.mxu0 0.0
    %2632 = vmatprep.subr.mxu0 0.0
    %2633 = vmatpush2.msra.mxu0 0.0
    %2634 = vmatprep.subr.mxu0 0.0
    %2635 = vmatpush2.msra.mxu0 0.0
    %2636 = vmatprep.subr.mxu0 0.0
    %2637 = vmatpush2.msra.mxu0 0.0
    %2638 = vmatprep.subr.mxu0 0.0
    %2639 = vmatpush2.msra.mxu0 0.0
    %2640 = vmatprep.subr.mxu0 0.0
    %2641 = vmatpush2.msra.mxu0 0.0
    %2642 = vmatprep.subr.mxu0 0.0
    %2643 = vmatpush2.msra.mxu0 0.0
    %2644 = vmatprep.subr.mxu0 0.0
    %2645 = vmatpush2.msra.mxu0 0.0
    %2646 = vmatprep.subr.mxu0 0.0
    %2647 = vmatpush2.msra.mxu0 0.0
    %2648 = vmatprep.subr.mxu0 0.0
    %2649 = vmatpush2.msra.mxu0 0.0
    %2650 = vmatprep.subr.mxu0 0.0
    %2651 = vmatpush2.msra.mxu0 0.0
    %2652 = vmatprep.subr.mxu0 0.0
    %2653 = vmatpush2.msra.mxu0 0.0
    %2654 = vmatprep.subr.mxu0 0.0
    %2655 = vmatpush2.msra.mxu0 0.0
    %2656 = vmatprep.subr.mxu0 0.0
    %2657 = vmatpush2.msra.mxu0 0.0
    %2658 = vmatprep.mubr.f32.mxu0 0.0
    %2659 = vmatmul.mubr.f32.gmra.mxu0 %v2592
    %v2660 = vpop.f32.mrf.mxu0
    %v2661 = vadd.f32 0.0, %v2660
    %v2662 = vpop.f32.mrf.mxu0
    %2663 = vdwg.mxu0
    %2664 = vrot.lane.b32.xlu0 %v1996, 112
    %v2665 = vpop.permute.xlu0 %2664
    %2666 = vrot.lane.b32.xlu0 %v1996, 80
    %v2667 = vpop.permute.xlu0 %2666
    %v2668 = vsel %vm245, %v2665, 0
    %v2670 = vsel %vm245, %v2667, 0
    %2672 = vmatprep.subr.mxu0 0.0
    %2673 = vmatpush1.xpose.msra.mxu0 0.0
    %2674 = vmatprep.subr.mxu0 0.0
    %2675 = vmatpush1.xpose.msra.mxu0 0.0
    %2676 = vmatprep.subr.mxu0 0.0
    %2677 = vmatpush1.xpose.msra.mxu0 0.0
    %2678 = vmatprep.subr.mxu0 0.0
    %2679 = vmatpush1.xpose.msra.mxu0 0.0
    %2680 = vmatprep.subr.mxu0 0.0
    %2681 = vmatpush1.xpose.msra.mxu0 0.0
    %2682 = vmatprep.subr.mxu0 0.0
    %2683 = vmatpush1.xpose.msra.mxu0 0.0
    %2684 = vmatprep.subr.mxu0 0.0
    %2685 = vmatpush1.xpose.msra.mxu0 0.0
    %2686 = vmatprep.subr.mxu0 0.0
    %2687 = vmatpush1.xpose.msra.mxu0 0.0
    %2688 = vmatprep.subr.mxu0 0.0
    %2689 = vmatpush1.xpose.msra.mxu0 0.0
    %2690 = vmatprep.subr.mxu0 0.0
    %2691 = vmatpush1.xpose.msra.mxu0 0.0
    %2692 = vmatprep.subr.mxu0 0.0
    %2693 = vmatpush1.xpose.msra.mxu0 0.0
    %2694 = vmatprep.subr.mxu0 0.0
    %2695 = vmatpush1.xpose.msra.mxu0 0.0
    %2696 = vmatprep.subr.mxu0 0.0
    %2697 = vmatpush1.xpose.msra.mxu0 0.0
    %2698 = vmatprep.subr.mxu0 0.0
    %2699 = vmatpush1.xpose.msra.mxu0 0.0
    %2700 = vmatprep.subr.mxu0 0.0
    %2701 = vmatpush1.xpose.msra.mxu0 0.0
    %2702 = vmatprep.subr.mxu0 0.0
    %2703 = vmatpush1.xpose.msra.mxu0 %v2670
    %2704 = vmatprep.subr.mxu0 0.0
    %2705 = vmatpush2.xpose.msra.mxu0 0.0
    %2706 = vmatprep.subr.mxu0 0.0
    %2707 = vmatpush2.xpose.msra.mxu0 0.0
    %2708 = vmatprep.subr.mxu0 0.0
    %2709 = vmatpush2.xpose.msra.mxu0 0.0
    %2710 = vmatprep.subr.mxu0 0.0
    %2711 = vmatpush2.xpose.msra.mxu0 0.0
    %2712 = vmatprep.subr.mxu0 0.0
    %2713 = vmatpush2.xpose.msra.mxu0 0.0
    %2714 = vmatprep.subr.mxu0 0.0
    %2715 = vmatpush2.xpose.msra.mxu0 0.0
    %2716 = vmatprep.subr.mxu0 0.0
    %2717 = vmatpush2.xpose.msra.mxu0 0.0
    %2718 = vmatprep.subr.mxu0 0.0
    %2719 = vmatpush2.xpose.msra.mxu0 0.0
    %2720 = vmatprep.subr.mxu0 0.0
    %2721 = vmatpush2.xpose.msra.mxu0 0.0
    %2722 = vmatprep.subr.mxu0 0.0
    %2723 = vmatpush2.xpose.msra.mxu0 0.0
    %2724 = vmatprep.subr.mxu0 0.0
    %2725 = vmatpush2.xpose.msra.mxu0 0.0
    %2726 = vmatprep.subr.mxu0 0.0
    %2727 = vmatpush2.xpose.msra.mxu0 0.0
    %2728 = vmatprep.subr.mxu0 0.0
    %2729 = vmatpush2.xpose.msra.mxu0 0.0
    %2730 = vmatprep.subr.mxu0 0.0
    %2731 = vmatpush2.xpose.msra.mxu0 0.0
    %2732 = vmatprep.subr.mxu0 0.0
    %2733 = vmatpush2.xpose.msra.mxu0 0.0
    %2734 = vmatprep.subr.mxu0 0.0
    %2735 = vmatpush2.xpose.msra.mxu0 0.0
    %2736 = vmatprep.mubr.f32.mxu0 0.0
    %2737 = vmatmul.mubr.f32.gmra.mxu0 %v2668
    %v2738 = vpop.f32.mrf.mxu0
    %v2739 = vadd.f32 0.0, %v2738
    %v2740 = vpop.f32.mrf.mxu0
    %2741 = vdwg.mxu0
    %2742 = vrot.lane.b32.xlu0 %v1999, 112
    %v2743 = vpop.permute.xlu0 %2742
    %2744 = vrot.lane.b32.xlu0 %v1999, 80
    %v2745 = vpop.permute.xlu0 %2744
    %v2746 = vsel %vm245, %v2743, 0
    %v2748 = vsel %vm245, %v2745, 0
    %2750 = vmatprep.subr.mxu0 0.0
    %2751 = vmatpush1.xpose.msra.mxu0 0.0
    %2752 = vmatprep.subr.mxu0 0.0
    %2753 = vmatpush1.xpose.msra.mxu0 0.0
    %2754 = vmatprep.subr.mxu0 0.0
    %2755 = vmatpush1.xpose.msra.mxu0 0.0
    %2756 = vmatprep.subr.mxu0 0.0
    %2757 = vmatpush1.xpose.msra.mxu0 0.0
    %2758 = vmatprep.subr.mxu0 0.0
    %2759 = vmatpush1.xpose.msra.mxu0 0.0
    %2760 = vmatprep.subr.mxu0 0.0
    %2761 = vmatpush1.xpose.msra.mxu0 0.0
    %2762 = vmatprep.subr.mxu0 0.0
    %2763 = vmatpush1.xpose.msra.mxu0 0.0
    %2764 = vmatprep.subr.mxu0 0.0
    %2765 = vmatpush1.xpose.msra.mxu0 0.0
    %2766 = vmatprep.subr.mxu0 0.0
    %2767 = vmatpush1.xpose.msra.mxu0 0.0
    %2768 = vmatprep.subr.mxu0 0.0
    %2769 = vmatpush1.xpose.msra.mxu0 0.0
    %2770 = vmatprep.subr.mxu0 0.0
    %2771 = vmatpush1.xpose.msra.mxu0 0.0
    %2772 = vmatprep.subr.mxu0 0.0
    %2773 = vmatpush1.xpose.msra.mxu0 0.0
    %2774 = vmatprep.subr.mxu0 0.0
    %2775 = vmatpush1.xpose.msra.mxu0 0.0
    %2776 = vmatprep.subr.mxu0 0.0
    %2777 = vmatpush1.xpose.msra.mxu0 0.0
    %2778 = vmatprep.subr.mxu0 0.0
    %2779 = vmatpush1.xpose.msra.mxu0 0.0
    %2780 = vmatprep.subr.mxu0 0.0
    %2781 = vmatpush1.xpose.msra.mxu0 %v2748
    %2782 = vmatprep.subr.mxu0 0.0
    %2783 = vmatpush2.xpose.msra.mxu0 0.0
    %2784 = vmatprep.subr.mxu0 0.0
    %2785 = vmatpush2.xpose.msra.mxu0 0.0
    %2786 = vmatprep.subr.mxu0 0.0
    %2787 = vmatpush2.xpose.msra.mxu0 0.0
    %2788 = vmatprep.subr.mxu0 0.0
    %2789 = vmatpush2.xpose.msra.mxu0 0.0
    %2790 = vmatprep.subr.mxu0 0.0
    %2791 = vmatpush2.xpose.msra.mxu0 0.0
    %2792 = vmatprep.subr.mxu0 0.0
    %2793 = vmatpush2.xpose.msra.mxu0 0.0
    %2794 = vmatprep.subr.mxu0 0.0
    %2795 = vmatpush2.xpose.msra.mxu0 0.0
    %2796 = vmatprep.subr.mxu0 0.0
    %2797 = vmatpush2.xpose.msra.mxu0 0.0
    %2798 = vmatprep.subr.mxu0 0.0
    %2799 = vmatpush2.xpose.msra.mxu0 0.0
    %2800 = vmatprep.subr.mxu0 0.0
    %2801 = vmatpush2.xpose.msra.mxu0 0.0
    %2802 = vmatprep.subr.mxu0 0.0
    %2803 = vmatpush2.xpose.msra.mxu0 0.0
    %2804 = vmatprep.subr.mxu0 0.0
    %2805 = vmatpush2.xpose.msra.mxu0 0.0
    %2806 = vmatprep.subr.mxu0 0.0
    %2807 = vmatpush2.xpose.msra.mxu0 0.0
    %2808 = vmatprep.subr.mxu0 0.0
    %2809 = vmatpush2.xpose.msra.mxu0 0.0
    %2810 = vmatprep.subr.mxu0 0.0
    %2811 = vmatpush2.xpose.msra.mxu0 0.0
    %2812 = vmatprep.subr.mxu0 0.0
    %2813 = vmatpush2.xpose.msra.mxu0 0.0
    %2814 = vmatprep.mubr.f32.mxu0 0.0
    %2815 = vmatmul.mubr.f32.gmra.mxu0 %v2746
    %v2816 = vpop.f32.mrf.mxu0
    %v2817 = vadd.f32 0.0, %v2816
    %v2818 = vpop.f32.mrf.mxu0
    %2819 = vdwg.mxu0
    %v2820 = vmul.f32 %v2739, 0.35355338
    %v2821 = vmul.f32 %v2817, 0.35355338
    %v2822 = vsel %vm245, %v2820, -inf
    %2823 = vmax.xlane.f32.xlu0 %v2822
    %v2824 = vpop.xlane.xlu0 %2823
    %v2825 = vsel %vm245, %v2821, -inf
    %2826 = vmax.xlane.f32.xlu0 %v2825
    %v2827 = vpop.xlane.xlu0 %2826
    %v2828 = vsub.f32 %v2820, %v2824
    %v2829 = vsub.f32 %v2821, %v2827
    %v2830 = vmul.f32 %v2828, 1.442695
    %v2831 = vpow.pop %v2830
    %v2832 = vmul.f32 %v2829, 1.442695
    %v2833 = vpow.pop %v2832
    %v2834 = vsel %vm245, %v2831, 0.0
    %2835 = vadd.xlane.f32.xlu0 %v2834
    %v2836 = vpop.xlane.xlu0 %2835
    %v2837 = vsel %vm245, %v2833, 0.0
    %2838 = vadd.xlane.f32.xlu0 %v2837
    %v2839 = vpop.xlane.xlu0 %2838
    %v2840 = vrcp.pop %v2836
    %v2841 = vrcp.pop %v2839
    %v2842 = vmul.f32 %v2831, %v2840
    %v2843 = vmul.f32 %v2833, %v2841
    %2844 = vrot.lane.b32.xlu0 %v1996, 48
    %v2845 = vpop.permute.xlu0 %2844
    %v2848 = vsel %vm245, %v2842, 0
    %2850 = vmatprep.subr.mxu0 0.0
    %2851 = vmatpush1.msra.mxu0 0.0
    %2852 = vmatprep.subr.mxu0 0.0
    %2853 = vmatpush1.msra.mxu0 0.0
    %2854 = vmatprep.subr.mxu0 0.0
    %2855 = vmatpush1.msra.mxu0 0.0
    %2856 = vmatprep.subr.mxu0 0.0
    %2857 = vmatpush1.msra.mxu0 0.0
    %2858 = vmatprep.subr.mxu0 0.0
    %2859 = vmatpush1.msra.mxu0 0.0
    %2860 = vmatprep.subr.mxu0 0.0
    %2861 = vmatpush1.msra.mxu0 0.0
    %2862 = vmatprep.subr.mxu0 0.0
    %2863 = vmatpush1.msra.mxu0 0.0
    %2864 = vmatprep.subr.mxu0 0.0
    %2865 = vmatpush1.msra.mxu0 0.0
    %2866 = vmatprep.subr.mxu0 0.0
    %2867 = vmatpush1.msra.mxu0 0.0
    %2868 = vmatprep.subr.mxu0 0.0
    %2869 = vmatpush1.msra.mxu0 0.0
    %2870 = vmatprep.subr.mxu0 0.0
    %2871 = vmatpush1.msra.mxu0 0.0
    %2872 = vmatprep.subr.mxu0 0.0
    %2873 = vmatpush1.msra.mxu0 0.0
    %2874 = vmatprep.subr.mxu0 0.0
    %2875 = vmatpush1.msra.mxu0 0.0
    %2876 = vmatprep.subr.mxu0 0.0
    %2877 = vmatpush1.msra.mxu0 0.0
    %2878 = vmatprep.subr.mxu0 0.0
    %2879 = vmatpush1.msra.mxu0 0.0
    %2880 = vmatprep.subr.mxu0 0.0
    %2881 = vmatpush1.msra.mxu0 %v2845
    %2882 = vmatprep.subr.mxu0 0.0
    %2883 = vmatpush2.msra.mxu0 0.0
    %2884 = vmatprep.subr.mxu0 0.0
    %2885 = vmatpush2.msra.mxu0 0.0
    %2886 = vmatprep.subr.mxu0 0.0
    %2887 = vmatpush2.msra.mxu0 0.0
    %2888 = vmatprep.subr.mxu0 0.0
    %2889 = vmatpush2.msra.mxu0 0.0
    %2890 = vmatprep.subr.mxu0 0.0
    %2891 = vmatpush2.msra.mxu0 0.0
    %2892 = vmatprep.subr.mxu0 0.0
    %2893 = vmatpush2.msra.mxu0 0.0
    %2894 = vmatprep.subr.mxu0 0.0
    %2895 = vmatpush2.msra.mxu0 0.0
    %2896 = vmatprep.subr.mxu0 0.0
    %2897 = vmatpush2.msra.mxu0 0.0
    %2898 = vmatprep.subr.mxu0 0.0
    %2899 = vmatpush2.msra.mxu0 0.0
    %2900 = vmatprep.subr.mxu0 0.0
    %2901 = vmatpush2.msra.mxu0 0.0
    %2902 = vmatprep.subr.mxu0 0.0
    %2903 = vmatpush2.msra.mxu0 0.0
    %2904 = vmatprep.subr.mxu0 0.0
    %2905 = vmatpush2.msra.mxu0 0.0
    %2906 = vmatprep.subr.mxu0 0.0
    %2907 = vmatpush2.msra.mxu0 0.0
    %2908 = vmatprep.subr.mxu0 0.0
    %2909 = vmatpush2.msra.mxu0 0.0
    %2910 = vmatprep.subr.mxu0 0.0
    %2911 = vmatpush2.msra.mxu0 0.0
    %2912 = vmatprep.subr.mxu0 0.0
    %2913 = vmatpush2.msra.mxu0 0.0
    %2914 = vmatprep.mubr.f32.mxu0 0.0
    %2915 = vmatmul.mubr.f32.gmra.mxu0 %v2848
    %v2916 = vpop.f32.mrf.mxu0
    %v2917 = vadd.f32 0.0, %v2916
    %v2918 = vpop.f32.mrf.mxu0
    %2919 = vdwg.mxu0
    %2920 = vrot.lane.b32.xlu0 %v1999, 48
    %v2921 = vpop.permute.xlu0 %2920
    %v2924 = vsel %vm245, %v2843, 0
    %2926 = vmatprep.subr.mxu0 0.0
    %2927 = vmatpush1.msra.mxu0 0.0
    %2928 = vmatprep.subr.mxu0 0.0
    %2929 = vmatpush1.msra.mxu0 0.0
    %2930 = vmatprep.subr.mxu0 0.0
    %2931 = vmatpush1.msra.mxu0 0.0
    %2932 = vmatprep.subr.mxu0 0.0
    %2933 = vmatpush1.msra.mxu0 0.0
    %2934 = vmatprep.subr.mxu0 0.0
    %2935 = vmatpush1.msra.mxu0 0.0
    %2936 = vmatprep.subr.mxu0 0.0
    %2937 = vmatpush1.msra.mxu0 0.0
    %2938 = vmatprep.subr.mxu0 0.0
    %2939 = vmatpush1.msra.mxu0 0.0
    %2940 = vmatprep.subr.mxu0 0.0
    %2941 = vmatpush1.msra.mxu0 0.0
    %2942 = vmatprep.subr.mxu0 0.0
    %2943 = vmatpush1.msra.mxu0 0.0
    %2944 = vmatprep.subr.mxu0 0.0
    %2945 = vmatpush1.msra.mxu0 0.0
    %2946 = vmatprep.subr.mxu0 0.0
    %2947 = vmatpush1.msra.mxu0 0.0
    %2948 = vmatprep.subr.mxu0 0.0
    %2949 = vmatpush1.msra.mxu0 0.0
    %2950 = vmatprep.subr.mxu0 0.0
    %2951 = vmatpush1.msra.mxu0 0.0
    %2952 = vmatprep.subr.mxu0 0.0
    %2953 = vmatpush1.msra.mxu0 0.0
    %2954 = vmatprep.subr.mxu0 0.0
    %2955 = vmatpush1.msra.mxu0 0.0
    %2956 = vmatprep.subr.mxu0 0.0
    %2957 = vmatpush1.msra.mxu0 %v2921
    %2958 = vmatprep.subr.mxu0 0.0
    %2959 = vmatpush2.msra.mxu0 0.0
    %2960 = vmatprep.subr.mxu0 0.0
    %2961 = vmatpush2.msra.mxu0 0.0
    %2962 = vmatprep.subr.mxu0 0.0
    %2963 = vmatpush2.msra.mxu0 0.0
    %2964 = vmatprep.subr.mxu0 0.0
    %2965 = vmatpush2.msra.mxu0 0.0
    %2966 = vmatprep.subr.mxu0 0.0
    %2967 = vmatpush2.msra.mxu0 0.0
    %2968 = vmatprep.subr.mxu0 0.0
    %2969 = vmatpush2.msra.mxu0 0.0
    %2970 = vmatprep.subr.mxu0 0.0
    %2971 = vmatpush2.msra.mxu0 0.0
    %2972 = vmatprep.subr.mxu0 0.0
    %2973 = vmatpush2.msra.mxu0 0.0
    %2974 = vmatprep.subr.mxu0 0.0
    %2975 = vmatpush2.msra.mxu0 0.0
    %2976 = vmatprep.subr.mxu0 0.0
    %2977 = vmatpush2.msra.mxu0 0.0
    %2978 = vmatprep.subr.mxu0 0.0
    %2979 = vmatpush2.msra.mxu0 0.0
    %2980 = vmatprep.subr.mxu0 0.0
    %2981 = vmatpush2.msra.mxu0 0.0
    %2982 = vmatprep.subr.mxu0 0.0
    %2983 = vmatpush2.msra.mxu0 0.0
    %2984 = vmatprep.subr.mxu0 0.0
    %2985 = vmatpush2.msra.mxu0 0.0
    %2986 = vmatprep.subr.mxu0 0.0
    %2987 = vmatpush2.msra.mxu0 0.0
    %2988 = vmatprep.subr.mxu0 0.0
    %2989 = vmatpush2.msra.mxu0 0.0
    %2990 = vmatprep.mubr.f32.mxu0 0.0
    %2991 = vmatmul.mubr.f32.gmra.mxu0 %v2924
    %v2992 = vpop.f32.mrf.mxu0
    %v2993 = vadd.f32 0.0, %v2992
    %v2994 = vpop.f32.mrf.mxu0
    %2995 = vdwg.mxu0
    %2996 = vrot.lane.b32.xlu0 %v1996, 104
    %v2997 = vpop.permute.xlu0 %2996
    %2998 = vrot.lane.b32.xlu0 %v1996, 72
    %v2999 = vpop.permute.xlu0 %2998
    %v3000 = vsel %vm245, %v2997, 0
    %v3002 = vsel %vm245, %v2999, 0
    %3004 = vmatprep.subr.mxu0 0.0
    %3005 = vmatpush1.xpose.msra.mxu0 0.0
    %3006 = vmatprep.subr.mxu0 0.0
    %3007 = vmatpush1.xpose.msra.mxu0 0.0
    %3008 = vmatprep.subr.mxu0 0.0
    %3009 = vmatpush1.xpose.msra.mxu0 0.0
    %3010 = vmatprep.subr.mxu0 0.0
    %3011 = vmatpush1.xpose.msra.mxu0 0.0
    %3012 = vmatprep.subr.mxu0 0.0
    %3013 = vmatpush1.xpose.msra.mxu0 0.0
    %3014 = vmatprep.subr.mxu0 0.0
    %3015 = vmatpush1.xpose.msra.mxu0 0.0
    %3016 = vmatprep.subr.mxu0 0.0
    %3017 = vmatpush1.xpose.msra.mxu0 0.0
    %3018 = vmatprep.subr.mxu0 0.0
    %3019 = vmatpush1.xpose.msra.mxu0 0.0
    %3020 = vmatprep.subr.mxu0 0.0
    %3021 = vmatpush1.xpose.msra.mxu0 0.0
    %3022 = vmatprep.subr.mxu0 0.0
    %3023 = vmatpush1.xpose.msra.mxu0 0.0
    %3024 = vmatprep.subr.mxu0 0.0
    %3025 = vmatpush1.xpose.msra.mxu0 0.0
    %3026 = vmatprep.subr.mxu0 0.0
    %3027 = vmatpush1.xpose.msra.mxu0 0.0
    %3028 = vmatprep.subr.mxu0 0.0
    %3029 = vmatpush1.xpose.msra.mxu0 0.0
    %3030 = vmatprep.subr.mxu0 0.0
    %3031 = vmatpush1.xpose.msra.mxu0 0.0
    %3032 = vmatprep.subr.mxu0 0.0
    %3033 = vmatpush1.xpose.msra.mxu0 0.0
    %3034 = vmatprep.subr.mxu0 0.0
    %3035 = vmatpush1.xpose.msra.mxu0 %v3002
    %3036 = vmatprep.subr.mxu0 0.0
    %3037 = vmatpush2.xpose.msra.mxu0 0.0
    %3038 = vmatprep.subr.mxu0 0.0
    %3039 = vmatpush2.xpose.msra.mxu0 0.0
    %3040 = vmatprep.subr.mxu0 0.0
    %3041 = vmatpush2.xpose.msra.mxu0 0.0
    %3042 = vmatprep.subr.mxu0 0.0
    %3043 = vmatpush2.xpose.msra.mxu0 0.0
    %3044 = vmatprep.subr.mxu0 0.0
    %3045 = vmatpush2.xpose.msra.mxu0 0.0
    %3046 = vmatprep.subr.mxu0 0.0
    %3047 = vmatpush2.xpose.msra.mxu0 0.0
    %3048 = vmatprep.subr.mxu0 0.0
    %3049 = vmatpush2.xpose.msra.mxu0 0.0
    %3050 = vmatprep.subr.mxu0 0.0
    %3051 = vmatpush2.xpose.msra.mxu0 0.0
    %3052 = vmatprep.subr.mxu0 0.0
    %3053 = vmatpush2.xpose.msra.mxu0 0.0
    %3054 = vmatprep.subr.mxu0 0.0
    %3055 = vmatpush2.xpose.msra.mxu0 0.0
    %3056 = vmatprep.subr.mxu0 0.0
    %3057 = vmatpush2.xpose.msra.mxu0 0.0
    %3058 = vmatprep.subr.mxu0 0.0
    %3059 = vmatpush2.xpose.msra.mxu0 0.0
    %3060 = vmatprep.subr.mxu0 0.0
    %3061 = vmatpush2.xpose.msra.mxu0 0.0
    %3062 = vmatprep.subr.mxu0 0.0
    %3063 = vmatpush2.xpose.msra.mxu0 0.0
    %3064 = vmatprep.subr.mxu0 0.0
    %3065 = vmatpush2.xpose.msra.mxu0 0.0
    %3066 = vmatprep.subr.mxu0 0.0
    %3067 = vmatpush2.xpose.msra.mxu0 0.0
    %3068 = vmatprep.mubr.f32.mxu0 0.0
    %3069 = vmatmul.mubr.f32.gmra.mxu0 %v3000
    %v3070 = vpop.f32.mrf.mxu0
    %v3071 = vadd.f32 0.0, %v3070
    %v3072 = vpop.f32.mrf.mxu0
    %3073 = vdwg.mxu0
    %3074 = vrot.lane.b32.xlu0 %v1999, 104
    %v3075 = vpop.permute.xlu0 %3074
    %3076 = vrot.lane.b32.xlu0 %v1999, 72
    %v3077 = vpop.permute.xlu0 %3076
    %v3078 = vsel %vm245, %v3075, 0
    %v3080 = vsel %vm245, %v3077, 0
    %3082 = vmatprep.subr.mxu0 0.0
    %3083 = vmatpush1.xpose.msra.mxu0 0.0
    %3084 = vmatprep.subr.mxu0 0.0
    %3085 = vmatpush1.xpose.msra.mxu0 0.0
    %3086 = vmatprep.subr.mxu0 0.0
    %3087 = vmatpush1.xpose.msra.mxu0 0.0
    %3088 = vmatprep.subr.mxu0 0.0
    %3089 = vmatpush1.xpose.msra.mxu0 0.0
    %3090 = vmatprep.subr.mxu0 0.0
    %3091 = vmatpush1.xpose.msra.mxu0 0.0
    %3092 = vmatprep.subr.mxu0 0.0
    %3093 = vmatpush1.xpose.msra.mxu0 0.0
    %3094 = vmatprep.subr.mxu0 0.0
    %3095 = vmatpush1.xpose.msra.mxu0 0.0
    %3096 = vmatprep.subr.mxu0 0.0
    %3097 = vmatpush1.xpose.msra.mxu0 0.0
    %3098 = vmatprep.subr.mxu0 0.0
    %3099 = vmatpush1.xpose.msra.mxu0 0.0
    %3100 = vmatprep.subr.mxu0 0.0
    %3101 = vmatpush1.xpose.msra.mxu0 0.0
    %3102 = vmatprep.subr.mxu0 0.0
    %3103 = vmatpush1.xpose.msra.mxu0 0.0
    %3104 = vmatprep.subr.mxu0 0.0
    %3105 = vmatpush1.xpose.msra.mxu0 0.0
    %3106 = vmatprep.subr.mxu0 0.0
    %3107 = vmatpush1.xpose.msra.mxu0 0.0
    %3108 = vmatprep.subr.mxu0 0.0
    %3109 = vmatpush1.xpose.msra.mxu0 0.0
    %3110 = vmatprep.subr.mxu0 0.0
    %3111 = vmatpush1.xpose.msra.mxu0 0.0
    %3112 = vmatprep.subr.mxu0 0.0
    %3113 = vmatpush1.xpose.msra.mxu0 %v3080
    %3114 = vmatprep.subr.mxu0 0.0
    %3115 = vmatpush2.xpose.msra.mxu0 0.0
    %3116 = vmatprep.subr.mxu0 0.0
    %3117 = vmatpush2.xpose.msra.mxu0 0.0
    %3118 = vmatprep.subr.mxu0 0.0
    %3119 = vmatpush2.xpose.msra.mxu0 0.0
    %3120 = vmatprep.subr.mxu0 0.0
    %3121 = vmatpush2.xpose.msra.mxu0 0.0
    %3122 = vmatprep.subr.mxu0 0.0
    %3123 = vmatpush2.xpose.msra.mxu0 0.0
    %3124 = vmatprep.subr.mxu0 0.0
    %3125 = vmatpush2.xpose.msra.mxu0 0.0
    %3126 = vmatprep.subr.mxu0 0.0
    %3127 = vmatpush2.xpose.msra.mxu0 0.0
    %3128 = vmatprep.subr.mxu0 0.0
    %3129 = vmatpush2.xpose.msra.mxu0 0.0
    %3130 = vmatprep.subr.mxu0 0.0
    %3131 = vmatpush2.xpose.msra.mxu0 0.0
    %3132 = vmatprep.subr.mxu0 0.0
    %3133 = vmatpush2.xpose.msra.mxu0 0.0
    %3134 = vmatprep.subr.mxu0 0.0
    %3135 = vmatpush2.xpose.msra.mxu0 0.0
    %3136 = vmatprep.subr.mxu0 0.0
    %3137 = vmatpush2.xpose.msra.mxu0 0.0
    %3138 = vmatprep.subr.mxu0 0.0
    %3139 = vmatpush2.xpose.msra.mxu0 0.0
    %3140 = vmatprep.subr.mxu0 0.0
    %3141 = vmatpush2.xpose.msra.mxu0 0.0
    %3142 = vmatprep.subr.mxu0 0.0
    %3143 = vmatpush2.xpose.msra.mxu0 0.0
    %3144 = vmatprep.subr.mxu0 0.0
    %3145 = vmatpush2.xpose.msra.mxu0 0.0
    %3146 = vmatprep.mubr.f32.mxu0 0.0
    %3147 = vmatmul.mubr.f32.gmra.mxu0 %v3078
    %v3148 = vpop.f32.mrf.mxu0
    %v3149 = vadd.f32 0.0, %v3148
    %v3150 = vpop.f32.mrf.mxu0
    %3151 = vdwg.mxu0
    %v3152 = vmul.f32 %v3071, 0.35355338
    %v3153 = vmul.f32 %v3149, 0.35355338
    %v3154 = vsel %vm245, %v3152, -inf
    %3155 = vmax.xlane.f32.xlu0 %v3154
    %v3156 = vpop.xlane.xlu0 %3155
    %v3157 = vsel %vm245, %v3153, -inf
    %3158 = vmax.xlane.f32.xlu0 %v3157
    %v3159 = vpop.xlane.xlu0 %3158
    %v3160 = vsub.f32 %v3152, %v3156
    %v3161 = vsub.f32 %v3153, %v3159
    %v3162 = vmul.f32 %v3160, 1.442695
    %v3163 = vpow.pop %v3162
    %v3164 = vmul.f32 %v3161, 1.442695
    %v3165 = vpow.pop %v3164
    %v3166 = vsel %vm245, %v3163, 0.0
    %3167 = vadd.xlane.f32.xlu0 %v3166
    %v3168 = vpop.xlane.xlu0 %3167
    %v3169 = vsel %vm245, %v3165, 0.0
    %3170 = vadd.xlane.f32.xlu0 %v3169
    %v3171 = vpop.xlane.xlu0 %3170
    %v3172 = vrcp.pop %v3168
    %v3173 = vrcp.pop %v3171
    %v3174 = vmul.f32 %v3163, %v3172
    %v3175 = vmul.f32 %v3165, %v3173
    %3176 = vrot.lane.b32.xlu0 %v1996, 40
    %v3177 = vpop.permute.xlu0 %3176
    %v3180 = vsel %vm245, %v3174, 0
    %3182 = vmatprep.subr.mxu0 0.0
    %3183 = vmatpush1.msra.mxu0 0.0
    %3184 = vmatprep.subr.mxu0 0.0
    %3185 = vmatpush1.msra.mxu0 0.0
    %3186 = vmatprep.subr.mxu0 0.0
    %3187 = vmatpush1.msra.mxu0 0.0
    %3188 = vmatprep.subr.mxu0 0.0
    %3189 = vmatpush1.msra.mxu0 0.0
    %3190 = vmatprep.subr.mxu0 0.0
    %3191 = vmatpush1.msra.mxu0 0.0
    %3192 = vmatprep.subr.mxu0 0.0
    %3193 = vmatpush1.msra.mxu0 0.0
    %3194 = vmatprep.subr.mxu0 0.0
    %3195 = vmatpush1.msra.mxu0 0.0
    %3196 = vmatprep.subr.mxu0 0.0
    %3197 = vmatpush1.msra.mxu0 0.0
    %3198 = vmatprep.subr.mxu0 0.0
    %3199 = vmatpush1.msra.mxu0 0.0
    %3200 = vmatprep.subr.mxu0 0.0
    %3201 = vmatpush1.msra.mxu0 0.0
    %3202 = vmatprep.subr.mxu0 0.0
    %3203 = vmatpush1.msra.mxu0 0.0
    %3204 = vmatprep.subr.mxu0 0.0
    %3205 = vmatpush1.msra.mxu0 0.0
    %3206 = vmatprep.subr.mxu0 0.0
    %3207 = vmatpush1.msra.mxu0 0.0
    %3208 = vmatprep.subr.mxu0 0.0
    %3209 = vmatpush1.msra.mxu0 0.0
    %3210 = vmatprep.subr.mxu0 0.0
    %3211 = vmatpush1.msra.mxu0 0.0
    %3212 = vmatprep.subr.mxu0 0.0
    %3213 = vmatpush1.msra.mxu0 %v3177
    %3214 = vmatprep.subr.mxu0 0.0
    %3215 = vmatpush2.msra.mxu0 0.0
    %3216 = vmatprep.subr.mxu0 0.0
    %3217 = vmatpush2.msra.mxu0 0.0
    %3218 = vmatprep.subr.mxu0 0.0
    %3219 = vmatpush2.msra.mxu0 0.0
    %3220 = vmatprep.subr.mxu0 0.0
    %3221 = vmatpush2.msra.mxu0 0.0
    %3222 = vmatprep.subr.mxu0 0.0
    %3223 = vmatpush2.msra.mxu0 0.0
    %3224 = vmatprep.subr.mxu0 0.0
    %3225 = vmatpush2.msra.mxu0 0.0
    %3226 = vmatprep.subr.mxu0 0.0
    %3227 = vmatpush2.msra.mxu0 0.0
    %3228 = vmatprep.subr.mxu0 0.0
    %3229 = vmatpush2.msra.mxu0 0.0
    %3230 = vmatprep.subr.mxu0 0.0
    %3231 = vmatpush2.msra.mxu0 0.0
    %3232 = vmatprep.subr.mxu0 0.0
    %3233 = vmatpush2.msra.mxu0 0.0
    %3234 = vmatprep.subr.mxu0 0.0
    %3235 = vmatpush2.msra.mxu0 0.0
    %3236 = vmatprep.subr.mxu0 0.0
    %3237 = vmatpush2.msra.mxu0 0.0
    %3238 = vmatprep.subr.mxu0 0.0
    %3239 = vmatpush2.msra.mxu0 0.0
    %3240 = vmatprep.subr.mxu0 0.0
    %3241 = vmatpush2.msra.mxu0 0.0
    %3242 = vmatprep.subr.mxu0 0.0
    %3243 = vmatpush2.msra.mxu0 0.0
    %3244 = vmatprep.subr.mxu0 0.0
    %3245 = vmatpush2.msra.mxu0 0.0
    %3246 = vmatprep.mubr.f32.mxu0 0.0
    %3247 = vmatmul.mubr.f32.gmra.mxu0 %v3180
    %v3248 = vpop.f32.mrf.mxu0
    %v3249 = vadd.f32 0.0, %v3248
    %v3250 = vpop.f32.mrf.mxu0
    %3251 = vdwg.mxu0
    %3252 = vrot.lane.b32.xlu0 %v1999, 40
    %v3253 = vpop.permute.xlu0 %3252
    %v3256 = vsel %vm245, %v3175, 0
    %3258 = vmatprep.subr.mxu0 0.0
    %3259 = vmatpush1.msra.mxu0 0.0
    %3260 = vmatprep.subr.mxu0 0.0
    %3261 = vmatpush1.msra.mxu0 0.0
    %3262 = vmatprep.subr.mxu0 0.0
    %3263 = vmatpush1.msra.mxu0 0.0
    %3264 = vmatprep.subr.mxu0 0.0
    %3265 = vmatpush1.msra.mxu0 0.0
    %3266 = vmatprep.subr.mxu0 0.0
    %3267 = vmatpush1.msra.mxu0 0.0
    %3268 = vmatprep.subr.mxu0 0.0
    %3269 = vmatpush1.msra.mxu0 0.0
    %3270 = vmatprep.subr.mxu0 0.0
    %3271 = vmatpush1.msra.mxu0 0.0
    %3272 = vmatprep.subr.mxu0 0.0
    %3273 = vmatpush1.msra.mxu0 0.0
    %3274 = vmatprep.subr.mxu0 0.0
    %3275 = vmatpush1.msra.mxu0 0.0
    %3276 = vmatprep.subr.mxu0 0.0
    %3277 = vmatpush1.msra.mxu0 0.0
    %3278 = vmatprep.subr.mxu0 0.0
    %3279 = vmatpush1.msra.mxu0 0.0
    %3280 = vmatprep.subr.mxu0 0.0
    %3281 = vmatpush1.msra.mxu0 0.0
    %3282 = vmatprep.subr.mxu0 0.0
    %3283 = vmatpush1.msra.mxu0 0.0
    %3284 = vmatprep.subr.mxu0 0.0
    %3285 = vmatpush1.msra.mxu0 0.0
    %3286 = vmatprep.subr.mxu0 0.0
    %3287 = vmatpush1.msra.mxu0 0.0
    %3288 = vmatprep.subr.mxu0 0.0
    %3289 = vmatpush1.msra.mxu0 %v3253
    %3290 = vmatprep.subr.mxu0 0.0
    %3291 = vmatpush2.msra.mxu0 0.0
    %3292 = vmatprep.subr.mxu0 0.0
    %3293 = vmatpush2.msra.mxu0 0.0
    %3294 = vmatprep.subr.mxu0 0.0
    %3295 = vmatpush2.msra.mxu0 0.0
    %3296 = vmatprep.subr.mxu0 0.0
    %3297 = vmatpush2.msra.mxu0 0.0
    %3298 = vmatprep.subr.mxu0 0.0
    %3299 = vmatpush2.msra.mxu0 0.0
    %3300 = vmatprep.subr.mxu0 0.0
    %3301 = vmatpush2.msra.mxu0 0.0
    %3302 = vmatprep.subr.mxu0 0.0
    %3303 = vmatpush2.msra.mxu0 0.0
    %3304 = vmatprep.subr.mxu0 0.0
    %3305 = vmatpush2.msra.mxu0 0.0
    %3306 = vmatprep.subr.mxu0 0.0
    %3307 = vmatpush2.msra.mxu0 0.0
    %3308 = vmatprep.subr.mxu0 0.0
    %3309 = vmatpush2.msra.mxu0 0.0
    %3310 = vmatprep.subr.mxu0 0.0
    %3311 = vmatpush2.msra.mxu0 0.0
    %3312 = vmatprep.subr.mxu0 0.0
    %3313 = vmatpush2.msra.mxu0 0.0
    %3314 = vmatprep.subr.mxu0 0.0
    %3315 = vmatpush2.msra.mxu0 0.0
    %3316 = vmatprep.subr.mxu0 0.0
    %3317 = vmatpush2.msra.mxu0 0.0
    %3318 = vmatprep.subr.mxu0 0.0
    %3319 = vmatpush2.msra.mxu0 0.0
    %3320 = vmatprep.subr.mxu0 0.0
    %3321 = vmatpush2.msra.mxu0 0.0
    %3322 = vmatprep.mubr.f32.mxu0 0.0
    %3323 = vmatmul.mubr.f32.gmra.mxu0 %v3256
    %v3324 = vpop.f32.mrf.mxu0
    %v3325 = vadd.f32 0.0, %v3324
    %v3326 = vpop.f32.mrf.mxu0
    %3327 = vdwg.mxu0
    %3330 = vrot.lane.b32.xlu0 %v2585, 8
    %v3331 = vpop.permute.xlu0 %3330
    %3332 = vrot.lane.b32.xlu0 %v2661, 8
    %v3333 = vpop.permute.xlu0 %3332
    %3338 = vrot.lane.b32.xlu0 %v2917, 16
    %v3339 = vpop.permute.xlu0 %3338
    %3340 = vrot.lane.b32.xlu0 %v2993, 16
    %v3341 = vpop.permute.xlu0 %3340
    %3346 = vrot.lane.b32.xlu0 %v3249, 24
    %v3347 = vpop.permute.xlu0 %3346
    %3348 = vrot.lane.b32.xlu0 %v3325, 24
    %v3349 = vpop.permute.xlu0 %3348
    %v3352 = vsel %vm245, %v2253, %v3331
    %v3353 = vsel %vm245, %v2329, %v3333
    %v3354 = vsel %vm1595, %v3352, %v3339
    %v3355 = vsel %vm1595, %v3353, %v3341
    %v3356 = vsel %vm1598, %v3354, %v3347
    %v3357 = vsel %vm1598, %v3355, %v3349
    %v3358 = vpack.c.bf16 %v3357, %v3356
    %s3359 = scalar_lea.vmem %s5, 16
    %v3360 = vld [vmem:[%s3359] sm:$0xf]
    %v3361 = vld [vmem:[%s3359 + $0x4] sm:$0xf]
    %v3362 = vld [vmem:[%s3359 + $0x8] sm:$0xf]
    %v3363 = vld [vmem:[%s3359 + $0xc] sm:$0xf]
    %s3364 = scalar_lea.vmem %s6, 1
    %v3365 = vld [vmem:[%s3364] sm:$0x1]
    %v3367 = vlaneseq
    %v3368 = vshrl.u32 %v3367, 7
    %v3369 = vsub.s32 0, %v3368
    %v3370 = vrot.slane %v3365, %v3369
    %v3376 = vunpack.c.l.b16 %v3360
    %v3377 = vunpack.c.l.b16 %v3361
    %v3378 = vunpack.c.l.b16 %v3362
    %v3379 = vunpack.c.l.b16 %v3363
    %v3380 = vpack.c.b16 %v3377, %v3376
    %v3381 = vpack.c.b16 %v3379, %v3378
    %v3385 = vsel %vm197, %v3358, 0
    %3387 = vmatprep.subr.bf16.mxu0 0
    %3388 = vmatpush1.bf16.msra.mxu0 0
    %3389 = vmatprep.subr.bf16.mxu0 0
    %3390 = vmatpush1.bf16.msra.mxu0 0
    %3391 = vmatprep.subr.bf16.mxu0 0
    %3392 = vmatpush1.bf16.msra.mxu0 0
    %3393 = vmatprep.subr.bf16.mxu0 0
    %3394 = vmatpush1.bf16.msra.mxu0 0
    %3395 = vmatprep.subr.bf16.mxu0 0
    %3396 = vmatpush1.bf16.msra.mxu0 0
    %3397 = vmatprep.subr.bf16.mxu0 0
    %3398 = vmatpush1.bf16.msra.mxu0 0
    %3399 = vmatprep.subr.bf16.mxu0 0
    %3400 = vmatpush1.bf16.msra.mxu0 %v3381
    %3401 = vmatprep.subr.bf16.mxu0 0
    %3402 = vmatpush1.bf16.msra.mxu0 %v3380
    %3403 = vmatprep.subr.bf16.mxu0 0
    %3404 = vmatpush2.bf16.msra.mxu0 0
    %3405 = vmatprep.subr.bf16.mxu0 0
    %3406 = vmatpush2.bf16.msra.mxu0 0
    %3407 = vmatprep.subr.bf16.mxu0 0
    %3408 = vmatpush2.bf16.msra.mxu0 0
    %3409 = vmatprep.subr.bf16.mxu0 0
    %3410 = vmatpush2.bf16.msra.mxu0 0
    %3411 = vmatprep.subr.bf16.mxu0 0
    %3412 = vmatpush2.bf16.msra.mxu0 0
    %3413 = vmatprep.subr.bf16.mxu0 0
    %3414 = vmatpush2.bf16.msra.mxu0 0
    %3415 = vmatprep.subr.bf16.mxu0 0
    %3416 = vmatpush2.bf16.msra.mxu0 0
    %3417 = vmatprep.subr.bf16.mxu0 0
    %3418 = vmatpush2.bf16.msra.mxu0 0
    %3419 = vmatprep.mubr.bf16.mxu0 0
    %3420 = vmatmul.mubr.bf16.gmra.mxu0 %v3385
    %v3421 = vpop.f32.mrf.mxu0
    %v3422 = vadd.f32 %v3370, %v3421
    %v3423 = vpop.f32.mrf.mxu0
    %v3424 = vpop.f32.mrf.mxu0
    %v3425 = vadd.f32 %v3370, %v3424
    %v3426 = vpop.f32.mrf.mxu0
    %3427 = vdwg.mxu0
    %v3428 = vadd.f32 %v1930, %v3422
    %v3429 = vadd.f32 %v1931, %v3425
    %s3430 = scalar_lea.vmem %s7, 1
    %v3431 = vld [vmem:[%s3430] sm:$0x1]
    %s3432 = scalar_lea.vmem %s8, 1
    %v3433 = vld [vmem:[%s3432] sm:$0x1]
    %v3434 = vsel %vm197, %v3428, 0.0
    %3435 = vadd.xlane.f32.xlu0 %v3434
    %v3436 = vpop.xlane.xlu0 %3435
    %v3437 = vsel %vm197, %v3429, 0.0
    %3438 = vadd.xlane.f32.xlu0 %v3437
    %v3439 = vpop.xlane.xlu0 %3438
    %v3440 = vmul.f32 %v3436, %v1679
    %v3441 = vmul.f32 %v3439, %v1679
    %v3442 = vsub.f32 %v3428, %v3440
    %v3443 = vsub.f32 %v3429, %v3441
    %v3444 = vmul.f32 %v3442, %v3442
    %v3445 = vmul.f32 %v3443, %v3443
    %v3446 = vsel %vm197, %v3444, 0.0
    %3447 = vadd.xlane.f32.xlu0 %v3446
    %v3448 = vpop.xlane.xlu0 %3447
    %v3449 = vsel %vm197, %v3445, 0.0
    %3450 = vadd.xlane.f32.xlu0 %v3449
    %v3451 = vpop.xlane.xlu0 %3450
    %v3452 = vmul.f32 %v3448, %v1679
    %v3453 = vmul.f32 %v3451, %v1679
    %v3454 = vadd.f32 %v3452, 1e-05
    %v3455 = vadd.f32 %v3453, 1e-05
    %v3456 = vrsqrt.pop %v3454
    %v3457 = vrsqrt.pop %v3455
    %v3458 = vmul.f32 %v3442, %v3456
    %v3459 = vmul.f32 %v3443, %v3457
    %v3461 = vlaneseq
    %v3462 = vshrl.u32 %v3461, 7
    %v3463 = vsub.s32 0, %v3462
    %v3464 = vrot.slane %v3431, %v3463
    %v3466 = vmul.f32 %v3458, %v3464
    %v3467 = vmul.f32 %v3459, %v3464
    %v3469 = vlaneseq
    %v3470 = vshrl.u32 %v3469, 7
    %v3471 = vsub.s32 0, %v3470
    %v3472 = vrot.slane %v3433, %v3471
    %v3474 = vadd.f32 %v3466, %v3472
    %v3475 = vadd.f32 %v3467, %v3472
    %v3476 = vpack.c.bf16 %v3475, %v3474
    %s3477 = scalar_lea.vmem %s9, 16
    %v3478 = vld [vmem:[%s3477] sm:$0xf]
    %v3479 = vld [vmem:[%s3477 + $0x4] sm:$0xf]
    %v3480 = vld [vmem:[%s3477 + $0x8] sm:$0xf]
    %v3481 = vld [vmem:[%s3477 + $0xc] sm:$0xf]
    %s3482 = scalar_lea.vmem %s10, 1
    %v3483 = vld [vmem:[%s3482] sm:$0x1]
    %v3485 = vlaneseq
    %v3486 = vshrl.u32 %v3485, 7
    %v3487 = vsub.s32 0, %v3486
    %v3488 = vrot.slane %v3483, %v3487
    %v3494 = vunpack.c.l.b16 %v3478
    %v3495 = vunpack.c.l.b16 %v3479
    %v3496 = vunpack.c.l.b16 %v3480
    %v3497 = vunpack.c.l.b16 %v3481
    %v3498 = vpack.c.b16 %v3495, %v3494
    %v3499 = vpack.c.b16 %v3497, %v3496
    %v3503 = vsel %vm197, %v3476, 0
    %3505 = vmatprep.subr.bf16.mxu0 0
    %3506 = vmatpush1.bf16.msra.mxu0 0
    %3507 = vmatprep.subr.bf16.mxu0 0
    %3508 = vmatpush1.bf16.msra.mxu0 0
    %3509 = vmatprep.subr.bf16.mxu0 0
    %3510 = vmatpush1.bf16.msra.mxu0 0
    %3511 = vmatprep.subr.bf16.mxu0 0
    %3512 = vmatpush1.bf16.msra.mxu0 0
    %3513 = vmatprep.subr.bf16.mxu0 0
    %3514 = vmatpush1.bf16.msra.mxu0 0
    %3515 = vmatprep.subr.bf16.mxu0 0
    %3516 = vmatpush1.bf16.msra.mxu0 0
    %3517 = vmatprep.subr.bf16.mxu0 0
    %3518 = vmatpush1.bf16.msra.mxu0 %v3499
    %3519 = vmatprep.subr.bf16.mxu0 0
    %3520 = vmatpush1.bf16.msra.mxu0 %v3498
    %3521 = vmatprep.subr.bf16.mxu0 0
    %3522 = vmatpush2.bf16.msra.mxu0 0
    %3523 = vmatprep.subr.bf16.mxu0 0
    %3524 = vmatpush2.bf16.msra.mxu0 0
    %3525 = vmatprep.subr.bf16.mxu0 0
    %3526 = vmatpush2.bf16.msra.mxu0 0
    %3527 = vmatprep.subr.bf16.mxu0 0
    %3528 = vmatpush2.bf16.msra.mxu0 0
    %3529 = vmatprep.subr.bf16.mxu0 0
    %3530 = vmatpush2.bf16.msra.mxu0 0
    %3531 = vmatprep.subr.bf16.mxu0 0
    %3532 = vmatpush2.bf16.msra.mxu0 0
    %3533 = vmatprep.subr.bf16.mxu0 0
    %3534 = vmatpush2.bf16.msra.mxu0 0
    %3535 = vmatprep.subr.bf16.mxu0 0
    %3536 = vmatpush2.bf16.msra.mxu0 0
    %3537 = vmatprep.mubr.bf16.mxu0 0
    %3538 = vmatmul.mubr.bf16.gmra.mxu0 %v3503
    %v3539 = vpop.f32.mrf.mxu0
    %v3540 = vadd.f32 %v3488, %v3539
    %v3541 = vpop.f32.mrf.mxu0
    %v3542 = vpop.f32.mrf.mxu0
    %v3543 = vadd.f32 %v3488, %v3542
    %v3544 = vpop.f32.mrf.mxu0
    %3545 = vdwg.mxu0
    %v3546 = vmul.f32 %v3540, 0.5
    %v3547 = vmul.f32 %v3543, 0.5
    %v3548 = vmul.f32 %v3540, 0.044715
    %v3549 = vmul.f32 %v3543, 0.044715
    %v3550 = vmul.f32 %v3548, %v3540
    %v3551 = vmul.f32 %v3549, %v3543
    %v3552 = vmul.f32 %v3550, %v3540
    %v3553 = vmul.f32 %v3551, %v3543
    %v3554 = vadd.f32 %v3540, %v3552
    %v3555 = vadd.f32 %v3543, %v3553
    %v3556 = vmul.f32 %v3554, 0.7978846
    %v3557 = vmul.f32 %v3555, 0.7978846
    %v3558 = vtanh.pop %v3556
    %v3559 = vtanh.pop %v3557
    %v3560 = vadd.f32 %v3558, 1.0
    %v3561 = vadd.f32 %v3559, 1.0
    %v3562 = vmul.f32 %v3546, %v3560
    %v3563 = vmul.f32 %v3547, %v3561
    %v3564 = vpack.c.bf16 %v3563, %v3562
    %s3565 = scalar_lea.vmem %s11, 32
    %v3566 = vld [vmem:[%s3565] sm:$0xf]
    %v3567 = vld [vmem:[%s3565 + $0x4] sm:$0xf]
    %v3568 = vld [vmem:[%s3565 + $0x8] sm:$0xf]
    %v3569 = vld [vmem:[%s3565 + $0xc] sm:$0xf]
    %v3570 = vld [vmem:[%s3565 + $0x10] sm:$0xf]
    %v3571 = vld [vmem:[%s3565 + $0x14] sm:$0xf]
    %v3572 = vld [vmem:[%s3565 + $0x18] sm:$0xf]
    %v3573 = vld [vmem:[%s3565 + $0x1c] sm:$0xf]
    %s3574 = scalar_lea.vmem %s12, 1
    %v3575 = vld [vmem:[%s3574] sm:$0x1]
    %v3577 = vlaneseq
    %v3578 = vshrl.u32 %v3577, 7
    %v3579 = vsub.s32 0, %v3578
    %v3580 = vrot.slane %v3575, %v3579
    %v3590 = vunpack.c.l.b16 %v3566
    %v3591 = vunpack.c.l.b16 %v3567
    %v3592 = vunpack.c.l.b16 %v3568
    %v3593 = vunpack.c.l.b16 %v3569
    %v3594 = vunpack.c.l.b16 %v3570
    %v3595 = vunpack.c.l.b16 %v3571
    %v3596 = vunpack.c.l.b16 %v3572
    %v3597 = vunpack.c.l.b16 %v3573
    %v3598 = vpack.c.b16 %v3591, %v3590
    %v3599 = vpack.c.b16 %v3593, %v3592
    %v3600 = vpack.c.b16 %v3595, %v3594
    %v3601 = vpack.c.b16 %v3597, %v3596
    %v3607 = vsel %vm88, %v3564, 0
    %3609 = vmatprep.subr.bf16.mxu0 0
    %3610 = vmatpush1.bf16.msra.mxu0 0
    %3611 = vmatprep.subr.bf16.mxu0 0
    %3612 = vmatpush1.bf16.msra.mxu0 0
    %3613 = vmatprep.subr.bf16.mxu0 0
    %3614 = vmatpush1.bf16.msra.mxu0 0
    %3615 = vmatprep.subr.bf16.mxu0 0
    %3616 = vmatpush1.bf16.msra.mxu0 0
    %3617 = vmatprep.subr.bf16.mxu0 0
    %3618 = vmatpush1.bf16.msra.mxu0 %v3601
    %3619 = vmatprep.subr.bf16.mxu0 0
    %3620 = vmatpush1.bf16.msra.mxu0 %v3600
    %3621 = vmatprep.subr.bf16.mxu0 0
    %3622 = vmatpush1.bf16.msra.mxu0 %v3599
    %3623 = vmatprep.subr.bf16.mxu0 0
    %3624 = vmatpush1.bf16.msra.mxu0 %v3598
    %3625 = vmatprep.subr.bf16.mxu0 0
    %3626 = vmatpush2.bf16.msra.mxu0 0
    %3627 = vmatprep.subr.bf16.mxu0 0
    %3628 = vmatpush2.bf16.msra.mxu0 0
    %3629 = vmatprep.subr.bf16.mxu0 0
    %3630 = vmatpush2.bf16.msra.mxu0 0
    %3631 = vmatprep.subr.bf16.mxu0 0
    %3632 = vmatpush2.bf16.msra.mxu0 0
    %3633 = vmatprep.subr.bf16.mxu0 0
    %3634 = vmatpush2.bf16.msra.mxu0 0
    %3635 = vmatprep.subr.bf16.mxu0 0
    %3636 = vmatpush2.bf16.msra.mxu0 0
    %3637 = vmatprep.subr.bf16.mxu0 0
    %3638 = vmatpush2.bf16.msra.mxu0 0
    %3639 = vmatprep.subr.bf16.mxu0 0
    %3640 = vmatpush2.bf16.msra.mxu0 0
    %3641 = vmatprep.mubr.bf16.mxu0 0
    %3642 = vmatmul.mubr.bf16.gmra.mxu0 %v3607
    %v3643 = vpop.f32.mrf.mxu0
    %v3644 = vadd.f32 %v3580, %v3643
    %v3645 = vpop.f32.mrf.mxu0
    %v3646 = vpop.f32.mrf.mxu0
    %v3647 = vadd.f32 %v3580, %v3646
    %v3648 = vpop.f32.mrf.mxu0
    %3649 = vdwg.mxu0
    %v3650 = vadd.f32 %v3474, %v3644
    %v3651 = vadd.f32 %v3475, %v3647
    %s3652 = scalar_lea.vmem %s13, 1
    %v3653 = vld [vmem:[%s3652] sm:$0x1]
    %s3654 = scalar_lea.vmem %s14, 1
    %v3655 = vld [vmem:[%s3654] sm:$0x1]
    %v3656 = vsel %vm197, %v3650, 0.0
    %3657 = vadd.xlane.f32.xlu0 %v3656
    %v3658 = vpop.xlane.xlu0 %3657
    %v3659 = vsel %vm197, %v3651, 0.0
    %3660 = vadd.xlane.f32.xlu0 %v3659
    %v3661 = vpop.xlane.xlu0 %3660
    %v3662 = vmul.f32 %v3658, %v1679
    %v3663 = vmul.f32 %v3661, %v1679
    %v3664 = vsub.f32 %v3650, %v3662
    %v3665 = vsub.f32 %v3651, %v3663
    %v3666 = vmul.f32 %v3664, %v3664
    %v3667 = vmul.f32 %v3665, %v3665
    %v3668 = vsel %vm197, %v3666, 0.0
    %3669 = vadd.xlane.f32.xlu0 %v3668
    %v3670 = vpop.xlane.xlu0 %3669
    %v3671 = vsel %vm197, %v3667, 0.0
    %3672 = vadd.xlane.f32.xlu0 %v3671
    %v3673 = vpop.xlane.xlu0 %3672
    %v3674 = vmul.f32 %v3670, %v1679
    %v3675 = vmul.f32 %v3673, %v1679
    %v3676 = vadd.f32 %v3674, 1e-05
    %v3677 = vadd.f32 %v3675, 1e-05
    %v3678 = vrsqrt.pop %v3676
    %v3679 = vrsqrt.pop %v3677
    %v3680 = vmul.f32 %v3664, %v3678
    %v3681 = vmul.f32 %v3665, %v3679
    %v3683 = vlaneseq
    %v3684 = vshrl.u32 %v3683, 7
    %v3685 = vsub.s32 0, %v3684
    %v3686 = vrot.slane %v3653, %v3685
    %v3688 = vmul.f32 %v3680, %v3686
    %v3689 = vmul.f32 %v3681, %v3686
    %v3691 = vlaneseq
    %v3692 = vshrl.u32 %v3691, 7
    %v3693 = vsub.s32 0, %v3692
    %v3694 = vrot.slane %v3655, %v3693
    %v3696 = vadd.f32 %v3688, %v3694
    %v3697 = vadd.f32 %v3689, %v3694
    %v3698 = vld [vmem:[%s15] sm:$0x1]
    %v3699 = vld [vmem:[%s16] sm:$0x1]
    %v3700 = vsel %vm197, %v3696, 0.0
    %3701 = vadd.xlane.f32.xlu0 %v3700
    %v3702 = vpop.xlane.xlu0 %3701
    %v3703 = vsel %vm197, %v3697, 0.0
    %3704 = vadd.xlane.f32.xlu0 %v3703
    %v3705 = vpop.xlane.xlu0 %3704
    %v3706 = vmul.f32 %v3702, %v1679
    %v3707 = vmul.f32 %v3705, %v1679
    %v3708 = vsub.f32 %v3696, %v3706
    %v3709 = vsub.f32 %v3697, %v3707
    %v3710 = vmul.f32 %v3708, %v3708
    %v3711 = vmul.f32 %v3709, %v3709
    %v3712 = vsel %vm197, %v3710, 0.0
    %3713 = vadd.xlane.f32.xlu0 %v3712
    %v3714 = vpop.xlane.xlu0 %3713
    %v3715 = vsel %vm197, %v3711, 0.0
    %3716 = vadd.xlane.f32.xlu0 %v3715
    %v3717 = vpop.xlane.xlu0 %3716
    %v3718 = vmul.f32 %v3714, %v1679
    %v3719 = vmul.f32 %v3717, %v1679
    %v3720 = vadd.f32 %v3718, 1e-05
    %v3721 = vadd.f32 %v3719, 1e-05
    %v3722 = vrsqrt.pop %v3720
    %v3723 = vrsqrt.pop %v3721
    %v3724 = vmul.f32 %v3708, %v3722
    %v3725 = vmul.f32 %v3709, %v3723
    %v3727 = vlaneseq
    %v3728 = vshrl.u32 %v3727, 7
    %v3729 = vsub.s32 0, %v3728
    %v3730 = vrot.slane %v3698, %v3729
    %v3732 = vmul.f32 %v3724, %v3730
    %v3733 = vmul.f32 %v3725, %v3730
    %v3735 = vlaneseq
    %v3736 = vshrl.u32 %v3735, 7
    %v3737 = vsub.s32 0, %v3736
    %v3738 = vrot.slane %v3699, %v3737
    %v3740 = vadd.f32 %v3732, %v3738
    %v3741 = vadd.f32 %v3733, %v3738
    %v3742 = vpack.c.bf16 %v3741, %v3740
    %v3743 = vld [vmem:[%s17] sm:$0xf]
    %v3744 = vld [vmem:[%s17 + $0x4] sm:$0xf]
    %v3745 = vld [vmem:[%s17 + $0x8] sm:$0xf]
    %v3746 = vld [vmem:[%s17 + $0xc] sm:$0xf]
    %v3747 = vld [vmem:[%s18] sm:$0x1]
    %v3749 = vlaneseq
    %v3750 = vshrl.u32 %v3749, 7
    %v3751 = vsub.s32 0, %v3750
    %v3752 = vrot.slane %v3747, %v3751
    %v3758 = vunpack.c.l.b16 %v3743
    %v3759 = vunpack.c.l.b16 %v3744
    %v3760 = vunpack.c.l.b16 %v3745
    %v3761 = vunpack.c.l.b16 %v3746
    %v3762 = vpack.c.b16 %v3759, %v3758
    %v3763 = vpack.c.b16 %v3761, %v3760
    %v3767 = vsel %vm197, %v3742, 0
    %3769 = vmatprep.subr.bf16.mxu0 0
    %3770 = vmatpush1.bf16.msra.mxu0 0
    %3771 = vmatprep.subr.bf16.mxu0 0
    %3772 = vmatpush1.bf16.msra.mxu0 0
    %3773 = vmatprep.subr.bf16.mxu0 0
    %3774 = vmatpush1.bf16.msra.mxu0 0
    %3775 = vmatprep.subr.bf16.mxu0 0
    %3776 = vmatpush1.bf16.msra.mxu0 0
    %3777 = vmatprep.subr.bf16.mxu0 0
    %3778 = vmatpush1.bf16.msra.mxu0 0
    %3779 = vmatprep.subr.bf16.mxu0 0
    %3780 = vmatpush1.bf16.msra.mxu0 0
    %3781 = vmatprep.subr.bf16.mxu0 0
    %3782 = vmatpush1.bf16.msra.mxu0 %v3763
    %3783 = vmatprep.subr.bf16.mxu0 0
    %3784 = vmatpush1.bf16.msra.mxu0 %v3762
    %3785 = vmatprep.subr.bf16.mxu0 0
    %3786 = vmatpush2.bf16.msra.mxu0 0
    %3787 = vmatprep.subr.bf16.mxu0 0
    %3788 = vmatpush2.bf16.msra.mxu0 0
    %3789 = vmatprep.subr.bf16.mxu0 0
    %3790 = vmatpush2.bf16.msra.mxu0 0
    %3791 = vmatprep.subr.bf16.mxu0 0
    %3792 = vmatpush2.bf16.msra.mxu0 0
    %3793 = vmatprep.subr.bf16.mxu0 0
    %3794 = vmatpush2.bf16.msra.mxu0 0
    %3795 = vmatprep.subr.bf16.mxu0 0
    %3796 = vmatpush2.bf16.msra.mxu0 0
    %3797 = vmatprep.subr.bf16.mxu0 0
    %3798 = vmatpush2.bf16.msra.mxu0 0
    %3799 = vmatprep.subr.bf16.mxu0 0
    %3800 = vmatpush2.bf16.msra.mxu0 0
    %3801 = vmatprep.mubr.bf16.mxu0 0
    %3802 = vmatmul.mubr.bf16.gmra.mxu0 %v3767
    %v3803 = vpop.f32.mrf.mxu0
    %v3804 = vadd.f32 %v3752, %v3803
    %v3805 = vpop.f32.mrf.mxu0
    %v3806 = vpop.f32.mrf.mxu0
    %v3807 = vadd.f32 %v3752, %v3806
    %v3808 = vpop.f32.mrf.mxu0
    %3809 = vdwg.mxu0
    %3810 = vst [vmem:[#allocation2] sm:$0xff] %v3804
    %3811 = vst [vmem:[#allocation2 + $0x8] sm:$0xff] %v3807
    // Predicated region
    $region78: #{tpu_custom_call.1} parent=1 // pred_check
      _
    $region79: #{tpu_custom_call.1} parent=1 // pred_check_branch
      %3813 = sbr.rel (0) target = $region81
    $region80: #{tpu_custom_call.1} parent=1 // pred_region
      %s3815 = ssub.s32 256, 256
      %3816 = vsyncadd [#allocation3], %s3815
      %s3817 = sshll.u32 [#allocation2], 4
      %s3818 = int_to_ptr.vmem [resolvable:$true] %s3817
      %3823 = dma.vmem_to_hbm [thread:$0]  %s3818, 256, %s19, [#allocation3], 128, 128, 8
    $region81: #{tpu_custom_call.1} parent=1 // pred_fallthru
      _
    // Predicated region
    $region82: #{tpu_custom_call.1} parent=1 // pred_check
      _
    $region83: #{tpu_custom_call.1} parent=1 // pred_check_branch
      %3825 = sbr.rel (0) target = $region85
    $region84: #{tpu_custom_call.1} parent=1 // pred_region
      %3826 = dma.done [#allocation3], 256
    $region85: #{tpu_custom_call.1} parent=1 // pred_fallthru
      _
    %3827 = vsyncpa [#allocation3], 1

</llo_original>
